<compile_context>
chip_gen: v7x
topology: tpu7x:2x2x1
jax: 0.10.0
libtpu: 0.0.40
codegen_flags: <defaults>
</compile_context>

<pallas_src>
import functools

import jax
import jax.numpy as jnp
from jax import lax
from jax.experimental import pallas as pl
from jax.experimental.pallas import tpu as pltpu

EPS = 1e-5
_NEG_BIG = -1e30   # exp(_NEG_BIG) == 0 in f32; mask BEFORE exp so no inf is ever produced.


def _sigmoid(x):
    # Numerically stable sigmoid; the reciprocal goes to the EUP slot.
    z = jnp.exp(-jnp.abs(x))
    r = pl.reciprocal(1.0 + z, approx=True)
    return jnp.where(x >= 0, r, z * r)


def _softplus(x):
    # Stable softplus: max(x,0) + log(1 + exp(-|x|)); exp argument is <= 0.
    return jnp.maximum(x, 0.0) + jnp.log(1.0 + jnp.exp(-jnp.abs(x)))


def _layernorm(x, gamma, beta):
    mu = jnp.mean(x, axis=-1, keepdims=True)
    var = jnp.mean((x - mu) ** 2, axis=-1, keepdims=True)
    return (x - mu) * lax.rsqrt(var + EPS) * gamma + beta


# ----------------------------------------------------------------------------
# Fused Mamba block kernel.  One program = one (batch, sequence-chunk) tile.
# ----------------------------------------------------------------------------
def mamba_block_kernel(*args, n_heads, add_pos, final_ln):
    # --- unpack (inputs..., outputs..., scratch...) according to the static flags ---
    idx = 0
    x_ref = args[idx]; idx += 1                       # (1, TL, D)   bf16
    pos_ref = None
    if add_pos:
        pos_ref = args[idx]; idx += 1                 # (TL, D)      f32
    (gamma_ref, beta_ref, w_in_ref, b_in_ref, w_b_ref, w_c_ref, w_dt_ref,
     b_dt_ref, a_log_ref, d_skip_ref, conv_w_ref, conv_b_ref, w_out_ref,
     b_out_ref) = args[idx:idx + 14]
    idx += 14
    lnf_g_ref = lnf_b_ref = None
    if final_ln:
        lnf_g_ref, lnf_b_ref = args[idx:idx + 2]; idx += 2
    y_ref, state_ref = args[idx:idx + 2]; idx += 2    # (1,TL,D), (1,N,d_inner)
    h_scr, conv_scr, y_scr, xs_scr = args[idx:idx + 4]

    TL = x_ref.shape[1]
    K = conv_w_ref.shape[0]
    d_inner = w_in_ref.shape[1]
    P = d_inner // n_heads
    l = pl.program_id(1)

    # ---- per-batch-element init (first sequence chunk) ----
    @pl.when(l == 0)
    def _init():
        h_scr[...] = jnp.zeros_like(h_scr)
        conv_scr[0:K - 1, :] = jnp.zeros((K - 1, d_inner), jnp.float32)

    # ---- load activation chunk (bf16 inter-layer) -> f32 compute ----
    x = x_ref[0].astype(jnp.float32)                  # (TL, D)
    if add_pos:
        x = x + pos_ref[...]                          # positional embedding fused in
    residual = x

    # ---- LayerNorm over D (f32) ----
    xn = _layernorm(x, gamma_ref[...], beta_ref[...])

    # ---- proj_in (bf16 MXU, f32 accumulate) ----
    u = jnp.dot(xn.astype(jnp.bfloat16), w_in_ref[...],
                preferred_element_type=jnp.float32) + b_in_ref[...]    # (TL, d_inner)
    u_bf = u.astype(jnp.bfloat16)

    # ---- input-dependent SSM parameters ----
    Bm = jnp.dot(u_bf, w_b_ref[...], preferred_element_type=jnp.float32)   # (TL, N)
    Cm = jnp.dot(u_bf, w_c_ref[...], preferred_element_type=jnp.float32)   # (TL, N)
    dt = _softplus(jnp.dot(u_bf, w_dt_ref[...],
                           preferred_element_type=jnp.float32) + b_dt_ref[...])  # (TL, H)
    A = -jnp.exp(a_log_ref[...])                      # (1, H)
    a = dt * A                                        # (TL, H) per-step log decay (<= 0)

    # ---- chunked SSD helpers (shared across heads) ----
    r_ids = lax.broadcasted_iota(jnp.int32, (TL, TL), 0)
    c_ids = lax.broadcasted_iota(jnp.int32, (TL, TL), 1)
    causal = r_ids >= c_ids
    lt_incl = causal.astype(jnp.float32)              # lower triangular incl. diag
    ut_incl = (r_ids <= c_ids).astype(jnp.float32)    # upper triangular incl. diag

    # Cumulative log decay, both orientations (tiny matmuls, kept f32 for accuracy).
    acs = jnp.dot(lt_incl, a, preferred_element_type=jnp.float32)          # (TL, H)
    acs_t = lax.dot_general(a, ut_incl, (((0,), (0,)), ((), ())),
                            preferred_element_type=jnp.float32)            # (H, TL)
    acs_last = acs[TL - 1:TL, :]                                           # (1, H)
    # Hoisted per-head exponentials (all <= 1, no overflow).
    exp_acs = jnp.exp(acs)                             # decay from chunk start   (TL, H)
    exp_to_end = jnp.exp(acs_last - acs)               # decay to chunk end       (TL, H)
    exp_last = exp_acs[TL - 1:TL, :]                   # full-chunk decay         (1, H)

    Cm_bf = Cm.astype(jnp.bfloat16)
    Bm_bf = Bm.astype(jnp.bfloat16)
    d_skip = d_skip_ref[...]                           # (1, d_inner)

    # C·B^T shared across heads (single B/C group); bf16 MXU, f32 accumulate.
    CB = lax.dot_general(Cm_bf, Bm_bf, (((1,), (1,)), ((), ())),
                         preferred_element_type=jnp.float32)               # (TL, TL)

    # Inter-chunk output contribution, batched across all heads: C @ h0_all.
    y_state = jnp.dot(Cm_bf, h_scr[...].astype(jnp.bfloat16),
                      preferred_element_type=jnp.float32)                  # (TL, d_inner)

    # ---- per-head intra-chunk work (only the (TL,TL)@(TL,P) matmul stays per head) ----
    # TODO(synk): for large head counts switch this static Python loop to lax.fori_loop
    #             with dynamic lane slices to bound live ranges further.
    for h in range(n_heads):
        s = slice(h * P, (h + 1) * P)
        # seg[t, s] = acs[t] - acs[s]; masked BEFORE exp -> never produces inf/NaN.
        seg = acs[:, h:h + 1] - acs_t[h:h + 1, :]                          # (TL, TL)
        decay = jnp.exp(jnp.where(causal, seg, _NEG_BIG))                  # values in [0, 1]
        M_bf = (CB * decay).astype(jnp.bfloat16)

        Xh = dt[:, h:h + 1] * u[:, s]                                      # (TL, P) f32
        # decay-to-end-scaled X, staged for the batched state update after the loop
        xs_scr[:, s] = exp_to_end[:, h:h + 1] * Xh

        y_intra = jnp.dot(M_bf, Xh.astype(jnp.bfloat16),
                          preferred_element_type=jnp.float32)              # (TL, P)
        y_scr[:, s] = (y_intra
                       + exp_acs[:, h:h + 1] * y_state[:, s]
                       + d_skip[:, s] * u[:, s])

    # ---- state update, batched across heads: B^T @ (scale * X_all)  ->  (N, d_inner) ----
    h_new = lax.dot_general(Bm_bf, xs_scr[...].astype(jnp.bfloat16),
                            (((0,), (0,)), ((), ())),
                            preferred_element_type=jnp.float32)
    for h in range(n_heads):
        s = slice(h * P, (h + 1) * P)
        h_scr[:, s] = exp_last[0:1, h:h + 1] * h_scr[:, s] + h_new[:, s]

    y_ssm = y_scr[...]                                                     # (TL, d_inner)

    # ---- depthwise causal conv1d + SiLU (padded scratch, static shifted reads) ----
    conv_scr[K - 1:K - 1 + TL, :] = u
    acc = jnp.broadcast_to(conv_b_ref[...], (TL, d_inner))
    for k in range(K):
        acc = acc + conv_scr[k:k + TL, :] * conv_w_ref[k:k + 1, :]
    x_conv = acc * _sigmoid(acc)                      # SiLU
    conv_scr[0:K - 1, :] = conv_scr[TL:TL + K - 1, :]  # carry tail to next chunk

    # ---- gating, proj_out, residual (dropout = identity in eval) ----
    gated = y_ssm * _sigmoid(x_conv)
    out = jnp.dot(gated.astype(jnp.bfloat16), w_out_ref[...],
                  preferred_element_type=jnp.float32) + b_out_ref[...]
    out = out + residual
    if final_ln:                                      # final model LayerNorm fused in
        out = _layernorm(out, lnf_g_ref[...], lnf_b_ref[...])
    y_ref[0] = out.astype(y_ref.dtype)

    # ---- emit final SSM state on the last chunk ----
    @pl.when(l == pl.num_programs(1) - 1)
    def _fin():
        state_ref[0] = h_scr[...]


def _const_spec(a):
    nd = a.ndim
    return pl.BlockSpec(a.shape, lambda b, l, _nd=nd: (0,) * _nd)


def mamba_block(x, p, *, chunk=128, pos=None, final_ln_params=None):
    B, L, D = x.shape
    d_inner = p["w_in"].shape[1]
    N = p["w_b"].shape[1]
    H = p["w_dt"].shape[1]
    K = p["conv_w"].shape[0]
    TL = min(chunk, L)
    assert L % TL == 0, "sequence length must be a multiple of the chunk size"
    NC = L // TL
    add_pos = pos is not None
    final_ln = final_ln_params is not None

    args = [x]
    in_specs = [pl.BlockSpec((1, TL, D), lambda b, l: (b, l, 0))]
    if add_pos:
        args.append(pos)
        in_specs.append(pl.BlockSpec((TL, D), lambda b, l: (l, 0)))
    weights = [p["gamma"], p["beta"], p["w_in"], p["b_in"], p["w_b"], p["w_c"],
               p["w_dt"], p["b_dt"], p["a_log"], p["d_skip"], p["conv_w"],
               p["conv_b"], p["w_out"], p["b_out"]]
    args += weights
    in_specs += [_const_spec(a) for a in weights]
    if final_ln:
        args += list(final_ln_params)
        in_specs += [_const_spec(a) for a in final_ln_params]
    # TODO(synk): single-buffer the constant-index weight operands (pl.Buffered(1) /
    #             manual staging) for very large d_inner on v7x's 64 MiB VMEM.

    # Last layer emits f32 (model output); inner layers stay bf16 and alias in-place.
    out_dtype = jnp.float32 if final_ln else jnp.bfloat16
    out_shape = (jax.ShapeDtypeStruct((B, L, D), out_dtype),
                 jax.ShapeDtypeStruct((B, N, d_inner), jnp.float32))
    out_specs = (pl.BlockSpec((1, TL, D), lambda b, l: (b, l, 0)),
                 pl.BlockSpec((1, N, d_inner), lambda b, l: (b, 0, 0)))
    aliases = {0: 0} if out_dtype == x.dtype else {}

    # Explicit VMEM budget (clamped so the same config also fits v7x's 64 MiB).
    const_bytes = sum(int(a.size) * a.dtype.itemsize for a in args[1 + int(add_pos):])
    est = 2 * TL * D * (x.dtype.itemsize + jnp.dtype(out_dtype).itemsize)   # act blocks, 2-buffered
    if add_pos:
        est += 2 * TL * D * pos.dtype.itemsize
    est += 2 * const_bytes                                                  # constant operands
    est += 2 * N * d_inner * 4                                              # state output block
    est += (N + (TL + K - 1) + 2 * TL) * d_inner * 4                        # scratch buffers
    est += 4 * TL * TL * 4 + 10 * TL * d_inner * 4                          # in-flight temporaries
    vmem_limit = int(min(max(2 * est, 32 * 1024 * 1024), 64 * 1024 * 1024))

    y, state = pl.pallas_call(
        functools.partial(mamba_block_kernel, n_heads=H,
                          add_pos=add_pos, final_ln=final_ln),
        grid=(B, NC),
        in_specs=in_specs,
        out_specs=out_specs,
        out_shape=out_shape,
        scratch_shapes=[
            pltpu.VMEM((N, d_inner), jnp.float32),             # running SSM state
            pltpu.VMEM((TL + K - 1, d_inner), jnp.float32),    # padded conv buffer + tail
            pltpu.VMEM((TL, d_inner), jnp.float32),            # per-head SSM output assembly
            pltpu.VMEM((TL, d_inner), jnp.float32),            # decay-scaled X for state update
        ],
        input_output_aliases=aliases,
        compiler_params=pltpu.CompilerParams(
            dimension_semantics=("parallel", "arbitrary"),
            vmem_limit_bytes=vmem_limit),
    )(*args)
    return y, state


# ----------------------------------------------------------------------------
# Model wrapper (glue) + deterministic parameter init
# ----------------------------------------------------------------------------
def init_params(key, *, d_model, d_state, num_layers, max_seq_len,
                expand_factor=2, conv_kernel_size=4, n_heads=2):
    d_inner = expand_factor * d_model
    assert d_inner % n_heads == 0

    def nrm(k, shape, scale=0.05, dtype=jnp.bfloat16):
        return (scale * jax.random.normal(k, shape, jnp.float32)).astype(dtype)

    keys = jax.random.split(key, num_layers + 2)
    params = {
        "pos": nrm(keys[0], (max_seq_len, d_model), 0.02, jnp.float32),
        "ln_f_gamma": jnp.ones((d_model,), jnp.float32),
        "ln_f_beta": jnp.zeros((d_model,), jnp.float32),
        "layers": [],
    }
    for i in range(num_layers):
        ks = jax.random.split(keys[i + 1], 8)
        layer = {
            "gamma": jnp.ones((1, d_model), jnp.float32),
            "beta": jnp.zeros((1, d_model), jnp.float32),
            "w_in": nrm(ks[0], (d_model, d_inner)),                 # bf16
            "b_in": jnp.zeros((1, d_inner), jnp.float32),
            "w_b": nrm(ks[1], (d_inner, d_state)),                  # bf16
            "w_c": nrm(ks[2], (d_inner, d_state)),                  # bf16
            "w_dt": nrm(ks[3], (d_inner, n_heads)),                 # bf16
            "b_dt": jnp.full((1, n_heads), 0.5, jnp.float32),
            "a_log": jnp.log(jnp.arange(1, n_heads + 1,
                                        dtype=jnp.float32)).reshape(1, n_heads),
            "d_skip": jnp.ones((1, d_inner), jnp.float32),
            "conv_w": nrm(ks[4], (conv_kernel_size, d_inner), 0.2, jnp.float32),
            "conv_b": jnp.zeros((1, d_inner), jnp.float32),
            "w_out": nrm(ks[5], (d_inner, d_model)),                # bf16
            "b_out": jnp.zeros((1, d_model), jnp.float32),
        }
        params["layers"].append(layer)
    return params


def mamba2_forward(x, params, *, chunk=128):
    """x: (B, L, D) float32. Returns (y_f32, list_of_states)."""
    B, L, D = x.shape
    pos = params["pos"][:L, :]
    lnf = (params["ln_f_gamma"].reshape(1, D), params["ln_f_beta"].reshape(1, D))
    xa = x.astype(jnp.bfloat16)                      # inter-layer activations travel in bf16
    n = len(params["layers"])
    states = []
    for i, lp in enumerate(params["layers"]):
        xa, st = mamba_block(
            xa, lp, chunk=chunk,
            pos=pos if i == 0 else None,             # pos-emb fused into first block
            final_ln_params=lnf if i == n - 1 else None)  # final LN fused into last block
        states.append(st)
    return xa, states
    # TODO(synk): dropout is treated as eval-mode identity (no RNG mask).


if __name__ == "__main__":
    key = jax.random.PRNGKey(0)
    B, L, D = 2, 16, 32
    d_state, num_layers, max_seq_len = 16, 2, 32
    n_heads = 2
    chunk = 8   # two sequence chunks per batch element -> exercises the state carry

    params = init_params(
        key, d_model=D, d_state=d_state, num_layers=num_layers,
        max_seq_len=max_seq_len, n_heads=n_heads,
    )
    x = jax.random.normal(jax.random.fold_in(key, 999), (B, L, D), jnp.float32)

    fwd = jax.jit(functools.partial(mamba2_forward, chunk=chunk))
    y, states = fwd(x, params)
    y = jax.block_until_ready(y)
    for s in states:
        jax.block_until_ready(s)

    assert y.shape == (B, L, D) and y.dtype == jnp.float32
    assert states[0].shape == (B, d_state, 2 * D)
    assert bool(jnp.all(jnp.isfinite(y)))
    print("KERNEL_OK")
</pallas_src>

<mosaic_0001>
module attributes {stable_mosaic.version = 11 : i64} {
  func.func @mamba_block_kernel(%arg0: i32, %arg1: i32, %arg2: memref<1x8x32xbf16, #tpu.memory_space<vmem>>, %arg3: memref<1x32xf32, #tpu.memory_space<vmem>>, %arg4: memref<1x32xf32, #tpu.memory_space<vmem>>, %arg5: memref<32x64xbf16, #tpu.memory_space<vmem>>, %arg6: memref<1x64xf32, #tpu.memory_space<vmem>>, %arg7: memref<64x16xbf16, #tpu.memory_space<vmem>>, %arg8: memref<64x16xbf16, #tpu.memory_space<vmem>>, %arg9: memref<64x2xbf16, #tpu.memory_space<vmem>>, %arg10: memref<1x2xf32, #tpu.memory_space<vmem>>, %arg11: memref<1x2xf32, #tpu.memory_space<vmem>>, %arg12: memref<1x64xf32, #tpu.memory_space<vmem>>, %arg13: memref<4x64xf32, #tpu.memory_space<vmem>>, %arg14: memref<1x64xf32, #tpu.memory_space<vmem>>, %arg15: memref<64x32xbf16, #tpu.memory_space<vmem>>, %arg16: memref<1x32xf32, #tpu.memory_space<vmem>>, %arg17: memref<1x32xf32, #tpu.memory_space<vmem>>, %arg18: memref<1x32xf32, #tpu.memory_space<vmem>>, %arg19: memref<1x8x32xf32, #tpu.memory_space<vmem>>, %arg20: memref<1x16x64xf32, #tpu.memory_space<vmem>>, %arg21: memref<16x64xf32, #tpu.memory_space<vmem>>, %arg22: memref<11x64xf32, #tpu.memory_space<vmem>>, %arg23: memref<8x64xf32, #tpu.memory_space<vmem>>, %arg24: memref<8x64xf32, #tpu.memory_space<vmem>>) attributes {dimension_semantics = [#tpu.dimension_semantics<parallel>, #tpu.dimension_semantics<arbitrary>], iteration_bounds = array<i64: 2, 2>, scalar_prefetch = 0 : i64, scratch_operands = 4 : i64, tpu.core_type = #tpu.core_type<tc>, window_params = [{transform_indices = @transform_0, window_bounds = array<i64: 1, 8, 32>}, {pipeline_mode = #tpu.pipeline_mode<synchronous>, transform_indices = @transform_1, window_bounds = array<i64: 1, 32>}, {pipeline_mode = #tpu.pipeline_mode<synchronous>, transform_indices = @transform_2, window_bounds = array<i64: 1, 32>}, {pipeline_mode = #tpu.pipeline_mode<synchronous>, transform_indices = @transform_3, window_bounds = array<i64: 32, 64>}, {pipeline_mode = #tpu.pipeline_mode<synchronous>, transform_indices = @transform_4, window_bounds = array<i64: 1, 64>}, {pipeline_mode = #tpu.pipeline_mode<synchronous>, transform_indices = @transform_5, window_bounds = array<i64: 64, 16>}, {pipeline_mode = #tpu.pipeline_mode<synchronous>, transform_indices = @transform_6, window_bounds = array<i64: 64, 16>}, {pipeline_mode = #tpu.pipeline_mode<synchronous>, transform_indices = @transform_7, window_bounds = array<i64: 64, 2>}, {pipeline_mode = #tpu.pipeline_mode<synchronous>, transform_indices = @transform_8, window_bounds = array<i64: 1, 2>}, {pipeline_mode = #tpu.pipeline_mode<synchronous>, transform_indices = @transform_9, window_bounds = array<i64: 1, 2>}, {pipeline_mode = #tpu.pipeline_mode<synchronous>, transform_indices = @transform_10, window_bounds = array<i64: 1, 64>}, {pipeline_mode = #tpu.pipeline_mode<synchronous>, transform_indices = @transform_11, window_bounds = array<i64: 4, 64>}, {pipeline_mode = #tpu.pipeline_mode<synchronous>, transform_indices = @transform_12, window_bounds = array<i64: 1, 64>}, {pipeline_mode = #tpu.pipeline_mode<synchronous>, transform_indices = @transform_13, window_bounds = array<i64: 64, 32>}, {pipeline_mode = #tpu.pipeline_mode<synchronous>, transform_indices = @transform_14, window_bounds = array<i64: 1, 32>}, {pipeline_mode = #tpu.pipeline_mode<synchronous>, transform_indices = @transform_15, window_bounds = array<i64: 1, 32>}, {pipeline_mode = #tpu.pipeline_mode<synchronous>, transform_indices = @transform_16, window_bounds = array<i64: 1, 32>}, {transform_indices = @transform_17, window_bounds = array<i64: 1, 8, 32>}, {transform_indices = @transform_18, window_bounds = array<i64: 1, 16, 64>}]} {
    %c0_i32 = arith.constant 0 : i32
    %0 = arith.cmpi eq, %arg1, %c0_i32 : i32
    %1 = arith.extui %0 : i1 to i32
    %c0_i32_0 = arith.constant 0 : i32
    %2 = arith.cmpi ne, %1, %c0_i32_0 : i32
    scf.if %2 {
      %cst_109 = arith.constant 0.000000e+00 : f32
      %252 = vector.broadcast %cst_109 : f32 to vector<16x64xf32>
      %c0_110 = arith.constant 0 : index
      %c0_111 = arith.constant 0 : index
      %253 = vector.load %arg21[%c0_110, %c0_111] : memref<16x64xf32, #tpu.memory_space<vmem>>, vector<16x64xf32>
      tpu.vector_store %arg21[%c0_110, %c0_111], %252 {strides = array<i32>} : memref<16x64xf32, #tpu.memory_space<vmem>>, vector<16x64xf32>,
      %cst_112 = arith.constant 0.000000e+00 : f32
      %254 = vector.broadcast %cst_112 : f32 to vector<3x64xf32>
      %c0_113 = arith.constant 0 : index
      %c0_114 = arith.constant 0 : index
      %255 = vector.load %arg22[%c0_113, %c0_114] : memref<11x64xf32, #tpu.memory_space<vmem>>, vector<3x64xf32>
      tpu.vector_store %arg22[%c0_113, %c0_114], %254 {strides = array<i32>} : memref<11x64xf32, #tpu.memory_space<vmem>>, vector<3x64xf32>,
    } else {
    }
    %c0 = arith.constant 0 : index
    %c0_1 = arith.constant 0 : index
    %c0_2 = arith.constant 0 : index
    %3 = vector.load %arg2[%c0, %c0_1, %c0_2] : memref<1x8x32xbf16, #tpu.memory_space<vmem>>, vector<1x8x32xbf16>
    %4 = vector.shape_cast %3 : vector<1x8x32xbf16> to vector<8x32xbf16>
    %5 = arith.extf %4 : vector<8x32xbf16> to vector<8x32xf32>
    %c0_3 = arith.constant 0 : index
    %c0_4 = arith.constant 0 : index
    %6 = vector.load %arg3[%c0_3, %c0_4] : memref<1x32xf32, #tpu.memory_space<vmem>>, vector<1x32xf32>
    %c0_5 = arith.constant 0 : index
    %c0_6 = arith.constant 0 : index
    %7 = vector.load %arg4[%c0_5, %c0_6] : memref<1x32xf32, #tpu.memory_space<vmem>>, vector<1x32xf32>
    %cst = arith.constant dense<0.000000e+00> : vector<8xf32>
    %8 = vector.multi_reduction <add>, %5, %cst [1] : vector<8x32xf32> to vector<8xf32>
    %9 = vector.shape_cast %8 : vector<8xf32> to vector<8x1xf32>
    %cst_7 = arith.constant 3.200000e+01 : f32
    %10 = vector.broadcast %cst_7 : f32 to vector<8x1xf32>
    %11 = arith.divf %9, %10 : vector<8x1xf32>
    %12 = vector.broadcast %11 : vector<8x1xf32> to vector<8x32xf32>
    %13 = arith.subf %5, %12 : vector<8x32xf32>
    %14 = arith.mulf %13, %13 : vector<8x32xf32>
    %cst_8 = arith.constant dense<0.000000e+00> : vector<8xf32>
    %15 = vector.multi_reduction <add>, %14, %cst_8 [1] : vector<8x32xf32> to vector<8xf32>
    %16 = vector.shape_cast %15 : vector<8xf32> to vector<8x1xf32>
    %cst_9 = arith.constant 3.200000e+01 : f32
    %17 = vector.broadcast %cst_9 : f32 to vector<8x1xf32>
    %18 = arith.divf %16, %17 : vector<8x1xf32>
    %19 = vector.broadcast %11 : vector<8x1xf32> to vector<8x32xf32>
    %20 = arith.subf %5, %19 : vector<8x32xf32>
    %cst_10 = arith.constant 9.99999974E-6 : f32
    %21 = vector.broadcast %cst_10 : f32 to vector<8x1xf32>
    %22 = arith.addf %18, %21 : vector<8x1xf32>
    %23 = math.rsqrt %22 : vector<8x1xf32>
    %24 = vector.broadcast %23 : vector<8x1xf32> to vector<8x32xf32>
    %25 = arith.mulf %20, %24 : vector<8x32xf32>
    %26 = vector.broadcast %6 : vector<1x32xf32> to vector<8x32xf32>
    %27 = arith.mulf %25, %26 : vector<8x32xf32>
    %28 = vector.broadcast %7 : vector<1x32xf32> to vector<8x32xf32>
    %29 = arith.addf %27, %28 : vector<8x32xf32>
    %30 = arith.truncf %29 : vector<8x32xf32> to vector<8x32xbf16>
    %c0_11 = arith.constant 0 : index
    %c0_12 = arith.constant 0 : index
    %31 = vector.load %arg5[%c0_11, %c0_12] : memref<32x64xbf16, #tpu.memory_space<vmem>>, vector<32x64xbf16>
    %cst_13 = arith.constant dense<0.000000e+00> : vector<8x64xf32>
    %32 = tpu.matmul %30, %31, %cst_13 {dimension_numbers = #tpu.dot_dimension_numbers<[1], [0], [0], [1], [0, 0, 1, 1], [], []>} : vector<8x32xbf16>, vector<32x64xbf16>, vector<8x64xf32> -> vector<8x64xf32>
    %c0_14 = arith.constant 0 : index
    %c0_15 = arith.constant 0 : index
    %33 = vector.load %arg6[%c0_14, %c0_15] : memref<1x64xf32, #tpu.memory_space<vmem>>, vector<1x64xf32>
    %34 = vector.broadcast %33 : vector<1x64xf32> to vector<8x64xf32>
    %35 = arith.addf %32, %34 : vector<8x64xf32>
    %36 = arith.truncf %35 : vector<8x64xf32> to vector<8x64xbf16>
    %c0_16 = arith.constant 0 : index
    %c0_17 = arith.constant 0 : index
    %37 = vector.load %arg7[%c0_16, %c0_17] : memref<64x16xbf16, #tpu.memory_space<vmem>>, vector<64x16xbf16>
    %cst_18 = arith.constant dense<0.000000e+00> : vector<8x16xf32>
    %38 = tpu.matmul %36, %37, %cst_18 {dimension_numbers = #tpu.dot_dimension_numbers<[1], [0], [0], [1], [0, 0, 1, 1], [], []>} : vector<8x64xbf16>, vector<64x16xbf16>, vector<8x16xf32> -> vector<8x16xf32>
    %c0_19 = arith.constant 0 : index
    %c0_20 = arith.constant 0 : index
    %39 = vector.load %arg8[%c0_19, %c0_20] : memref<64x16xbf16, #tpu.memory_space<vmem>>, vector<64x16xbf16>
    %cst_21 = arith.constant dense<0.000000e+00> : vector<8x16xf32>
    %40 = tpu.matmul %36, %39, %cst_21 {dimension_numbers = #tpu.dot_dimension_numbers<[1], [0], [0], [1], [0, 0, 1, 1], [], []>} : vector<8x64xbf16>, vector<64x16xbf16>, vector<8x16xf32> -> vector<8x16xf32>
    %c0_22 = arith.constant 0 : index
    %c0_23 = arith.constant 0 : index
    %41 = vector.load %arg9[%c0_22, %c0_23] : memref<64x2xbf16, #tpu.memory_space<vmem>>, vector<64x2xbf16>
    %cst_24 = arith.constant dense<0.000000e+00> : vector<8x2xf32>
    %42 = tpu.matmul %36, %41, %cst_24 {dimension_numbers = #tpu.dot_dimension_numbers<[1], [0], [0], [1], [0, 0, 1, 1], [], []>} : vector<8x64xbf16>, vector<64x2xbf16>, vector<8x2xf32> -> vector<8x2xf32>
    %c0_25 = arith.constant 0 : index
    %c0_26 = arith.constant 0 : index
    %43 = vector.load %arg10[%c0_25, %c0_26] : memref<1x2xf32, #tpu.memory_space<vmem>>, vector<1x2xf32>
    %44 = vector.broadcast %43 : vector<1x2xf32> to vector<8x2xf32>
    %45 = arith.addf %42, %44 : vector<8x2xf32>
    %cst_27 = arith.constant 0.000000e+00 : f32
    %46 = vector.broadcast %cst_27 : f32 to vector<8x2xf32>
    %47 = arith.maximumf %45, %46 : vector<8x2xf32>
    %48 = math.absf %45 : vector<8x2xf32>
    %cst_28 = arith.constant 0.000000e+00 : f32
    %49 = vector.broadcast %cst_28 : f32 to vector<8x2xf32>
    %50 = arith.subf %49, %48 : vector<8x2xf32>
    %51 = math.exp %50 : vector<8x2xf32>
    %cst_29 = arith.constant 1.000000e+00 : f32
    %52 = vector.broadcast %cst_29 : f32 to vector<8x2xf32>
    %53 = arith.addf %52, %51 : vector<8x2xf32>
    %54 = math.log %53 : vector<8x2xf32>
    %55 = arith.addf %47, %54 : vector<8x2xf32>
    %c0_30 = arith.constant 0 : index
    %c0_31 = arith.constant 0 : index
    %56 = vector.load %arg11[%c0_30, %c0_31] : memref<1x2xf32, #tpu.memory_space<vmem>>, vector<1x2xf32>
    %57 = math.exp %56 : vector<1x2xf32>
    %cst_32 = arith.constant 0.000000e+00 : f32
    %58 = vector.broadcast %cst_32 : f32 to vector<1x2xf32>
    %59 = arith.subf %58, %57 : vector<1x2xf32>
    %60 = vector.broadcast %59 : vector<1x2xf32> to vector<8x2xf32>
    %61 = arith.mulf %55, %60 : vector<8x2xf32>
    %62 = tpu.iota {dimensions = array<i32: 0>} : vector<8x8xi32>
    %63 = tpu.iota {dimensions = array<i32: 1>} : vector<8x8xi32>
    %64 = arith.cmpi sge, %62, %63 : vector<8x8xi32>
    %65 = arith.extui %64 : vector<8x8xi1> to vector<8x8xi32>
    %66 = arith.sitofp %65 : vector<8x8xi32> to vector<8x8xf32>
    %67 = arith.cmpi sle, %62, %63 : vector<8x8xi32>
    %68 = arith.extui %67 : vector<8x8xi1> to vector<8x8xi32>
    %69 = arith.sitofp %68 : vector<8x8xi32> to vector<8x8xf32>
    %cst_33 = arith.constant dense<0.000000e+00> : vector<8x2xf32>
    %70 = tpu.matmul %66, %61, %cst_33 {dimension_numbers = #tpu.dot_dimension_numbers<[1], [0], [0], [1], [0, 0, 1, 1], [], []>} : vector<8x8xf32>, vector<8x2xf32>, vector<8x2xf32> -> vector<8x2xf32>
    %cst_34 = arith.constant dense<0.000000e+00> : vector<2x8xf32>
    %71 = tpu.matmul %61, %69, %cst_34 {dimension_numbers = #tpu.dot_dimension_numbers<[0], [0], [1], [1], [0, 1, 1, 1], [], []>} : vector<8x2xf32>, vector<8x8xf32>, vector<2x8xf32> -> vector<2x8xf32>
    %72 = vector.extract_strided_slice %70 {offsets = [7, 0], sizes = [1, 2], strides = [1, 1]} : vector<8x2xf32> to vector<1x2xf32>
    %73 = math.exp %70 : vector<8x2xf32>
    %74 = vector.broadcast %72 : vector<1x2xf32> to vector<8x2xf32>
    %75 = arith.subf %74, %70 : vector<8x2xf32>
    %76 = math.exp %75 : vector<8x2xf32>
    %77 = vector.extract_strided_slice %73 {offsets = [7, 0], sizes = [1, 2], strides = [1, 1]} : vector<8x2xf32> to vector<1x2xf32>
    %78 = arith.truncf %40 : vector<8x16xf32> to vector<8x16xbf16>
    %79 = arith.truncf %38 : vector<8x16xf32> to vector<8x16xbf16>
    %c0_35 = arith.constant 0 : index
    %c0_36 = arith.constant 0 : index
    %80 = vector.load %arg12[%c0_35, %c0_36] : memref<1x64xf32, #tpu.memory_space<vmem>>, vector<1x64xf32>
    %cst_37 = arith.constant dense<0.000000e+00> : vector<8x8xf32>
    %81 = tpu.matmul %78, %79, %cst_37 {dimension_numbers = #tpu.dot_dimension_numbers<[1], [1], [0], [0], [0, 0, 1, 0], [], []>} : vector<8x16xbf16>, vector<8x16xbf16>, vector<8x8xf32> -> vector<8x8xf32>
    %c0_38 = arith.constant 0 : index
    %c0_39 = arith.constant 0 : index
    %82 = vector.load %arg21[%c0_38, %c0_39] : memref<16x64xf32, #tpu.memory_space<vmem>>, vector<16x64xf32>
    %83 = arith.truncf %82 : vector<16x64xf32> to vector<16x64xbf16>
    %cst_40 = arith.constant dense<0.000000e+00> : vector<8x64xf32>
    %84 = tpu.matmul %78, %83, %cst_40 {dimension_numbers = #tpu.dot_dimension_numbers<[1], [0], [0], [1], [0, 0, 1, 1], [], []>} : vector<8x16xbf16>, vector<16x64xbf16>, vector<8x64xf32> -> vector<8x64xf32>
    %85 = vector.extract_strided_slice %70 {offsets = [0, 0], sizes = [8, 1], strides = [1, 1]} : vector<8x2xf32> to vector<8x1xf32>
    %86 = vector.extract_strided_slice %71 {offsets = [0, 0], sizes = [1, 8], strides = [1, 1]} : vector<2x8xf32> to vector<1x8xf32>
    %87 = vector.broadcast %85 : vector<8x1xf32> to vector<8x8xf32>
    %88 = vector.broadcast %86 : vector<1x8xf32> to vector<8x8xf32>
    %89 = arith.subf %87, %88 : vector<8x8xf32>
    %cst_41 = arith.constant -1.000000e+30 : f32
    %90 = vector.broadcast %cst_41 : f32 to vector<8x8xf32>
    %91 = arith.select %64, %89, %90 : vector<8x8xi1>, vector<8x8xf32>
    %92 = math.exp %91 : vector<8x8xf32>
    %93 = arith.mulf %81, %92 : vector<8x8xf32>
    %94 = arith.truncf %93 : vector<8x8xf32> to vector<8x8xbf16>
    %95 = vector.extract_strided_slice %55 {offsets = [0, 0], sizes = [8, 1], strides = [1, 1]} : vector<8x2xf32> to vector<8x1xf32>
    %96 = vector.extract_strided_slice %35 {offsets = [0, 0], sizes = [8, 32], strides = [1, 1]} : vector<8x64xf32> to vector<8x32xf32>
    %97 = vector.broadcast %95 : vector<8x1xf32> to vector<8x32xf32>
    %98 = arith.mulf %97, %96 : vector<8x32xf32>
    %99 = vector.extract_strided_slice %76 {offsets = [0, 0], sizes = [8, 1], strides = [1, 1]} : vector<8x2xf32> to vector<8x1xf32>
    %100 = vector.broadcast %99 : vector<8x1xf32> to vector<8x32xf32>
    %101 = arith.mulf %100, %98 : vector<8x32xf32>
    %c0_42 = arith.constant 0 : index
    %c0_43 = arith.constant 0 : index
    %102 = vector.load %arg24[%c0_42, %c0_43] : memref<8x64xf32, #tpu.memory_space<vmem>>, vector<8x32xf32>
    tpu.vector_store %arg24[%c0_42, %c0_43], %101 {strides = array<i32>} : memref<8x64xf32, #tpu.memory_space<vmem>>, vector<8x32xf32>,
    %103 = arith.truncf %98 : vector<8x32xf32> to vector<8x32xbf16>
    %cst_44 = arith.constant dense<0.000000e+00> : vector<8x32xf32>
    %104 = tpu.matmul %94, %103, %cst_44 {dimension_numbers = #tpu.dot_dimension_numbers<[1], [0], [0], [1], [0, 0, 1, 1], [], []>} : vector<8x8xbf16>, vector<8x32xbf16>, vector<8x32xf32> -> vector<8x32xf32>
    %105 = vector.extract_strided_slice %73 {offsets = [0, 0], sizes = [8, 1], strides = [1, 1]} : vector<8x2xf32> to vector<8x1xf32>
    %106 = vector.extract_strided_slice %84 {offsets = [0, 0], sizes = [8, 32], strides = [1, 1]} : vector<8x64xf32> to vector<8x32xf32>
    %107 = vector.broadcast %105 : vector<8x1xf32> to vector<8x32xf32>
    %108 = arith.mulf %107, %106 : vector<8x32xf32>
    %109 = arith.addf %104, %108 : vector<8x32xf32>
    %110 = vector.extract_strided_slice %80 {offsets = [0, 0], sizes = [1, 32], strides = [1, 1]} : vector<1x64xf32> to vector<1x32xf32>
    %111 = vector.extract_strided_slice %35 {offsets = [0, 0], sizes = [8, 32], strides = [1, 1]} : vector<8x64xf32> to vector<8x32xf32>
    %112 = vector.broadcast %110 : vector<1x32xf32> to vector<8x32xf32>
    %113 = arith.mulf %112, %111 : vector<8x32xf32>
    %114 = arith.addf %109, %113 : vector<8x32xf32>
    %c0_45 = arith.constant 0 : index
    %c0_46 = arith.constant 0 : index
    %115 = vector.load %arg23[%c0_45, %c0_46] : memref<8x64xf32, #tpu.memory_space<vmem>>, vector<8x32xf32>
    tpu.vector_store %arg23[%c0_45, %c0_46], %114 {strides = array<i32>} : memref<8x64xf32, #tpu.memory_space<vmem>>, vector<8x32xf32>,
    %116 = vector.extract_strided_slice %70 {offsets = [0, 1], sizes = [8, 1], strides = [1, 1]} : vector<8x2xf32> to vector<8x1xf32>
    %117 = vector.extract_strided_slice %71 {offsets = [1, 0], sizes = [1, 8], strides = [1, 1]} : vector<2x8xf32> to vector<1x8xf32>
    %118 = vector.broadcast %116 : vector<8x1xf32> to vector<8x8xf32>
    %119 = vector.broadcast %117 : vector<1x8xf32> to vector<8x8xf32>
    %120 = arith.subf %118, %119 : vector<8x8xf32>
    %cst_47 = arith.constant -1.000000e+30 : f32
    %121 = vector.broadcast %cst_47 : f32 to vector<8x8xf32>
    %122 = arith.select %64, %120, %121 : vector<8x8xi1>, vector<8x8xf32>
    %123 = math.exp %122 : vector<8x8xf32>
    %124 = arith.mulf %81, %123 : vector<8x8xf32>
    %125 = arith.truncf %124 : vector<8x8xf32> to vector<8x8xbf16>
    %126 = vector.extract_strided_slice %55 {offsets = [0, 1], sizes = [8, 1], strides = [1, 1]} : vector<8x2xf32> to vector<8x1xf32>
    %127 = vector.extract_strided_slice %35 {offsets = [0, 32], sizes = [8, 32], strides = [1, 1]} : vector<8x64xf32> to vector<8x32xf32>
    %128 = vector.broadcast %126 : vector<8x1xf32> to vector<8x32xf32>
    %129 = arith.mulf %128, %127 : vector<8x32xf32>
    %130 = vector.extract_strided_slice %76 {offsets = [0, 1], sizes = [8, 1], strides = [1, 1]} : vector<8x2xf32> to vector<8x1xf32>
    %131 = vector.broadcast %130 : vector<8x1xf32> to vector<8x32xf32>
    %132 = arith.mulf %131, %129 : vector<8x32xf32>
    %c0_48 = arith.constant 0 : index
    %c32 = arith.constant 32 : index
    %133 = vector.load %arg24[%c0_48, %c32] : memref<8x64xf32, #tpu.memory_space<vmem>>, vector<8x32xf32>
    tpu.vector_store %arg24[%c0_48, %c32], %132 {strides = array<i32>} : memref<8x64xf32, #tpu.memory_space<vmem>>, vector<8x32xf32>,
    %134 = arith.truncf %129 : vector<8x32xf32> to vector<8x32xbf16>
    %cst_49 = arith.constant dense<0.000000e+00> : vector<8x32xf32>
    %135 = tpu.matmul %125, %134, %cst_49 {dimension_numbers = #tpu.dot_dimension_numbers<[1], [0], [0], [1], [0, 0, 1, 1], [], []>} : vector<8x8xbf16>, vector<8x32xbf16>, vector<8x32xf32> -> vector<8x32xf32>
    %136 = vector.extract_strided_slice %73 {offsets = [0, 1], sizes = [8, 1], strides = [1, 1]} : vector<8x2xf32> to vector<8x1xf32>
    %137 = vector.extract_strided_slice %84 {offsets = [0, 32], sizes = [8, 32], strides = [1, 1]} : vector<8x64xf32> to vector<8x32xf32>
    %138 = vector.broadcast %136 : vector<8x1xf32> to vector<8x32xf32>
    %139 = arith.mulf %138, %137 : vector<8x32xf32>
    %140 = arith.addf %135, %139 : vector<8x32xf32>
    %141 = vector.extract_strided_slice %80 {offsets = [0, 32], sizes = [1, 32], strides = [1, 1]} : vector<1x64xf32> to vector<1x32xf32>
    %142 = vector.extract_strided_slice %35 {offsets = [0, 32], sizes = [8, 32], strides = [1, 1]} : vector<8x64xf32> to vector<8x32xf32>
    %143 = vector.broadcast %141 : vector<1x32xf32> to vector<8x32xf32>
    %144 = arith.mulf %143, %142 : vector<8x32xf32>
    %145 = arith.addf %140, %144 : vector<8x32xf32>
    %c0_50 = arith.constant 0 : index
    %c32_51 = arith.constant 32 : index
    %146 = vector.load %arg23[%c0_50, %c32_51] : memref<8x64xf32, #tpu.memory_space<vmem>>, vector<8x32xf32>
    tpu.vector_store %arg23[%c0_50, %c32_51], %145 {strides = array<i32>} : memref<8x64xf32, #tpu.memory_space<vmem>>, vector<8x32xf32>,
    %c0_52 = arith.constant 0 : index
    %c0_53 = arith.constant 0 : index
    %147 = vector.load %arg24[%c0_52, %c0_53] : memref<8x64xf32, #tpu.memory_space<vmem>>, vector<8x64xf32>
    %148 = arith.truncf %147 : vector<8x64xf32> to vector<8x64xbf16>
    %cst_54 = arith.constant dense<0.000000e+00> : vector<16x64xf32>
    %149 = tpu.matmul %79, %148, %cst_54 {dimension_numbers = #tpu.dot_dimension_numbers<[0], [0], [1], [1], [0, 1, 1, 1], [], []>} : vector<8x16xbf16>, vector<8x64xbf16>, vector<16x64xf32> -> vector<16x64xf32>
    %150 = vector.extract_strided_slice %77 {offsets = [0, 0], sizes = [1, 1], strides = [1, 1]} : vector<1x2xf32> to vector<1x1xf32>
    %c0_55 = arith.constant 0 : index
    %c0_56 = arith.constant 0 : index
    %151 = vector.load %arg21[%c0_55, %c0_56] : memref<16x64xf32, #tpu.memory_space<vmem>>, vector<16x32xf32>
    %152 = vector.broadcast %150 : vector<1x1xf32> to vector<16x32xf32>
    %153 = arith.mulf %152, %151 : vector<16x32xf32>
    %154 = vector.extract_strided_slice %149 {offsets = [0, 0], sizes = [16, 32], strides = [1, 1]} : vector<16x64xf32> to vector<16x32xf32>
    %155 = arith.addf %153, %154 : vector<16x32xf32>
    %c0_57 = arith.constant 0 : index
    %c0_58 = arith.constant 0 : index
    %156 = vector.load %arg21[%c0_57, %c0_58] : memref<16x64xf32, #tpu.memory_space<vmem>>, vector<16x32xf32>
    tpu.vector_store %arg21[%c0_57, %c0_58], %155 {strides = array<i32>} : memref<16x64xf32, #tpu.memory_space<vmem>>, vector<16x32xf32>,
    %157 = vector.extract_strided_slice %77 {offsets = [0, 1], sizes = [1, 1], strides = [1, 1]} : vector<1x2xf32> to vector<1x1xf32>
    %c0_59 = arith.constant 0 : index
    %c32_60 = arith.constant 32 : index
    %158 = vector.load %arg21[%c0_59, %c32_60] : memref<16x64xf32, #tpu.memory_space<vmem>>, vector<16x32xf32>
    %159 = vector.broadcast %157 : vector<1x1xf32> to vector<16x32xf32>
    %160 = arith.mulf %159, %158 : vector<16x32xf32>
    %161 = vector.extract_strided_slice %149 {offsets = [0, 32], sizes = [16, 32], strides = [1, 1]} : vector<16x64xf32> to vector<16x32xf32>
    %162 = arith.addf %160, %161 : vector<16x32xf32>
    %c0_61 = arith.constant 0 : index
    %c32_62 = arith.constant 32 : index
    %163 = vector.load %arg21[%c0_61, %c32_62] : memref<16x64xf32, #tpu.memory_space<vmem>>, vector<16x32xf32>
    tpu.vector_store %arg21[%c0_61, %c32_62], %162 {strides = array<i32>} : memref<16x64xf32, #tpu.memory_space<vmem>>, vector<16x32xf32>,
    %c0_63 = arith.constant 0 : index
    %c0_64 = arith.constant 0 : index
    %164 = vector.load %arg23[%c0_63, %c0_64] : memref<8x64xf32, #tpu.memory_space<vmem>>, vector<8x64xf32>
    %c3 = arith.constant 3 : index
    %c0_65 = arith.constant 0 : index
    %165 = vector.load %arg22[%c3, %c0_65] : memref<11x64xf32, #tpu.memory_space<vmem>>, vector<8x64xf32>
    tpu.vector_store %arg22[%c3, %c0_65], %35 {strides = array<i32>} : memref<11x64xf32, #tpu.memory_space<vmem>>, vector<8x64xf32>,
    %c0_66 = arith.constant 0 : index
    %c0_67 = arith.constant 0 : index
    %166 = vector.load %arg14[%c0_66, %c0_67] : memref<1x64xf32, #tpu.memory_space<vmem>>, vector<1x64xf32>
    %167 = vector.shape_cast %166 : vector<1x64xf32> to vector<1x64xf32>
    %168 = vector.broadcast %167 : vector<1x64xf32> to vector<8x64xf32>
    %c0_68 = arith.constant 0 : index
    %c0_69 = arith.constant 0 : index
    %169 = vector.load %arg22[%c0_68, %c0_69] : memref<11x64xf32, #tpu.memory_space<vmem>>, vector<8x64xf32>
    %c0_70 = arith.constant 0 : index
    %c0_71 = arith.constant 0 : index
    %170 = vector.load %arg13[%c0_70, %c0_71] : memref<4x64xf32, #tpu.memory_space<vmem>>, vector<1x64xf32>
    %171 = vector.broadcast %170 : vector<1x64xf32> to vector<8x64xf32>
    %172 = arith.mulf %169, %171 : vector<8x64xf32>
    %173 = arith.addf %168, %172 : vector<8x64xf32>
    %c1 = arith.constant 1 : index
    %c0_72 = arith.constant 0 : index
    %174 = vector.load %arg22[%c1, %c0_72] : memref<11x64xf32, #tpu.memory_space<vmem>>, vector<8x64xf32>
    %c1_73 = arith.constant 1 : index
    %c0_74 = arith.constant 0 : index
    %175 = vector.load %arg13[%c1_73, %c0_74] : memref<4x64xf32, #tpu.memory_space<vmem>>, vector<1x64xf32>
    %176 = vector.broadcast %175 : vector<1x64xf32> to vector<8x64xf32>
    %177 = arith.mulf %174, %176 : vector<8x64xf32>
    %178 = arith.addf %173, %177 : vector<8x64xf32>
    %c2 = arith.constant 2 : index
    %c0_75 = arith.constant 0 : index
    %179 = vector.load %arg22[%c2, %c0_75] : memref<11x64xf32, #tpu.memory_space<vmem>>, vector<8x64xf32>
    %c2_76 = arith.constant 2 : index
    %c0_77 = arith.constant 0 : index
    %180 = vector.load %arg13[%c2_76, %c0_77] : memref<4x64xf32, #tpu.memory_space<vmem>>, vector<1x64xf32>
    %181 = vector.broadcast %180 : vector<1x64xf32> to vector<8x64xf32>
    %182 = arith.mulf %179, %181 : vector<8x64xf32>
    %183 = arith.addf %178, %182 : vector<8x64xf32>
    %c3_78 = arith.constant 3 : index
    %c0_79 = arith.constant 0 : index
    %184 = vector.load %arg22[%c3_78, %c0_79] : memref<11x64xf32, #tpu.memory_space<vmem>>, vector<8x64xf32>
    %c3_80 = arith.constant 3 : index
    %c0_81 = arith.constant 0 : index
    %185 = vector.load %arg13[%c3_80, %c0_81] : memref<4x64xf32, #tpu.memory_space<vmem>>, vector<1x64xf32>
    %186 = vector.broadcast %185 : vector<1x64xf32> to vector<8x64xf32>
    %187 = arith.mulf %184, %186 : vector<8x64xf32>
    %188 = arith.addf %183, %187 : vector<8x64xf32>
    %189 = math.absf %188 : vector<8x64xf32>
    %cst_82 = arith.constant 0.000000e+00 : f32
    %190 = vector.broadcast %cst_82 : f32 to vector<8x64xf32>
    %191 = arith.subf %190, %189 : vector<8x64xf32>
    %192 = math.exp %191 : vector<8x64xf32>
    %cst_83 = arith.constant 1.000000e+00 : f32
    %193 = vector.broadcast %cst_83 : f32 to vector<8x64xf32>
    %194 = arith.addf %193, %192 : vector<8x64xf32>
    %195 = tpu.reciprocal %194 {approx = true} : vector<8x64xf32> -> vector<8x64xf32>
    %cst_84 = arith.constant 0.000000e+00 : f32
    %196 = vector.broadcast %cst_84 : f32 to vector<8x64xf32>
    %197 = arith.cmpf oge, %188, %196 : vector<8x64xf32>
    %198 = arith.mulf %192, %195 : vector<8x64xf32>
    %199 = arith.select %197, %195, %198 : vector<8x64xi1>, vector<8x64xf32>
    %200 = arith.mulf %188, %199 : vector<8x64xf32>
    %c8 = arith.constant 8 : index
    %c0_85 = arith.constant 0 : index
    %201 = vector.load %arg22[%c8, %c0_85] : memref<11x64xf32, #tpu.memory_space<vmem>>, vector<3x64xf32>
    %c0_86 = arith.constant 0 : index
    %c0_87 = arith.constant 0 : index
    %202 = vector.load %arg22[%c0_86, %c0_87] : memref<11x64xf32, #tpu.memory_space<vmem>>, vector<3x64xf32>
    tpu.vector_store %arg22[%c0_86, %c0_87], %201 {strides = array<i32>} : memref<11x64xf32, #tpu.memory_space<vmem>>, vector<3x64xf32>,
    %203 = math.absf %200 : vector<8x64xf32>
    %cst_88 = arith.constant 0.000000e+00 : f32
    %204 = vector.broadcast %cst_88 : f32 to vector<8x64xf32>
    %205 = arith.subf %204, %203 : vector<8x64xf32>
    %206 = math.exp %205 : vector<8x64xf32>
    %cst_89 = arith.constant 1.000000e+00 : f32
    %207 = vector.broadcast %cst_89 : f32 to vector<8x64xf32>
    %208 = arith.addf %207, %206 : vector<8x64xf32>
    %209 = tpu.reciprocal %208 {approx = true} : vector<8x64xf32> -> vector<8x64xf32>
    %cst_90 = arith.constant 0.000000e+00 : f32
    %210 = vector.broadcast %cst_90 : f32 to vector<8x64xf32>
    %211 = arith.cmpf oge, %200, %210 : vector<8x64xf32>
    %212 = arith.mulf %206, %209 : vector<8x64xf32>
    %213 = arith.select %211, %209, %212 : vector<8x64xi1>, vector<8x64xf32>
    %214 = arith.mulf %164, %213 : vector<8x64xf32>
    %215 = arith.truncf %214 : vector<8x64xf32> to vector<8x64xbf16>
    %c0_91 = arith.constant 0 : index
    %c0_92 = arith.constant 0 : index
    %216 = vector.load %arg15[%c0_91, %c0_92] : memref<64x32xbf16, #tpu.memory_space<vmem>>, vector<64x32xbf16>
    %cst_93 = arith.constant dense<0.000000e+00> : vector<8x32xf32>
    %217 = tpu.matmul %215, %216, %cst_93 {dimension_numbers = #tpu.dot_dimension_numbers<[1], [0], [0], [1], [0, 0, 1, 1], [], []>} : vector<8x64xbf16>, vector<64x32xbf16>, vector<8x32xf32> -> vector<8x32xf32>
    %c0_94 = arith.constant 0 : index
    %c0_95 = arith.constant 0 : index
    %218 = vector.load %arg16[%c0_94, %c0_95] : memref<1x32xf32, #tpu.memory_space<vmem>>, vector<1x32xf32>
    %219 = vector.broadcast %218 : vector<1x32xf32> to vector<8x32xf32>
    %220 = arith.addf %217, %219 : vector<8x32xf32>
    %221 = arith.addf %220, %5 : vector<8x32xf32>
    %c0_96 = arith.constant 0 : index
    %c0_97 = arith.constant 0 : index
    %222 = vector.load %arg17[%c0_96, %c0_97] : memref<1x32xf32, #tpu.memory_space<vmem>>, vector<1x32xf32>
    %c0_98 = arith.constant 0 : index
    %c0_99 = arith.constant 0 : index
    %223 = vector.load %arg18[%c0_98, %c0_99] : memref<1x32xf32, #tpu.memory_space<vmem>>, vector<1x32xf32>
    %cst_100 = arith.constant dense<0.000000e+00> : vector<8xf32>
    %224 = vector.multi_reduction <add>, %221, %cst_100 [1] : vector<8x32xf32> to vector<8xf32>
    %225 = vector.shape_cast %224 : vector<8xf32> to vector<8x1xf32>
    %cst_101 = arith.constant 3.200000e+01 : f32
    %226 = vector.broadcast %cst_101 : f32 to vector<8x1xf32>
    %227 = arith.divf %225, %226 : vector<8x1xf32>
    %228 = vector.broadcast %227 : vector<8x1xf32> to vector<8x32xf32>
    %229 = arith.subf %221, %228 : vector<8x32xf32>
    %230 = arith.mulf %229, %229 : vector<8x32xf32>
    %cst_102 = arith.constant dense<0.000000e+00> : vector<8xf32>
    %231 = vector.multi_reduction <add>, %230, %cst_102 [1] : vector<8x32xf32> to vector<8xf32>
    %232 = vector.shape_cast %231 : vector<8xf32> to vector<8x1xf32>
    %cst_103 = arith.constant 3.200000e+01 : f32
    %233 = vector.broadcast %cst_103 : f32 to vector<8x1xf32>
    %234 = arith.divf %232, %233 : vector<8x1xf32>
    %235 = vector.broadcast %227 : vector<8x1xf32> to vector<8x32xf32>
    %236 = arith.subf %221, %235 : vector<8x32xf32>
    %cst_104 = arith.constant 9.99999974E-6 : f32
    %237 = vector.broadcast %cst_104 : f32 to vector<8x1xf32>
    %238 = arith.addf %234, %237 : vector<8x1xf32>
    %239 = math.rsqrt %238 : vector<8x1xf32>
    %240 = vector.broadcast %239 : vector<8x1xf32> to vector<8x32xf32>
    %241 = arith.mulf %236, %240 : vector<8x32xf32>
    %242 = vector.broadcast %222 : vector<1x32xf32> to vector<8x32xf32>
    %243 = arith.mulf %241, %242 : vector<8x32xf32>
    %244 = vector.broadcast %223 : vector<1x32xf32> to vector<8x32xf32>
    %245 = arith.addf %243, %244 : vector<8x32xf32>
    %c0_105 = arith.constant 0 : index
    %c0_106 = arith.constant 0 : index
    %c0_107 = arith.constant 0 : index
    %246 = vector.load %arg19[%c0_105, %c0_106, %c0_107] : memref<1x8x32xf32, #tpu.memory_space<vmem>>, vector<1x8x32xf32>
    %247 = vector.shape_cast %246 : vector<1x8x32xf32> to vector<8x32xf32>
    %248 = vector.shape_cast %245 : vector<8x32xf32> to vector<1x8x32xf32>
    tpu.vector_store %arg19[%c0_105, %c0_106, %c0_107], %248 {strides = array<i32>} : memref<1x8x32xf32, #tpu.memory_space<vmem>>, vector<1x8x32xf32>,
    %c1_i32 = arith.constant 1 : i32
    %249 = arith.cmpi eq, %arg1, %c1_i32 : i32
    %250 = arith.extui %249 : i1 to i32
    %c0_i32_108 = arith.constant 0 : i32
    %251 = arith.cmpi ne, %250, %c0_i32_108 : i32
    scf.if %251 {
      %c0_109 = arith.constant 0 : index
      %c0_110 = arith.constant 0 : index
      %252 = vector.load %arg21[%c0_109, %c0_110] : memref<16x64xf32, #tpu.memory_space<vmem>>, vector<16x64xf32>
      %c0_111 = arith.constant 0 : index
      %c0_112 = arith.constant 0 : index
      %c0_113 = arith.constant 0 : index
      %253 = vector.load %arg20[%c0_111, %c0_112, %c0_113] : memref<1x16x64xf32, #tpu.memory_space<vmem>>, vector<1x16x64xf32>
      %254 = vector.shape_cast %253 : vector<1x16x64xf32> to vector<16x64xf32>
      %255 = vector.shape_cast %252 : vector<16x64xf32> to vector<1x16x64xf32>
      tpu.vector_store %arg20[%c0_111, %c0_112, %c0_113], %255 {strides = array<i32>} : memref<1x16x64xf32, #tpu.memory_space<vmem>>, vector<1x16x64xf32>,
    } else {
    }
    return
  }
  func.func @transform_0(%arg0: i32, %arg1: i32) -> (i32, i32, i32) {
    %c0_i32 = arith.constant 0 : i32
    %c0_i32_0 = arith.constant 0 : i32
    return %arg0, %arg1, %c0_i32 : i32, i32, i32
  }
  func.func @transform_1(%arg0: i32, %arg1: i32) -> (i32, i32) {
    %c0_i32 = arith.constant 0 : i32
    %c0_i32_0 = arith.constant 0 : i32
    %c0_i32_1 = arith.constant 0 : i32
    return %c0_i32, %c0_i32_0 : i32, i32
  }
  func.func @transform_2(%arg0: i32, %arg1: i32) -> (i32, i32) {
    %c0_i32 = arith.constant 0 : i32
    %c0_i32_0 = arith.constant 0 : i32
    %c0_i32_1 = arith.constant 0 : i32
    return %c0_i32, %c0_i32_0 : i32, i32
  }
  func.func @transform_3(%arg0: i32, %arg1: i32) -> (i32, i32) {
    %c0_i32 = arith.constant 0 : i32
    %c0_i32_0 = arith.constant 0 : i32
    %c0_i32_1 = arith.constant 0 : i32
    return %c0_i32, %c0_i32_0 : i32, i32
  }
  func.func @transform_4(%arg0: i32, %arg1: i32) -> (i32, i32) {
    %c0_i32 = arith.constant 0 : i32
    %c0_i32_0 = arith.constant 0 : i32
    %c0_i32_1 = arith.constant 0 : i32
    return %c0_i32, %c0_i32_0 : i32, i32
  }
  func.func @transform_5(%arg0: i32, %arg1: i32) -> (i32, i32) {
    %c0_i32 = arith.constant 0 : i32
    %c0_i32_0 = arith.constant 0 : i32
    %c0_i32_1 = arith.constant 0 : i32
    return %c0_i32, %c0_i32_0 : i32, i32
  }
  func.func @transform_6(%arg0: i32, %arg1: i32) -> (i32, i32) {
    %c0_i32 = arith.constant 0 : i32
    %c0_i32_0 = arith.constant 0 : i32
    %c0_i32_1 = arith.constant 0 : i32
    return %c0_i32, %c0_i32_0 : i32, i32
  }
  func.func @transform_7(%arg0: i32, %arg1: i32) -> (i32, i32) {
    %c0_i32 = arith.constant 0 : i32
    %c0_i32_0 = arith.constant 0 : i32
    %c0_i32_1 = arith.constant 0 : i32
    return %c0_i32, %c0_i32_0 : i32, i32
  }
  func.func @transform_8(%arg0: i32, %arg1: i32) -> (i32, i32) {
    %c0_i32 = arith.constant 0 : i32
    %c0_i32_0 = arith.constant 0 : i32
    %c0_i32_1 = arith.constant 0 : i32
    return %c0_i32, %c0_i32_0 : i32, i32
  }
  func.func @transform_9(%arg0: i32, %arg1: i32) -> (i32, i32) {
    %c0_i32 = arith.constant 0 : i32
    %c0_i32_0 = arith.constant 0 : i32
    %c0_i32_1 = arith.constant 0 : i32
    return %c0_i32, %c0_i32_0 : i32, i32
  }
  func.func @transform_10(%arg0: i32, %arg1: i32) -> (i32, i32) {
    %c0_i32 = arith.constant 0 : i32
    %c0_i32_0 = arith.constant 0 : i32
    %c0_i32_1 = arith.constant 0 : i32
    return %c0_i32, %c0_i32_0 : i32, i32
  }
  func.func @transform_11(%arg0: i32, %arg1: i32) -> (i32, i32) {
    %c0_i32 = arith.constant 0 : i32
    %c0_i32_0 = arith.constant 0 : i32
    %c0_i32_1 = arith.constant 0 : i32
    return %c0_i32, %c0_i32_0 : i32, i32
  }
  func.func @transform_12(%arg0: i32, %arg1: i32) -> (i32, i32) {
    %c0_i32 = arith.constant 0 : i32
    %c0_i32_0 = arith.constant 0 : i32
    %c0_i32_1 = arith.constant 0 : i32
    return %c0_i32, %c0_i32_0 : i32, i32
  }
  func.func @transform_13(%arg0: i32, %arg1: i32) -> (i32, i32) {
    %c0_i32 = arith.constant 0 : i32
    %c0_i32_0 = arith.constant 0 : i32
    %c0_i32_1 = arith.constant 0 : i32
    return %c0_i32, %c0_i32_0 : i32, i32
  }
  func.func @transform_14(%arg0: i32, %arg1: i32) -> (i32, i32) {
    %c0_i32 = arith.constant 0 : i32
    %c0_i32_0 = arith.constant 0 : i32
    %c0_i32_1 = arith.constant 0 : i32
    return %c0_i32, %c0_i32_0 : i32, i32
  }
  func.func @transform_15(%arg0: i32, %arg1: i32) -> (i32, i32) {
    %c0_i32 = arith.constant 0 : i32
    %c0_i32_0 = arith.constant 0 : i32
    %c0_i32_1 = arith.constant 0 : i32
    return %c0_i32, %c0_i32_0 : i32, i32
  }
  func.func @transform_16(%arg0: i32, %arg1: i32) -> (i32, i32) {
    %c0_i32 = arith.constant 0 : i32
    %c0_i32_0 = arith.constant 0 : i32
    %c0_i32_1 = arith.constant 0 : i32
    return %c0_i32, %c0_i32_0 : i32, i32
  }
  func.func @transform_17(%arg0: i32, %arg1: i32) -> (i32, i32, i32) {
    %c0_i32 = arith.constant 0 : i32
    %c0_i32_0 = arith.constant 0 : i32
    return %arg0, %arg1, %c0_i32 : i32, i32, i32
  }
  func.func @transform_18(%arg0: i32, %arg1: i32) -> (i32, i32, i32) {
    %c0_i32 = arith.constant 0 : i32
    %c0_i32_0 = arith.constant 0 : i32
    %c0_i32_1 = arith.constant 0 : i32
    return %arg0, %c0_i32, %c0_i32_0 : i32, i32, i32
  }
}

module attributes {stable_mosaic.version = 11 : i64} {
  func.func @mamba_block_kernel(%arg0: i32, %arg1: i32, %arg2: memref<1x8x32xbf16, #tpu.memory_space<vmem>>, %arg3: memref<8x32xf32, #tpu.memory_space<vmem>>, %arg4: memref<1x32xf32, #tpu.memory_space<vmem>>, %arg5: memref<1x32xf32, #tpu.memory_space<vmem>>, %arg6: memref<32x64xbf16, #tpu.memory_space<vmem>>, %arg7: memref<1x64xf32, #tpu.memory_space<vmem>>, %arg8: memref<64x16xbf16, #tpu.memory_space<vmem>>, %arg9: memref<64x16xbf16, #tpu.memory_space<vmem>>, %arg10: memref<64x2xbf16, #tpu.memory_space<vmem>>, %arg11: memref<1x2xf32, #tpu.memory_space<vmem>>, %arg12: memref<1x2xf32, #tpu.memory_space<vmem>>, %arg13: memref<1x64xf32, #tpu.memory_space<vmem>>, %arg14: memref<4x64xf32, #tpu.memory_space<vmem>>, %arg15: memref<1x64xf32, #tpu.memory_space<vmem>>, %arg16: memref<64x32xbf16, #tpu.memory_space<vmem>>, %arg17: memref<1x32xf32, #tpu.memory_space<vmem>>, %arg18: memref<1x8x32xbf16, #tpu.memory_space<vmem>>, %arg19: memref<1x16x64xf32, #tpu.memory_space<vmem>>, %arg20: memref<16x64xf32, #tpu.memory_space<vmem>>, %arg21: memref<11x64xf32, #tpu.memory_space<vmem>>, %arg22: memref<8x64xf32, #tpu.memory_space<vmem>>, %arg23: memref<8x64xf32, #tpu.memory_space<vmem>>) attributes {dimension_semantics = [#tpu.dimension_semantics<parallel>, #tpu.dimension_semantics<arbitrary>], iteration_bounds = array<i64: 2, 2>, scalar_prefetch = 0 : i64, scratch_operands = 4 : i64, tpu.core_type = #tpu.core_type<tc>, window_params = [{transform_indices = @transform_0, window_bounds = array<i64: 1, 8, 32>}, {transform_indices = @transform_1, window_bounds = array<i64: 8, 32>}, {pipeline_mode = #tpu.pipeline_mode<synchronous>, transform_indices = @transform_2, window_bounds = array<i64: 1, 32>}, {pipeline_mode = #tpu.pipeline_mode<synchronous>, transform_indices = @transform_3, window_bounds = array<i64: 1, 32>}, {pipeline_mode = #tpu.pipeline_mode<synchronous>, transform_indices = @transform_4, window_bounds = array<i64: 32, 64>}, {pipeline_mode = #tpu.pipeline_mode<synchronous>, transform_indices = @transform_5, window_bounds = array<i64: 1, 64>}, {pipeline_mode = #tpu.pipeline_mode<synchronous>, transform_indices = @transform_6, window_bounds = array<i64: 64, 16>}, {pipeline_mode = #tpu.pipeline_mode<synchronous>, transform_indices = @transform_7, window_bounds = array<i64: 64, 16>}, {pipeline_mode = #tpu.pipeline_mode<synchronous>, transform_indices = @transform_8, window_bounds = array<i64: 64, 2>}, {pipeline_mode = #tpu.pipeline_mode<synchronous>, transform_indices = @transform_9, window_bounds = array<i64: 1, 2>}, {pipeline_mode = #tpu.pipeline_mode<synchronous>, transform_indices = @transform_10, window_bounds = array<i64: 1, 2>}, {pipeline_mode = #tpu.pipeline_mode<synchronous>, transform_indices = @transform_11, window_bounds = array<i64: 1, 64>}, {pipeline_mode = #tpu.pipeline_mode<synchronous>, transform_indices = @transform_12, window_bounds = array<i64: 4, 64>}, {pipeline_mode = #tpu.pipeline_mode<synchronous>, transform_indices = @transform_13, window_bounds = array<i64: 1, 64>}, {pipeline_mode = #tpu.pipeline_mode<synchronous>, transform_indices = @transform_14, window_bounds = array<i64: 64, 32>}, {pipeline_mode = #tpu.pipeline_mode<synchronous>, transform_indices = @transform_15, window_bounds = array<i64: 1, 32>}, {transform_indices = @transform_16, window_bounds = array<i64: 1, 8, 32>}, {transform_indices = @transform_17, window_bounds = array<i64: 1, 16, 64>}]} {
    %c0_i32 = arith.constant 0 : i32
    %0 = arith.cmpi eq, %arg1, %c0_i32 : i32
    %1 = arith.extui %0 : i1 to i32
    %c0_i32_0 = arith.constant 0 : i32
    %2 = arith.cmpi ne, %1, %c0_i32_0 : i32
    scf.if %2 {
      %cst_102 = arith.constant 0.000000e+00 : f32
      %231 = vector.broadcast %cst_102 : f32 to vector<16x64xf32>
      %c0_103 = arith.constant 0 : index
      %c0_104 = arith.constant 0 : index
      %232 = vector.load %arg20[%c0_103, %c0_104] : memref<16x64xf32, #tpu.memory_space<vmem>>, vector<16x64xf32>
      tpu.vector_store %arg20[%c0_103, %c0_104], %231 {strides = array<i32>} : memref<16x64xf32, #tpu.memory_space<vmem>>, vector<16x64xf32>,
      %cst_105 = arith.constant 0.000000e+00 : f32
      %233 = vector.broadcast %cst_105 : f32 to vector<3x64xf32>
      %c0_106 = arith.constant 0 : index
      %c0_107 = arith.constant 0 : index
      %234 = vector.load %arg21[%c0_106, %c0_107] : memref<11x64xf32, #tpu.memory_space<vmem>>, vector<3x64xf32>
      tpu.vector_store %arg21[%c0_106, %c0_107], %233 {strides = array<i32>} : memref<11x64xf32, #tpu.memory_space<vmem>>, vector<3x64xf32>,
    } else {
    }
    %c0 = arith.constant 0 : index
    %c0_1 = arith.constant 0 : index
    %c0_2 = arith.constant 0 : index
    %3 = vector.load %arg2[%c0, %c0_1, %c0_2] : memref<1x8x32xbf16, #tpu.memory_space<vmem>>, vector<1x8x32xbf16>
    %4 = vector.shape_cast %3 : vector<1x8x32xbf16> to vector<8x32xbf16>
    %5 = arith.extf %4 : vector<8x32xbf16> to vector<8x32xf32>
    %c0_3 = arith.constant 0 : index
    %c0_4 = arith.constant 0 : index
    %6 = vector.load %arg3[%c0_3, %c0_4] : memref<8x32xf32, #tpu.memory_space<vmem>>, vector<8x32xf32>
    %7 = arith.addf %5, %6 : vector<8x32xf32>
    %c0_5 = arith.constant 0 : index
    %c0_6 = arith.constant 0 : index
    %8 = vector.load %arg4[%c0_5, %c0_6] : memref<1x32xf32, #tpu.memory_space<vmem>>, vector<1x32xf32>
    %c0_7 = arith.constant 0 : index
    %c0_8 = arith.constant 0 : index
    %9 = vector.load %arg5[%c0_7, %c0_8] : memref<1x32xf32, #tpu.memory_space<vmem>>, vector<1x32xf32>
    %cst = arith.constant dense<0.000000e+00> : vector<8xf32>
    %10 = vector.multi_reduction <add>, %7, %cst [1] : vector<8x32xf32> to vector<8xf32>
    %11 = vector.shape_cast %10 : vector<8xf32> to vector<8x1xf32>
    %cst_9 = arith.constant 3.200000e+01 : f32
    %12 = vector.broadcast %cst_9 : f32 to vector<8x1xf32>
    %13 = arith.divf %11, %12 : vector<8x1xf32>
    %14 = vector.broadcast %13 : vector<8x1xf32> to vector<8x32xf32>
    %15 = arith.subf %7, %14 : vector<8x32xf32>
    %16 = arith.mulf %15, %15 : vector<8x32xf32>
    %cst_10 = arith.constant dense<0.000000e+00> : vector<8xf32>
    %17 = vector.multi_reduction <add>, %16, %cst_10 [1] : vector<8x32xf32> to vector<8xf32>
    %18 = vector.shape_cast %17 : vector<8xf32> to vector<8x1xf32>
    %cst_11 = arith.constant 3.200000e+01 : f32
    %19 = vector.broadcast %cst_11 : f32 to vector<8x1xf32>
    %20 = arith.divf %18, %19 : vector<8x1xf32>
    %21 = vector.broadcast %13 : vector<8x1xf32> to vector<8x32xf32>
    %22 = arith.subf %7, %21 : vector<8x32xf32>
    %cst_12 = arith.constant 9.99999974E-6 : f32
    %23 = vector.broadcast %cst_12 : f32 to vector<8x1xf32>
    %24 = arith.addf %20, %23 : vector<8x1xf32>
    %25 = math.rsqrt %24 : vector<8x1xf32>
    %26 = vector.broadcast %25 : vector<8x1xf32> to vector<8x32xf32>
    %27 = arith.mulf %22, %26 : vector<8x32xf32>
    %28 = vector.broadcast %8 : vector<1x32xf32> to vector<8x32xf32>
    %29 = arith.mulf %27, %28 : vector<8x32xf32>
    %30 = vector.broadcast %9 : vector<1x32xf32> to vector<8x32xf32>
    %31 = arith.addf %29, %30 : vector<8x32xf32>
    %32 = arith.truncf %31 : vector<8x32xf32> to vector<8x32xbf16>
    %c0_13 = arith.constant 0 : index
    %c0_14 = arith.constant 0 : index
    %33 = vector.load %arg6[%c0_13, %c0_14] : memref<32x64xbf16, #tpu.memory_space<vmem>>, vector<32x64xbf16>
    %cst_15 = arith.constant dense<0.000000e+00> : vector<8x64xf32>
    %34 = tpu.matmul %32, %33, %cst_15 {dimension_numbers = #tpu.dot_dimension_numbers<[1], [0], [0], [1], [0, 0, 1, 1], [], []>} : vector<8x32xbf16>, vector<32x64xbf16>, vector<8x64xf32> -> vector<8x64xf32>
    %c0_16 = arith.constant 0 : index
    %c0_17 = arith.constant 0 : index
    %35 = vector.load %arg7[%c0_16, %c0_17] : memref<1x64xf32, #tpu.memory_space<vmem>>, vector<1x64xf32>
    %36 = vector.broadcast %35 : vector<1x64xf32> to vector<8x64xf32>
    %37 = arith.addf %34, %36 : vector<8x64xf32>
    %38 = arith.truncf %37 : vector<8x64xf32> to vector<8x64xbf16>
    %c0_18 = arith.constant 0 : index
    %c0_19 = arith.constant 0 : index
    %39 = vector.load %arg8[%c0_18, %c0_19] : memref<64x16xbf16, #tpu.memory_space<vmem>>, vector<64x16xbf16>
    %cst_20 = arith.constant dense<0.000000e+00> : vector<8x16xf32>
    %40 = tpu.matmul %38, %39, %cst_20 {dimension_numbers = #tpu.dot_dimension_numbers<[1], [0], [0], [1], [0, 0, 1, 1], [], []>} : vector<8x64xbf16>, vector<64x16xbf16>, vector<8x16xf32> -> vector<8x16xf32>
    %c0_21 = arith.constant 0 : index
    %c0_22 = arith.constant 0 : index
    %41 = vector.load %arg9[%c0_21, %c0_22] : memref<64x16xbf16, #tpu.memory_space<vmem>>, vector<64x16xbf16>
    %cst_23 = arith.constant dense<0.000000e+00> : vector<8x16xf32>
    %42 = tpu.matmul %38, %41, %cst_23 {dimension_numbers = #tpu.dot_dimension_numbers<[1], [0], [0], [1], [0, 0, 1, 1], [], []>} : vector<8x64xbf16>, vector<64x16xbf16>, vector<8x16xf32> -> vector<8x16xf32>
    %c0_24 = arith.constant 0 : index
    %c0_25 = arith.constant 0 : index
    %43 = vector.load %arg10[%c0_24, %c0_25] : memref<64x2xbf16, #tpu.memory_space<vmem>>, vector<64x2xbf16>
    %cst_26 = arith.constant dense<0.000000e+00> : vector<8x2xf32>
    %44 = tpu.matmul %38, %43, %cst_26 {dimension_numbers = #tpu.dot_dimension_numbers<[1], [0], [0], [1], [0, 0, 1, 1], [], []>} : vector<8x64xbf16>, vector<64x2xbf16>, vector<8x2xf32> -> vector<8x2xf32>
    %c0_27 = arith.constant 0 : index
    %c0_28 = arith.constant 0 : index
    %45 = vector.load %arg11[%c0_27, %c0_28] : memref<1x2xf32, #tpu.memory_space<vmem>>, vector<1x2xf32>
    %46 = vector.broadcast %45 : vector<1x2xf32> to vector<8x2xf32>
    %47 = arith.addf %44, %46 : vector<8x2xf32>
    %cst_29 = arith.constant 0.000000e+00 : f32
    %48 = vector.broadcast %cst_29 : f32 to vector<8x2xf32>
    %49 = arith.maximumf %47, %48 : vector<8x2xf32>
    %50 = math.absf %47 : vector<8x2xf32>
    %cst_30 = arith.constant 0.000000e+00 : f32
    %51 = vector.broadcast %cst_30 : f32 to vector<8x2xf32>
    %52 = arith.subf %51, %50 : vector<8x2xf32>
    %53 = math.exp %52 : vector<8x2xf32>
    %cst_31 = arith.constant 1.000000e+00 : f32
    %54 = vector.broadcast %cst_31 : f32 to vector<8x2xf32>
    %55 = arith.addf %54, %53 : vector<8x2xf32>
    %56 = math.log %55 : vector<8x2xf32>
    %57 = arith.addf %49, %56 : vector<8x2xf32>
    %c0_32 = arith.constant 0 : index
    %c0_33 = arith.constant 0 : index
    %58 = vector.load %arg12[%c0_32, %c0_33] : memref<1x2xf32, #tpu.memory_space<vmem>>, vector<1x2xf32>
    %59 = math.exp %58 : vector<1x2xf32>
    %cst_34 = arith.constant 0.000000e+00 : f32
    %60 = vector.broadcast %cst_34 : f32 to vector<1x2xf32>
    %61 = arith.subf %60, %59 : vector<1x2xf32>
    %62 = vector.broadcast %61 : vector<1x2xf32> to vector<8x2xf32>
    %63 = arith.mulf %57, %62 : vector<8x2xf32>
    %64 = tpu.iota {dimensions = array<i32: 0>} : vector<8x8xi32>
    %65 = tpu.iota {dimensions = array<i32: 1>} : vector<8x8xi32>
    %66 = arith.cmpi sge, %64, %65 : vector<8x8xi32>
    %67 = arith.extui %66 : vector<8x8xi1> to vector<8x8xi32>
    %68 = arith.sitofp %67 : vector<8x8xi32> to vector<8x8xf32>
    %69 = arith.cmpi sle, %64, %65 : vector<8x8xi32>
    %70 = arith.extui %69 : vector<8x8xi1> to vector<8x8xi32>
    %71 = arith.sitofp %70 : vector<8x8xi32> to vector<8x8xf32>
    %cst_35 = arith.constant dense<0.000000e+00> : vector<8x2xf32>
    %72 = tpu.matmul %68, %63, %cst_35 {dimension_numbers = #tpu.dot_dimension_numbers<[1], [0], [0], [1], [0, 0, 1, 1], [], []>} : vector<8x8xf32>, vector<8x2xf32>, vector<8x2xf32> -> vector<8x2xf32>
    %cst_36 = arith.constant dense<0.000000e+00> : vector<2x8xf32>
    %73 = tpu.matmul %63, %71, %cst_36 {dimension_numbers = #tpu.dot_dimension_numbers<[0], [0], [1], [1], [0, 1, 1, 1], [], []>} : vector<8x2xf32>, vector<8x8xf32>, vector<2x8xf32> -> vector<2x8xf32>
    %74 = vector.extract_strided_slice %72 {offsets = [7, 0], sizes = [1, 2], strides = [1, 1]} : vector<8x2xf32> to vector<1x2xf32>
    %75 = math.exp %72 : vector<8x2xf32>
    %76 = vector.broadcast %74 : vector<1x2xf32> to vector<8x2xf32>
    %77 = arith.subf %76, %72 : vector<8x2xf32>
    %78 = math.exp %77 : vector<8x2xf32>
    %79 = vector.extract_strided_slice %75 {offsets = [7, 0], sizes = [1, 2], strides = [1, 1]} : vector<8x2xf32> to vector<1x2xf32>
    %80 = arith.truncf %42 : vector<8x16xf32> to vector<8x16xbf16>
    %81 = arith.truncf %40 : vector<8x16xf32> to vector<8x16xbf16>
    %c0_37 = arith.constant 0 : index
    %c0_38 = arith.constant 0 : index
    %82 = vector.load %arg13[%c0_37, %c0_38] : memref<1x64xf32, #tpu.memory_space<vmem>>, vector<1x64xf32>
    %cst_39 = arith.constant dense<0.000000e+00> : vector<8x8xf32>
    %83 = tpu.matmul %80, %81, %cst_39 {dimension_numbers = #tpu.dot_dimension_numbers<[1], [1], [0], [0], [0, 0, 1, 0], [], []>} : vector<8x16xbf16>, vector<8x16xbf16>, vector<8x8xf32> -> vector<8x8xf32>
    %c0_40 = arith.constant 0 : index
    %c0_41 = arith.constant 0 : index
    %84 = vector.load %arg20[%c0_40, %c0_41] : memref<16x64xf32, #tpu.memory_space<vmem>>, vector<16x64xf32>
    %85 = arith.truncf %84 : vector<16x64xf32> to vector<16x64xbf16>
    %cst_42 = arith.constant dense<0.000000e+00> : vector<8x64xf32>
    %86 = tpu.matmul %80, %85, %cst_42 {dimension_numbers = #tpu.dot_dimension_numbers<[1], [0], [0], [1], [0, 0, 1, 1], [], []>} : vector<8x16xbf16>, vector<16x64xbf16>, vector<8x64xf32> -> vector<8x64xf32>
    %87 = vector.extract_strided_slice %72 {offsets = [0, 0], sizes = [8, 1], strides = [1, 1]} : vector<8x2xf32> to vector<8x1xf32>
    %88 = vector.extract_strided_slice %73 {offsets = [0, 0], sizes = [1, 8], strides = [1, 1]} : vector<2x8xf32> to vector<1x8xf32>
    %89 = vector.broadcast %87 : vector<8x1xf32> to vector<8x8xf32>
    %90 = vector.broadcast %88 : vector<1x8xf32> to vector<8x8xf32>
    %91 = arith.subf %89, %90 : vector<8x8xf32>
    %cst_43 = arith.constant -1.000000e+30 : f32
    %92 = vector.broadcast %cst_43 : f32 to vector<8x8xf32>
    %93 = arith.select %66, %91, %92 : vector<8x8xi1>, vector<8x8xf32>
    %94 = math.exp %93 : vector<8x8xf32>
    %95 = arith.mulf %83, %94 : vector<8x8xf32>
    %96 = arith.truncf %95 : vector<8x8xf32> to vector<8x8xbf16>
    %97 = vector.extract_strided_slice %57 {offsets = [0, 0], sizes = [8, 1], strides = [1, 1]} : vector<8x2xf32> to vector<8x1xf32>
    %98 = vector.extract_strided_slice %37 {offsets = [0, 0], sizes = [8, 32], strides = [1, 1]} : vector<8x64xf32> to vector<8x32xf32>
    %99 = vector.broadcast %97 : vector<8x1xf32> to vector<8x32xf32>
    %100 = arith.mulf %99, %98 : vector<8x32xf32>
    %101 = vector.extract_strided_slice %78 {offsets = [0, 0], sizes = [8, 1], strides = [1, 1]} : vector<8x2xf32> to vector<8x1xf32>
    %102 = vector.broadcast %101 : vector<8x1xf32> to vector<8x32xf32>
    %103 = arith.mulf %102, %100 : vector<8x32xf32>
    %c0_44 = arith.constant 0 : index
    %c0_45 = arith.constant 0 : index
    %104 = vector.load %arg23[%c0_44, %c0_45] : memref<8x64xf32, #tpu.memory_space<vmem>>, vector<8x32xf32>
    tpu.vector_store %arg23[%c0_44, %c0_45], %103 {strides = array<i32>} : memref<8x64xf32, #tpu.memory_space<vmem>>, vector<8x32xf32>,
    %105 = arith.truncf %100 : vector<8x32xf32> to vector<8x32xbf16>
    %cst_46 = arith.constant dense<0.000000e+00> : vector<8x32xf32>
    %106 = tpu.matmul %96, %105, %cst_46 {dimension_numbers = #tpu.dot_dimension_numbers<[1], [0], [0], [1], [0, 0, 1, 1], [], []>} : vector<8x8xbf16>, vector<8x32xbf16>, vector<8x32xf32> -> vector<8x32xf32>
    %107 = vector.extract_strided_slice %75 {offsets = [0, 0], sizes = [8, 1], strides = [1, 1]} : vector<8x2xf32> to vector<8x1xf32>
    %108 = vector.extract_strided_slice %86 {offsets = [0, 0], sizes = [8, 32], strides = [1, 1]} : vector<8x64xf32> to vector<8x32xf32>
    %109 = vector.broadcast %107 : vector<8x1xf32> to vector<8x32xf32>
    %110 = arith.mulf %109, %108 : vector<8x32xf32>
    %111 = arith.addf %106, %110 : vector<8x32xf32>
    %112 = vector.extract_strided_slice %82 {offsets = [0, 0], sizes = [1, 32], strides = [1, 1]} : vector<1x64xf32> to vector<1x32xf32>
    %113 = vector.extract_strided_slice %37 {offsets = [0, 0], sizes = [8, 32], strides = [1, 1]} : vector<8x64xf32> to vector<8x32xf32>
    %114 = vector.broadcast %112 : vector<1x32xf32> to vector<8x32xf32>
    %115 = arith.mulf %114, %113 : vector<8x32xf32>
    %116 = arith.addf %111, %115 : vector<8x32xf32>
    %c0_47 = arith.constant 0 : index
    %c0_48 = arith.constant 0 : index
    %117 = vector.load %arg22[%c0_47, %c0_48] : memref<8x64xf32, #tpu.memory_space<vmem>>, vector<8x32xf32>
    tpu.vector_store %arg22[%c0_47, %c0_48], %116 {strides = array<i32>} : memref<8x64xf32, #tpu.memory_space<vmem>>, vector<8x32xf32>,
    %118 = vector.extract_strided_slice %72 {offsets = [0, 1], sizes = [8, 1], strides = [1, 1]} : vector<8x2xf32> to vector<8x1xf32>
    %119 = vector.extract_strided_slice %73 {offsets = [1, 0], sizes = [1, 8], strides = [1, 1]} : vector<2x8xf32> to vector<1x8xf32>
    %120 = vector.broadcast %118 : vector<8x1xf32> to vector<8x8xf32>
    %121 = vector.broadcast %119 : vector<1x8xf32> to vector<8x8xf32>
    %122 = arith.subf %120, %121 : vector<8x8xf32>
    %cst_49 = arith.constant -1.000000e+30 : f32
    %123 = vector.broadcast %cst_49 : f32 to vector<8x8xf32>
    %124 = arith.select %66, %122, %123 : vector<8x8xi1>, vector<8x8xf32>
    %125 = math.exp %124 : vector<8x8xf32>
    %126 = arith.mulf %83, %125 : vector<8x8xf32>
    %127 = arith.truncf %126 : vector<8x8xf32> to vector<8x8xbf16>
    %128 = vector.extract_strided_slice %57 {offsets = [0, 1], sizes = [8, 1], strides = [1, 1]} : vector<8x2xf32> to vector<8x1xf32>
    %129 = vector.extract_strided_slice %37 {offsets = [0, 32], sizes = [8, 32], strides = [1, 1]} : vector<8x64xf32> to vector<8x32xf32>
    %130 = vector.broadcast %128 : vector<8x1xf32> to vector<8x32xf32>
    %131 = arith.mulf %130, %129 : vector<8x32xf32>
    %132 = vector.extract_strided_slice %78 {offsets = [0, 1], sizes = [8, 1], strides = [1, 1]} : vector<8x2xf32> to vector<8x1xf32>
    %133 = vector.broadcast %132 : vector<8x1xf32> to vector<8x32xf32>
    %134 = arith.mulf %133, %131 : vector<8x32xf32>
    %c0_50 = arith.constant 0 : index
    %c32 = arith.constant 32 : index
    %135 = vector.load %arg23[%c0_50, %c32] : memref<8x64xf32, #tpu.memory_space<vmem>>, vector<8x32xf32>
    tpu.vector_store %arg23[%c0_50, %c32], %134 {strides = array<i32>} : memref<8x64xf32, #tpu.memory_space<vmem>>, vector<8x32xf32>,
    %136 = arith.truncf %131 : vector<8x32xf32> to vector<8x32xbf16>
    %cst_51 = arith.constant dense<0.000000e+00> : vector<8x32xf32>
    %137 = tpu.matmul %127, %136, %cst_51 {dimension_numbers = #tpu.dot_dimension_numbers<[1], [0], [0], [1], [0, 0, 1, 1], [], []>} : vector<8x8xbf16>, vector<8x32xbf16>, vector<8x32xf32> -> vector<8x32xf32>
    %138 = vector.extract_strided_slice %75 {offsets = [0, 1], sizes = [8, 1], strides = [1, 1]} : vector<8x2xf32> to vector<8x1xf32>
    %139 = vector.extract_strided_slice %86 {offsets = [0, 32], sizes = [8, 32], strides = [1, 1]} : vector<8x64xf32> to vector<8x32xf32>
    %140 = vector.broadcast %138 : vector<8x1xf32> to vector<8x32xf32>
    %141 = arith.mulf %140, %139 : vector<8x32xf32>
    %142 = arith.addf %137, %141 : vector<8x32xf32>
    %143 = vector.extract_strided_slice %82 {offsets = [0, 32], sizes = [1, 32], strides = [1, 1]} : vector<1x64xf32> to vector<1x32xf32>
    %144 = vector.extract_strided_slice %37 {offsets = [0, 32], sizes = [8, 32], strides = [1, 1]} : vector<8x64xf32> to vector<8x32xf32>
    %145 = vector.broadcast %143 : vector<1x32xf32> to vector<8x32xf32>
    %146 = arith.mulf %145, %144 : vector<8x32xf32>
    %147 = arith.addf %142, %146 : vector<8x32xf32>
    %c0_52 = arith.constant 0 : index
    %c32_53 = arith.constant 32 : index
    %148 = vector.load %arg22[%c0_52, %c32_53] : memref<8x64xf32, #tpu.memory_space<vmem>>, vector<8x32xf32>
    tpu.vector_store %arg22[%c0_52, %c32_53], %147 {strides = array<i32>} : memref<8x64xf32, #tpu.memory_space<vmem>>, vector<8x32xf32>,
    %c0_54 = arith.constant 0 : index
    %c0_55 = arith.constant 0 : index
    %149 = vector.load %arg23[%c0_54, %c0_55] : memref<8x64xf32, #tpu.memory_space<vmem>>, vector<8x64xf32>
    %150 = arith.truncf %149 : vector<8x64xf32> to vector<8x64xbf16>
    %cst_56 = arith.constant dense<0.000000e+00> : vector<16x64xf32>
    %151 = tpu.matmul %81, %150, %cst_56 {dimension_numbers = #tpu.dot_dimension_numbers<[0], [0], [1], [1], [0, 1, 1, 1], [], []>} : vector<8x16xbf16>, vector<8x64xbf16>, vector<16x64xf32> -> vector<16x64xf32>
    %152 = vector.extract_strided_slice %79 {offsets = [0, 0], sizes = [1, 1], strides = [1, 1]} : vector<1x2xf32> to vector<1x1xf32>
    %c0_57 = arith.constant 0 : index
    %c0_58 = arith.constant 0 : index
    %153 = vector.load %arg20[%c0_57, %c0_58] : memref<16x64xf32, #tpu.memory_space<vmem>>, vector<16x32xf32>
    %154 = vector.broadcast %152 : vector<1x1xf32> to vector<16x32xf32>
    %155 = arith.mulf %154, %153 : vector<16x32xf32>
    %156 = vector.extract_strided_slice %151 {offsets = [0, 0], sizes = [16, 32], strides = [1, 1]} : vector<16x64xf32> to vector<16x32xf32>
    %157 = arith.addf %155, %156 : vector<16x32xf32>
    %c0_59 = arith.constant 0 : index
    %c0_60 = arith.constant 0 : index
    %158 = vector.load %arg20[%c0_59, %c0_60] : memref<16x64xf32, #tpu.memory_space<vmem>>, vector<16x32xf32>
    tpu.vector_store %arg20[%c0_59, %c0_60], %157 {strides = array<i32>} : memref<16x64xf32, #tpu.memory_space<vmem>>, vector<16x32xf32>,
    %159 = vector.extract_strided_slice %79 {offsets = [0, 1], sizes = [1, 1], strides = [1, 1]} : vector<1x2xf32> to vector<1x1xf32>
    %c0_61 = arith.constant 0 : index
    %c32_62 = arith.constant 32 : index
    %160 = vector.load %arg20[%c0_61, %c32_62] : memref<16x64xf32, #tpu.memory_space<vmem>>, vector<16x32xf32>
    %161 = vector.broadcast %159 : vector<1x1xf32> to vector<16x32xf32>
    %162 = arith.mulf %161, %160 : vector<16x32xf32>
    %163 = vector.extract_strided_slice %151 {offsets = [0, 32], sizes = [16, 32], strides = [1, 1]} : vector<16x64xf32> to vector<16x32xf32>
    %164 = arith.addf %162, %163 : vector<16x32xf32>
    %c0_63 = arith.constant 0 : index
    %c32_64 = arith.constant 32 : index
    %165 = vector.load %arg20[%c0_63, %c32_64] : memref<16x64xf32, #tpu.memory_space<vmem>>, vector<16x32xf32>
    tpu.vector_store %arg20[%c0_63, %c32_64], %164 {strides = array<i32>} : memref<16x64xf32, #tpu.memory_space<vmem>>, vector<16x32xf32>,
    %c0_65 = arith.constant 0 : index
    %c0_66 = arith.constant 0 : index
    %166 = vector.load %arg22[%c0_65, %c0_66] : memref<8x64xf32, #tpu.memory_space<vmem>>, vector<8x64xf32>
    %c3 = arith.constant 3 : index
    %c0_67 = arith.constant 0 : index
    %167 = vector.load %arg21[%c3, %c0_67] : memref<11x64xf32, #tpu.memory_space<vmem>>, vector<8x64xf32>
    tpu.vector_store %arg21[%c3, %c0_67], %37 {strides = array<i32>} : memref<11x64xf32, #tpu.memory_space<vmem>>, vector<8x64xf32>,
    %c0_68 = arith.constant 0 : index
    %c0_69 = arith.constant 0 : index
    %168 = vector.load %arg15[%c0_68, %c0_69] : memref<1x64xf32, #tpu.memory_space<vmem>>, vector<1x64xf32>
    %169 = vector.shape_cast %168 : vector<1x64xf32> to vector<1x64xf32>
    %170 = vector.broadcast %169 : vector<1x64xf32> to vector<8x64xf32>
    %c0_70 = arith.constant 0 : index
    %c0_71 = arith.constant 0 : index
    %171 = vector.load %arg21[%c0_70, %c0_71] : memref<11x64xf32, #tpu.memory_space<vmem>>, vector<8x64xf32>
    %c0_72 = arith.constant 0 : index
    %c0_73 = arith.constant 0 : index
    %172 = vector.load %arg14[%c0_72, %c0_73] : memref<4x64xf32, #tpu.memory_space<vmem>>, vector<1x64xf32>
    %173 = vector.broadcast %172 : vector<1x64xf32> to vector<8x64xf32>
    %174 = arith.mulf %171, %173 : vector<8x64xf32>
    %175 = arith.addf %170, %174 : vector<8x64xf32>
    %c1 = arith.constant 1 : index
    %c0_74 = arith.constant 0 : index
    %176 = vector.load %arg21[%c1, %c0_74] : memref<11x64xf32, #tpu.memory_space<vmem>>, vector<8x64xf32>
    %c1_75 = arith.constant 1 : index
    %c0_76 = arith.constant 0 : index
    %177 = vector.load %arg14[%c1_75, %c0_76] : memref<4x64xf32, #tpu.memory_space<vmem>>, vector<1x64xf32>
    %178 = vector.broadcast %177 : vector<1x64xf32> to vector<8x64xf32>
    %179 = arith.mulf %176, %178 : vector<8x64xf32>
    %180 = arith.addf %175, %179 : vector<8x64xf32>
    %c2 = arith.constant 2 : index
    %c0_77 = arith.constant 0 : index
    %181 = vector.load %arg21[%c2, %c0_77] : memref<11x64xf32, #tpu.memory_space<vmem>>, vector<8x64xf32>
    %c2_78 = arith.constant 2 : index
    %c0_79 = arith.constant 0 : index
    %182 = vector.load %arg14[%c2_78, %c0_79] : memref<4x64xf32, #tpu.memory_space<vmem>>, vector<1x64xf32>
    %183 = vector.broadcast %182 : vector<1x64xf32> to vector<8x64xf32>
    %184 = arith.mulf %181, %183 : vector<8x64xf32>
    %185 = arith.addf %180, %184 : vector<8x64xf32>
    %c3_80 = arith.constant 3 : index
    %c0_81 = arith.constant 0 : index
    %186 = vector.load %arg21[%c3_80, %c0_81] : memref<11x64xf32, #tpu.memory_space<vmem>>, vector<8x64xf32>
    %c3_82 = arith.constant 3 : index
    %c0_83 = arith.constant 0 : index
    %187 = vector.load %arg14[%c3_82, %c0_83] : memref<4x64xf32, #tpu.memory_space<vmem>>, vector<1x64xf32>
    %188 = vector.broadcast %187 : vector<1x64xf32> to vector<8x64xf32>
    %189 = arith.mulf %186, %188 : vector<8x64xf32>
    %190 = arith.addf %185, %189 : vector<8x64xf32>
    %191 = math.absf %190 : vector<8x64xf32>
    %cst_84 = arith.constant 0.000000e+00 : f32
    %192 = vector.broadcast %cst_84 : f32 to vector<8x64xf32>
    %193 = arith.subf %192, %191 : vector<8x64xf32>
    %194 = math.exp %193 : vector<8x64xf32>
    %cst_85 = arith.constant 1.000000e+00 : f32
    %195 = vector.broadcast %cst_85 : f32 to vector<8x64xf32>
    %196 = arith.addf %195, %194 : vector<8x64xf32>
    %197 = tpu.reciprocal %196 {approx = true} : vector<8x64xf32> -> vector<8x64xf32>
    %cst_86 = arith.constant 0.000000e+00 : f32
    %198 = vector.broadcast %cst_86 : f32 to vector<8x64xf32>
    %199 = arith.cmpf oge, %190, %198 : vector<8x64xf32>
    %200 = arith.mulf %194, %197 : vector<8x64xf32>
    %201 = arith.select %199, %197, %200 : vector<8x64xi1>, vector<8x64xf32>
    %202 = arith.mulf %190, %201 : vector<8x64xf32>
    %c8 = arith.constant 8 : index
    %c0_87 = arith.constant 0 : index
    %203 = vector.load %arg21[%c8, %c0_87] : memref<11x64xf32, #tpu.memory_space<vmem>>, vector<3x64xf32>
    %c0_88 = arith.constant 0 : index
    %c0_89 = arith.constant 0 : index
    %204 = vector.load %arg21[%c0_88, %c0_89] : memref<11x64xf32, #tpu.memory_space<vmem>>, vector<3x64xf32>
    tpu.vector_store %arg21[%c0_88, %c0_89], %203 {strides = array<i32>} : memref<11x64xf32, #tpu.memory_space<vmem>>, vector<3x64xf32>,
    %205 = math.absf %202 : vector<8x64xf32>
    %cst_90 = arith.constant 0.000000e+00 : f32
    %206 = vector.broadcast %cst_90 : f32 to vector<8x64xf32>
    %207 = arith.subf %206, %205 : vector<8x64xf32>
    %208 = math.exp %207 : vector<8x64xf32>
    %cst_91 = arith.constant 1.000000e+00 : f32
    %209 = vector.broadcast %cst_91 : f32 to vector<8x64xf32>
    %210 = arith.addf %209, %208 : vector<8x64xf32>
    %211 = tpu.reciprocal %210 {approx = true} : vector<8x64xf32> -> vector<8x64xf32>
    %cst_92 = arith.constant 0.000000e+00 : f32
    %212 = vector.broadcast %cst_92 : f32 to vector<8x64xf32>
    %213 = arith.cmpf oge, %202, %212 : vector<8x64xf32>
    %214 = arith.mulf %208, %211 : vector<8x64xf32>
    %215 = arith.select %213, %211, %214 : vector<8x64xi1>, vector<8x64xf32>
    %216 = arith.mulf %166, %215 : vector<8x64xf32>
    %217 = arith.truncf %216 : vector<8x64xf32> to vector<8x64xbf16>
    %c0_93 = arith.constant 0 : index
    %c0_94 = arith.constant 0 : index
    %218 = vector.load %arg16[%c0_93, %c0_94] : memref<64x32xbf16, #tpu.memory_space<vmem>>, vector<64x32xbf16>
    %cst_95 = arith.constant dense<0.000000e+00> : vector<8x32xf32>
    %219 = tpu.matmul %217, %218, %cst_95 {dimension_numbers = #tpu.dot_dimension_numbers<[1], [0], [0], [1], [0, 0, 1, 1], [], []>} : vector<8x64xbf16>, vector<64x32xbf16>, vector<8x32xf32> -> vector<8x32xf32>
    %c0_96 = arith.constant 0 : index
    %c0_97 = arith.constant 0 : index
    %220 = vector.load %arg17[%c0_96, %c0_97] : memref<1x32xf32, #tpu.memory_space<vmem>>, vector<1x32xf32>
    %221 = vector.broadcast %220 : vector<1x32xf32> to vector<8x32xf32>
    %222 = arith.addf %219, %221 : vector<8x32xf32>
    %223 = arith.addf %222, %7 : vector<8x32xf32>
    %224 = arith.truncf %223 : vector<8x32xf32> to vector<8x32xbf16>
    %c0_98 = arith.constant 0 : index
    %c0_99 = arith.constant 0 : index
    %c0_100 = arith.constant 0 : index
    %225 = vector.load %arg18[%c0_98, %c0_99, %c0_100] : memref<1x8x32xbf16, #tpu.memory_space<vmem>>, vector<1x8x32xbf16>
    %226 = vector.shape_cast %225 : vector<1x8x32xbf16> to vector<8x32xbf16>
    %227 = vector.shape_cast %224 : vector<8x32xbf16> to vector<1x8x32xbf16>
    tpu.vector_store %arg18[%c0_98, %c0_99, %c0_100], %227 {strides = array<i32>} : memref<1x8x32xbf16, #tpu.memory_space<vmem>>, vector<1x8x32xbf16>,
    %c1_i32 = arith.constant 1 : i32
    %228 = arith.cmpi eq, %arg1, %c1_i32 : i32
    %229 = arith.extui %228 : i1 to i32
    %c0_i32_101 = arith.constant 0 : i32
    %230 = arith.cmpi ne, %229, %c0_i32_101 : i32
    scf.if %230 {
      %c0_102 = arith.constant 0 : index
      %c0_103 = arith.constant 0 : index
      %231 = vector.load %arg20[%c0_102, %c0_103] : memref<16x64xf32, #tpu.memory_space<vmem>>, vector<16x64xf32>
      %c0_104 = arith.constant 0 : index
      %c0_105 = arith.constant 0 : index
      %c0_106 = arith.constant 0 : index
      %232 = vector.load %arg19[%c0_104, %c0_105, %c0_106] : memref<1x16x64xf32, #tpu.memory_space<vmem>>, vector<1x16x64xf32>
      %233 = vector.shape_cast %232 : vector<1x16x64xf32> to vector<16x64xf32>
      %234 = vector.shape_cast %231 : vector<16x64xf32> to vector<1x16x64xf32>
      tpu.vector_store %arg19[%c0_104, %c0_105, %c0_106], %234 {strides = array<i32>} : memref<1x16x64xf32, #tpu.memory_space<vmem>>, vector<1x16x64xf32>,
    } else {
    }
    return
  }
  func.func @transform_0(%arg0: i32, %arg1: i32) -> (i32, i32, i32) {
    %c0_i32 = arith.constant 0 : i32
    %c0_i32_0 = arith.constant 0 : i32
    return %arg0, %arg1, %c0_i32 : i32, i32, i32
  }
  func.func @transform_1(%arg0: i32, %arg1: i32) -> (i32, i32) {
    %c0_i32 = arith.constant 0 : i32
    %c0_i32_0 = arith.constant 0 : i32
    return %arg1, %c0_i32 : i32, i32
  }
  func.func @transform_2(%arg0: i32, %arg1: i32) -> (i32, i32) {
    %c0_i32 = arith.constant 0 : i32
    %c0_i32_0 = arith.constant 0 : i32
    %c0_i32_1 = arith.constant 0 : i32
    return %c0_i32, %c0_i32_0 : i32, i32
  }
  func.func @transform_3(%arg0: i32, %arg1: i32) -> (i32, i32) {
    %c0_i32 = arith.constant 0 : i32
    %c0_i32_0 = arith.constant 0 : i32
    %c0_i32_1 = arith.constant 0 : i32
    return %c0_i32, %c0_i32_0 : i32, i32
  }
  func.func @transform_4(%arg0: i32, %arg1: i32) -> (i32, i32) {
    %c0_i32 = arith.constant 0 : i32
    %c0_i32_0 = arith.constant 0 : i32
    %c0_i32_1 = arith.constant 0 : i32
    return %c0_i32, %c0_i32_0 : i32, i32
  }
  func.func @transform_5(%arg0: i32, %arg1: i32) -> (i32, i32) {
    %c0_i32 = arith.constant 0 : i32
    %c0_i32_0 = arith.constant 0 : i32
    %c0_i32_1 = arith.constant 0 : i32
    return %c0_i32, %c0_i32_0 : i32, i32
  }
  func.func @transform_6(%arg0: i32, %arg1: i32) -> (i32, i32) {
    %c0_i32 = arith.constant 0 : i32
    %c0_i32_0 = arith.constant 0 : i32
    %c0_i32_1 = arith.constant 0 : i32
    return %c0_i32, %c0_i32_0 : i32, i32
  }
  func.func @transform_7(%arg0: i32, %arg1: i32) -> (i32, i32) {
    %c0_i32 = arith.constant 0 : i32
    %c0_i32_0 = arith.constant 0 : i32
    %c0_i32_1 = arith.constant 0 : i32
    return %c0_i32, %c0_i32_0 : i32, i32
  }
  func.func @transform_8(%arg0: i32, %arg1: i32) -> (i32, i32) {
    %c0_i32 = arith.constant 0 : i32
    %c0_i32_0 = arith.constant 0 : i32
    %c0_i32_1 = arith.constant 0 : i32
    return %c0_i32, %c0_i32_0 : i32, i32
  }
  func.func @transform_9(%arg0: i32, %arg1: i32) -> (i32, i32) {
    %c0_i32 = arith.constant 0 : i32
    %c0_i32_0 = arith.constant 0 : i32
    %c0_i32_1 = arith.constant 0 : i32
    return %c0_i32, %c0_i32_0 : i32, i32
  }
  func.func @transform_10(%arg0: i32, %arg1: i32) -> (i32, i32) {
    %c0_i32 = arith.constant 0 : i32
    %c0_i32_0 = arith.constant 0 : i32
    %c0_i32_1 = arith.constant 0 : i32
    return %c0_i32, %c0_i32_0 : i32, i32
  }
  func.func @transform_11(%arg0: i32, %arg1: i32) -> (i32, i32) {
    %c0_i32 = arith.constant 0 : i32
    %c0_i32_0 = arith.constant 0 : i32
    %c0_i32_1 = arith.constant 0 : i32
    return %c0_i32, %c0_i32_0 : i32, i32
  }
  func.func @transform_12(%arg0: i32, %arg1: i32) -> (i32, i32) {
    %c0_i32 = arith.constant 0 : i32
    %c0_i32_0 = arith.constant 0 : i32
    %c0_i32_1 = arith.constant 0 : i32
    return %c0_i32, %c0_i32_0 : i32, i32
  }
  func.func @transform_13(%arg0: i32, %arg1: i32) -> (i32, i32) {
    %c0_i32 = arith.constant 0 : i32
    %c0_i32_0 = arith.constant 0 : i32
    %c0_i32_1 = arith.constant 0 : i32
    return %c0_i32, %c0_i32_0 : i32, i32
  }
  func.func @transform_14(%arg0: i32, %arg1: i32) -> (i32, i32) {
    %c0_i32 = arith.constant 0 : i32
    %c0_i32_0 = arith.constant 0 : i32
    %c0_i32_1 = arith.constant 0 : i32
    return %c0_i32, %c0_i32_0 : i32, i32
  }
  func.func @transform_15(%arg0: i32, %arg1: i32) -> (i32, i32) {
    %c0_i32 = arith.constant 0 : i32
    %c0_i32_0 = arith.constant 0 : i32
    %c0_i32_1 = arith.constant 0 : i32
    return %c0_i32, %c0_i32_0 : i32, i32
  }
  func.func @transform_16(%arg0: i32, %arg1: i32) -> (i32, i32, i32) {
    %c0_i32 = arith.constant 0 : i32
    %c0_i32_0 = arith.constant 0 : i32
    return %arg0, %arg1, %c0_i32 : i32, i32, i32
  }
  func.func @transform_17(%arg0: i32, %arg1: i32) -> (i32, i32, i32) {
    %c0_i32 = arith.constant 0 : i32
    %c0_i32_0 = arith.constant 0 : i32
    %c0_i32_1 = arith.constant 0 : i32
    return %arg0, %c0_i32, %c0_i32_0 : i32, i32, i32
  }
}

</mosaic_0001>

<llo_original>
// kernel: mamba2_forward.3
$region0: #{mamba2_forward.3}
  #allocation0 [shape = 'u32[]', space=smem, size = 0x4, offset = 0x4, fixed_abs, tag = 'smem constant byte address 0x4 - core index']
  #allocation1 [shape = 'u32[144,128]{1,0:T(1,128)}', space=vmem, size = 0x12000, scoped, tag = 'internal scratch']
  #allocation2 [shape = 'f32[16,64]{1,0:T(8,128)}', space=vmem, size = 0x2000, scoped, tag = 'scratch operand']
  #allocation3 [shape = 'f32[11,64]{1,0:T(8,128)}', space=vmem, size = 0x2000, scoped, tag = 'scratch operand']
  #allocation4 [shape = 'f32[8,64]{1,0:T(8,128)}', space=vmem, size = 0x1000, scoped, tag = 'scratch operand']
  #allocation5 [shape = 'f32[8,64]{1,0:T(8,128)}', space=vmem, size = 0x1000, scoped, tag = 'scratch operand']
  %s0 = inlined_call_operand.vmem [shape: bf16[2,16,32], index: 0, kind: input, shape index: {}]
  %s1 = inlined_call_operand.vmem [shape: f32[1,32], index: 1, kind: input, shape index: {}]
  %s2 = inlined_call_operand.vmem [shape: f32[1,32], index: 2, kind: input, shape index: {}]
  %s3 = inlined_call_operand.vmem [shape: bf16[32,64], index: 3, kind: input, shape index: {}]
  %s4 = inlined_call_operand.vmem [shape: f32[1,64], index: 4, kind: input, shape index: {}]
  %s5 = inlined_call_operand.vmem [shape: bf16[64,16], index: 5, kind: input, shape index: {}]
  %s6 = inlined_call_operand.vmem [shape: bf16[64,16], index: 6, kind: input, shape index: {}]
  %s7 = inlined_call_operand.vmem [shape: bf16[64,2], index: 7, kind: input, shape index: {}]
  %s8 = inlined_call_operand.vmem [shape: f32[1,2], index: 8, kind: input, shape index: {}]
  %s9 = inlined_call_operand.vmem [shape: f32[1,2], index: 9, kind: input, shape index: {}]
  %s10 = inlined_call_operand.vmem [shape: f32[1,64], index: 10, kind: input, shape index: {}]
  %s11 = inlined_call_operand.vmem [shape: f32[4,64], index: 11, kind: input, shape index: {}]
  %s12 = inlined_call_operand.vmem [shape: f32[1,64], index: 12, kind: input, shape index: {}]
  %s13 = inlined_call_operand.vmem [shape: bf16[64,32], index: 13, kind: input, shape index: {}]
  %s14 = inlined_call_operand.vmem [shape: f32[1,32], index: 14, kind: input, shape index: {}]
  %s15 = inlined_call_operand.vmem [shape: f32[1,32], index: 15, kind: input, shape index: {}]
  %s16 = inlined_call_operand.vmem [shape: f32[1,32], index: 16, kind: input, shape index: {}]
  %s17 = inlined_call_operand.hbm [shape: f32[2,16,32], index: 17, kind: output, shape index: {0}]
  %s18 = inlined_call_operand.hbm [shape: f32[2,16,64], index: 18, kind: output, shape index: {1}]
  %19 = xla_tuple %s17, %s18
  %s20 = sld [smem:[#allocation0]]
  $region117: #{mamba2_forward.3} parent=0
    _
  %s22 = ssub.s32 1, %s20
  %s23 = scalar_select 0, %s22, %s20
  $region1: #{mamba2_forward.3} parent=0
    #allocation6 [shape = 'u8[8192]{0}', space=vmem, size = 0x2000, scoped, tag = 'output window, operand 0']
    #allocation7 [shape = 's32[2]{0}', space=sflag, size = 0x8, scoped, tag = 'scoped memory for mamba2_forward.3']
    #allocation8 [shape = 'u8[16384]{0}', space=vmem, size = 0x4000, scoped, tag = 'output window, operand 1']
    #allocation9 [shape = 's32[2]{0}', space=sflag, size = 0x8, scoped, tag = 'scoped memory for mamba2_forward.3']
    %24 = vsyncpa [#allocation7], 0
    %s25 = scalar_lea.sflag [#allocation7], 1
    %26 = vsyncpa %s25, 0
    %27 = vsyncpa [#allocation9], 0
    %s28 = scalar_lea.sflag [#allocation9], 1
    %29 = vsyncpa %s28, 0
    loop: start=0, step=1, limit=6
    $region2: #{mamba2_forward.3} parent=1 // loop_pre_header
      _
    $region3: #{mamba2_forward.3} parent=1 // loop_header
      %s31 = sphi 0, %s35
      %p32 = scmp.ge.s32.totalorder %s31, 6
      %s38 = sphi 0, %s50
      %s39 = sphi 0, %s46
      %s40 = sphi 0, %s38
      %s41 = sphi 0, %s39
      %s42 = sphi 0, %s40
      %s43 = sphi 0, %s41
      %s55 = sphi 0, %s57
      %s58 = sphi 0, %s55
      %s59 = sphi 0, %s58
      %s75 = sphi 0, %s59
      %s79 = sphi 0, %s79
      %s81 = sphi 0, %s79
      %s82 = sphi 0, %s81
      %s96 = sphi 0, %s82
      %s100 = sphi 0, %s100
      %s102 = sphi 0, %s100
      %s103 = sphi 0, %s102
      %s117 = sphi 0, %s103
      %s121 = sphi 0, %s121
      %s123 = sphi 0, %s121
      %s124 = sphi 0, %s123
      %s138 = sphi 0, %s124
      %s142 = sphi 0, %s142
      %s144 = sphi 0, %s142
      %s145 = sphi 0, %s144
      %s159 = sphi 0, %s145
      %s163 = sphi 0, %s163
      %s165 = sphi 0, %s163
      %s166 = sphi 0, %s165
      %s180 = sphi 0, %s166
      %s184 = sphi 0, %s184
      %s186 = sphi 0, %s184
      %s187 = sphi 0, %s186
      %s201 = sphi 0, %s187
      %s205 = sphi 0, %s205
      %s207 = sphi 0, %s205
      %s208 = sphi 0, %s207
      %s222 = sphi 0, %s208
      %s226 = sphi 0, %s226
      %s228 = sphi 0, %s226
      %s229 = sphi 0, %s228
      %s243 = sphi 0, %s229
      %s247 = sphi 0, %s247
      %s249 = sphi 0, %s247
      %s250 = sphi 0, %s249
      %s264 = sphi 0, %s250
      %s268 = sphi 0, %s268
      %s270 = sphi 0, %s268
      %s271 = sphi 0, %s270
      %s285 = sphi 0, %s271
      %s289 = sphi 0, %s289
      %s291 = sphi 0, %s289
      %s292 = sphi 0, %s291
      %s306 = sphi 0, %s292
      %s310 = sphi 0, %s310
      %s312 = sphi 0, %s310
      %s313 = sphi 0, %s312
      %s327 = sphi 0, %s313
      %s331 = sphi 0, %s331
      %s333 = sphi 0, %s331
      %s334 = sphi 0, %s333
      %s348 = sphi 0, %s334
      %s352 = sphi 0, %s352
      %s354 = sphi 0, %s352
      %s355 = sphi 0, %s354
      %s369 = sphi 0, %s355
      %s373 = sphi 0, %s373
      %s375 = sphi 0, %s373
      %s376 = sphi 0, %s375
      %s390 = sphi 0, %s376
      %s394 = sphi 0, %s394
      %s396 = sphi 0, %s394
      %s397 = sphi 0, %s396
      %s411 = sphi 0, %s397
      %s419 = sphi 0, %s421
      %s422 = sphi 0, %s419
      %s423 = sphi 0, %s422
      %s439 = sphi 0, %s423
      %s445 = sphi 0, %s447
      %s448 = sphi 0, %s445
      %s449 = sphi 0, %s448
      %s465 = sphi 0, %s449
    $region4: #{mamba2_forward.3} parent=1 // loop_header_branch
      %34 = sbr.rel (%p32) target = $region8
    $region5: #{mamba2_forward.3} parent=1 // loop_body
      %s36 = ssub.s32 %s31, 1
      %s37 = ssub.s32 %s31, 2
      %s44 = sadd.s32 1, %s39
      %p45 = scmp.ge.s32.totalorder %s44, 2
      %s46 = scalar_select %p45, 0, %s44
      %s47 = sadd.s32 1, %s38
      %s48 = scalar_select %p45, %s47, %s38
      %p49 = scmp.ge.s32.totalorder %s48, 2
      %s50 = scalar_select %p49, 0, %s48
      %s51 = ssub.s32 %s38, %s50
      %s52 = ssub.s32 %s39, %s46
      %s53 = sor.u32 %s51, %s52
      %p54 = scmp.eq.s32.totalorder %s53, 0
      %s56 = sadd.s32 %s55, 1
      %s57 = scalar_select %p54, %s55, %s56
      %p60 = pneg %p54
      %p61 = scmp.eq.s32.totalorder %s31, 3
      %p62 = por %p60, %p61
      %p63 = scmp.ne.s32.totalorder %s55, %s58
      %p64 = scmp.eq.s32.totalorder %s31, 0
      %p65 = por %p63, %p64
      %p66 = scmp.ne.s32.totalorder %s55, %s58
      %p67 = scmp.eq.s32.totalorder %s36, 3
      %p68 = por %p66, %p67
      %p69 = scmp.ne.s32.totalorder %s58, %s59
      %p70 = scmp.eq.s32.totalorder %s36, 0
      %p71 = por %p69, %p70
      %p72 = scmp.ne.s32.totalorder %s58, %s59
      %p73 = scmp.eq.s32.totalorder %s37, 3
      %p74 = por %p72, %p73
      %p76 = scmp.ne.s32.totalorder %s59, %s75
      %p77 = scmp.eq.s32.totalorder %s37, 0
      %p78 = por %p76, %p77
      %s80 = sadd.s32 %s79, 1
      %p83 = scmp.eq.s32.totalorder %s31, 3
      %p84 = scmp.ne.s32.totalorder %s79, %s81
      %p85 = scmp.eq.s32.totalorder %s31, 0
      %p86 = por %p84, %p85
      %p87 = scmp.ne.s32.totalorder %s79, %s81
      %p88 = scmp.eq.s32.totalorder %s36, 3
      %p89 = por %p87, %p88
      %p90 = scmp.ne.s32.totalorder %s81, %s82
      %p91 = scmp.eq.s32.totalorder %s36, 0
      %p92 = por %p90, %p91
      %p93 = scmp.ne.s32.totalorder %s81, %s82
      %p94 = scmp.eq.s32.totalorder %s37, 3
      %p95 = por %p93, %p94
      %p97 = scmp.ne.s32.totalorder %s82, %s96
      %p98 = scmp.eq.s32.totalorder %s37, 0
      %p99 = por %p97, %p98
      %s101 = sadd.s32 %s100, 1
      %p104 = scmp.eq.s32.totalorder %s31, 3
      %p105 = scmp.ne.s32.totalorder %s100, %s102
      %p106 = scmp.eq.s32.totalorder %s31, 0
      %p107 = por %p105, %p106
      %p108 = scmp.ne.s32.totalorder %s100, %s102
      %p109 = scmp.eq.s32.totalorder %s36, 3
      %p110 = por %p108, %p109
      %p111 = scmp.ne.s32.totalorder %s102, %s103
      %p112 = scmp.eq.s32.totalorder %s36, 0
      %p113 = por %p111, %p112
      %p114 = scmp.ne.s32.totalorder %s102, %s103
      %p115 = scmp.eq.s32.totalorder %s37, 3
      %p116 = por %p114, %p115
      %p118 = scmp.ne.s32.totalorder %s103, %s117
      %p119 = scmp.eq.s32.totalorder %s37, 0
      %p120 = por %p118, %p119
      %s122 = sadd.s32 %s121, 1
      %p125 = scmp.eq.s32.totalorder %s31, 3
      %p126 = scmp.ne.s32.totalorder %s121, %s123
      %p127 = scmp.eq.s32.totalorder %s31, 0
      %p128 = por %p126, %p127
      %p129 = scmp.ne.s32.totalorder %s121, %s123
      %p130 = scmp.eq.s32.totalorder %s36, 3
      %p131 = por %p129, %p130
      %p132 = scmp.ne.s32.totalorder %s123, %s124
      %p133 = scmp.eq.s32.totalorder %s36, 0
      %p134 = por %p132, %p133
      %p135 = scmp.ne.s32.totalorder %s123, %s124
      %p136 = scmp.eq.s32.totalorder %s37, 3
      %p137 = por %p135, %p136
      %p139 = scmp.ne.s32.totalorder %s124, %s138
      %p140 = scmp.eq.s32.totalorder %s37, 0
      %p141 = por %p139, %p140
      %s143 = sadd.s32 %s142, 1
      %p146 = scmp.eq.s32.totalorder %s31, 3
      %p147 = scmp.ne.s32.totalorder %s142, %s144
      %p148 = scmp.eq.s32.totalorder %s31, 0
      %p149 = por %p147, %p148
      %p150 = scmp.ne.s32.totalorder %s142, %s144
      %p151 = scmp.eq.s32.totalorder %s36, 3
      %p152 = por %p150, %p151
      %p153 = scmp.ne.s32.totalorder %s144, %s145
      %p154 = scmp.eq.s32.totalorder %s36, 0
      %p155 = por %p153, %p154
      %p156 = scmp.ne.s32.totalorder %s144, %s145
      %p157 = scmp.eq.s32.totalorder %s37, 3
      %p158 = por %p156, %p157
      %p160 = scmp.ne.s32.totalorder %s145, %s159
      %p161 = scmp.eq.s32.totalorder %s37, 0
      %p162 = por %p160, %p161
      %s164 = sadd.s32 %s163, 1
      %p167 = scmp.eq.s32.totalorder %s31, 3
      %p168 = scmp.ne.s32.totalorder %s163, %s165
      %p169 = scmp.eq.s32.totalorder %s31, 0
      %p170 = por %p168, %p169
      %p171 = scmp.ne.s32.totalorder %s163, %s165
      %p172 = scmp.eq.s32.totalorder %s36, 3
      %p173 = por %p171, %p172
      %p174 = scmp.ne.s32.totalorder %s165, %s166
      %p175 = scmp.eq.s32.totalorder %s36, 0
      %p176 = por %p174, %p175
      %p177 = scmp.ne.s32.totalorder %s165, %s166
      %p178 = scmp.eq.s32.totalorder %s37, 3
      %p179 = por %p177, %p178
      %p181 = scmp.ne.s32.totalorder %s166, %s180
      %p182 = scmp.eq.s32.totalorder %s37, 0
      %p183 = por %p181, %p182
      %s185 = sadd.s32 %s184, 1
      %p188 = scmp.eq.s32.totalorder %s31, 3
      %p189 = scmp.ne.s32.totalorder %s184, %s186
      %p190 = scmp.eq.s32.totalorder %s31, 0
      %p191 = por %p189, %p190
      %p192 = scmp.ne.s32.totalorder %s184, %s186
      %p193 = scmp.eq.s32.totalorder %s36, 3
      %p194 = por %p192, %p193
      %p195 = scmp.ne.s32.totalorder %s186, %s187
      %p196 = scmp.eq.s32.totalorder %s36, 0
      %p197 = por %p195, %p196
      %p198 = scmp.ne.s32.totalorder %s186, %s187
      %p199 = scmp.eq.s32.totalorder %s37, 3
      %p200 = por %p198, %p199
      %p202 = scmp.ne.s32.totalorder %s187, %s201
      %p203 = scmp.eq.s32.totalorder %s37, 0
      %p204 = por %p202, %p203
      %s206 = sadd.s32 %s205, 1
      %p209 = scmp.eq.s32.totalorder %s31, 3
      %p210 = scmp.ne.s32.totalorder %s205, %s207
      %p211 = scmp.eq.s32.totalorder %s31, 0
      %p212 = por %p210, %p211
      %p213 = scmp.ne.s32.totalorder %s205, %s207
      %p214 = scmp.eq.s32.totalorder %s36, 3
      %p215 = por %p213, %p214
      %p216 = scmp.ne.s32.totalorder %s207, %s208
      %p217 = scmp.eq.s32.totalorder %s36, 0
      %p218 = por %p216, %p217
      %p219 = scmp.ne.s32.totalorder %s207, %s208
      %p220 = scmp.eq.s32.totalorder %s37, 3
      %p221 = por %p219, %p220
      %p223 = scmp.ne.s32.totalorder %s208, %s222
      %p224 = scmp.eq.s32.totalorder %s37, 0
      %p225 = por %p223, %p224
      %s227 = sadd.s32 %s226, 1
      %p230 = scmp.eq.s32.totalorder %s31, 3
      %p231 = scmp.ne.s32.totalorder %s226, %s228
      %p232 = scmp.eq.s32.totalorder %s31, 0
      %p233 = por %p231, %p232
      %p234 = scmp.ne.s32.totalorder %s226, %s228
      %p235 = scmp.eq.s32.totalorder %s36, 3
      %p236 = por %p234, %p235
      %p237 = scmp.ne.s32.totalorder %s228, %s229
      %p238 = scmp.eq.s32.totalorder %s36, 0
      %p239 = por %p237, %p238
      %p240 = scmp.ne.s32.totalorder %s228, %s229
      %p241 = scmp.eq.s32.totalorder %s37, 3
      %p242 = por %p240, %p241
      %p244 = scmp.ne.s32.totalorder %s229, %s243
      %p245 = scmp.eq.s32.totalorder %s37, 0
      %p246 = por %p244, %p245
      %s248 = sadd.s32 %s247, 1
      %p251 = scmp.eq.s32.totalorder %s31, 3
      %p252 = scmp.ne.s32.totalorder %s247, %s249
      %p253 = scmp.eq.s32.totalorder %s31, 0
      %p254 = por %p252, %p253
      %p255 = scmp.ne.s32.totalorder %s247, %s249
      %p256 = scmp.eq.s32.totalorder %s36, 3
      %p257 = por %p255, %p256
      %p258 = scmp.ne.s32.totalorder %s249, %s250
      %p259 = scmp.eq.s32.totalorder %s36, 0
      %p260 = por %p258, %p259
      %p261 = scmp.ne.s32.totalorder %s249, %s250
      %p262 = scmp.eq.s32.totalorder %s37, 3
      %p263 = por %p261, %p262
      %p265 = scmp.ne.s32.totalorder %s250, %s264
      %p266 = scmp.eq.s32.totalorder %s37, 0
      %p267 = por %p265, %p266
      %s269 = sadd.s32 %s268, 1
      %p272 = scmp.eq.s32.totalorder %s31, 3
      %p273 = scmp.ne.s32.totalorder %s268, %s270
      %p274 = scmp.eq.s32.totalorder %s31, 0
      %p275 = por %p273, %p274
      %p276 = scmp.ne.s32.totalorder %s268, %s270
      %p277 = scmp.eq.s32.totalorder %s36, 3
      %p278 = por %p276, %p277
      %p279 = scmp.ne.s32.totalorder %s270, %s271
      %p280 = scmp.eq.s32.totalorder %s36, 0
      %p281 = por %p279, %p280
      %p282 = scmp.ne.s32.totalorder %s270, %s271
      %p283 = scmp.eq.s32.totalorder %s37, 3
      %p284 = por %p282, %p283
      %p286 = scmp.ne.s32.totalorder %s271, %s285
      %p287 = scmp.eq.s32.totalorder %s37, 0
      %p288 = por %p286, %p287
      %s290 = sadd.s32 %s289, 1
      %p293 = scmp.eq.s32.totalorder %s31, 3
      %p294 = scmp.ne.s32.totalorder %s289, %s291
      %p295 = scmp.eq.s32.totalorder %s31, 0
      %p296 = por %p294, %p295
      %p297 = scmp.ne.s32.totalorder %s289, %s291
      %p298 = scmp.eq.s32.totalorder %s36, 3
      %p299 = por %p297, %p298
      %p300 = scmp.ne.s32.totalorder %s291, %s292
      %p301 = scmp.eq.s32.totalorder %s36, 0
      %p302 = por %p300, %p301
      %p303 = scmp.ne.s32.totalorder %s291, %s292
      %p304 = scmp.eq.s32.totalorder %s37, 3
      %p305 = por %p303, %p304
      %p307 = scmp.ne.s32.totalorder %s292, %s306
      %p308 = scmp.eq.s32.totalorder %s37, 0
      %p309 = por %p307, %p308
      %s311 = sadd.s32 %s310, 1
      %p314 = scmp.eq.s32.totalorder %s31, 3
      %p315 = scmp.ne.s32.totalorder %s310, %s312
      %p316 = scmp.eq.s32.totalorder %s31, 0
      %p317 = por %p315, %p316
      %p318 = scmp.ne.s32.totalorder %s310, %s312
      %p319 = scmp.eq.s32.totalorder %s36, 3
      %p320 = por %p318, %p319
      %p321 = scmp.ne.s32.totalorder %s312, %s313
      %p322 = scmp.eq.s32.totalorder %s36, 0
      %p323 = por %p321, %p322
      %p324 = scmp.ne.s32.totalorder %s312, %s313
      %p325 = scmp.eq.s32.totalorder %s37, 3
      %p326 = por %p324, %p325
      %p328 = scmp.ne.s32.totalorder %s313, %s327
      %p329 = scmp.eq.s32.totalorder %s37, 0
      %p330 = por %p328, %p329
      %s332 = sadd.s32 %s331, 1
      %p335 = scmp.eq.s32.totalorder %s31, 3
      %p336 = scmp.ne.s32.totalorder %s331, %s333
      %p337 = scmp.eq.s32.totalorder %s31, 0
      %p338 = por %p336, %p337
      %p339 = scmp.ne.s32.totalorder %s331, %s333
      %p340 = scmp.eq.s32.totalorder %s36, 3
      %p341 = por %p339, %p340
      %p342 = scmp.ne.s32.totalorder %s333, %s334
      %p343 = scmp.eq.s32.totalorder %s36, 0
      %p344 = por %p342, %p343
      %p345 = scmp.ne.s32.totalorder %s333, %s334
      %p346 = scmp.eq.s32.totalorder %s37, 3
      %p347 = por %p345, %p346
      %p349 = scmp.ne.s32.totalorder %s334, %s348
      %p350 = scmp.eq.s32.totalorder %s37, 0
      %p351 = por %p349, %p350
      %s353 = sadd.s32 %s352, 1
      %p356 = scmp.eq.s32.totalorder %s31, 3
      %p357 = scmp.ne.s32.totalorder %s352, %s354
      %p358 = scmp.eq.s32.totalorder %s31, 0
      %p359 = por %p357, %p358
      %p360 = scmp.ne.s32.totalorder %s352, %s354
      %p361 = scmp.eq.s32.totalorder %s36, 3
      %p362 = por %p360, %p361
      %p363 = scmp.ne.s32.totalorder %s354, %s355
      %p364 = scmp.eq.s32.totalorder %s36, 0
      %p365 = por %p363, %p364
      %p366 = scmp.ne.s32.totalorder %s354, %s355
      %p367 = scmp.eq.s32.totalorder %s37, 3
      %p368 = por %p366, %p367
      %p370 = scmp.ne.s32.totalorder %s355, %s369
      %p371 = scmp.eq.s32.totalorder %s37, 0
      %p372 = por %p370, %p371
      %s374 = sadd.s32 %s373, 1
      %p377 = scmp.eq.s32.totalorder %s31, 3
      %p378 = scmp.ne.s32.totalorder %s373, %s375
      %p379 = scmp.eq.s32.totalorder %s31, 0
      %p380 = por %p378, %p379
      %p381 = scmp.ne.s32.totalorder %s373, %s375
      %p382 = scmp.eq.s32.totalorder %s36, 3
      %p383 = por %p381, %p382
      %p384 = scmp.ne.s32.totalorder %s375, %s376
      %p385 = scmp.eq.s32.totalorder %s36, 0
      %p386 = por %p384, %p385
      %p387 = scmp.ne.s32.totalorder %s375, %s376
      %p388 = scmp.eq.s32.totalorder %s37, 3
      %p389 = por %p387, %p388
      %p391 = scmp.ne.s32.totalorder %s376, %s390
      %p392 = scmp.eq.s32.totalorder %s37, 0
      %p393 = por %p391, %p392
      %s395 = sadd.s32 %s394, 1
      %p398 = scmp.eq.s32.totalorder %s31, 3
      %p399 = scmp.ne.s32.totalorder %s394, %s396
      %p400 = scmp.eq.s32.totalorder %s31, 0
      %p401 = por %p399, %p400
      %p402 = scmp.ne.s32.totalorder %s394, %s396
      %p403 = scmp.eq.s32.totalorder %s36, 3
      %p404 = por %p402, %p403
      %p405 = scmp.ne.s32.totalorder %s396, %s397
      %p406 = scmp.eq.s32.totalorder %s36, 0
      %p407 = por %p405, %p406
      %p408 = scmp.ne.s32.totalorder %s396, %s397
      %p409 = scmp.eq.s32.totalorder %s37, 3
      %p410 = por %p408, %p409
      %p412 = scmp.ne.s32.totalorder %s397, %s411
      %p413 = scmp.eq.s32.totalorder %s37, 0
      %p414 = por %p412, %p413
      %s415 = ssub.s32 %s38, %s50
      %s416 = ssub.s32 %s39, %s46
      %s417 = sor.u32 %s415, %s416
      %p418 = scmp.eq.s32.totalorder %s417, 0
      %s420 = sadd.s32 %s419, 1
      %s421 = scalar_select %p418, %s419, %s420
      %p424 = pneg %p418
      %p425 = scmp.eq.s32.totalorder %s31, 3
      %p426 = por %p424, %p425
      %p427 = scmp.ne.s32.totalorder %s419, %s422
      %p428 = scmp.eq.s32.totalorder %s31, 0
      %p429 = por %p427, %p428
      %p430 = scmp.ne.s32.totalorder %s419, %s422
      %p431 = scmp.eq.s32.totalorder %s36, 3
      %p432 = por %p430, %p431
      %p433 = scmp.ne.s32.totalorder %s422, %s423
      %p434 = scmp.eq.s32.totalorder %s36, 0
      %p435 = por %p433, %p434
      %p436 = scmp.ne.s32.totalorder %s422, %s423
      %p437 = scmp.eq.s32.totalorder %s37, 3
      %p438 = por %p436, %p437
      %p440 = scmp.ne.s32.totalorder %s423, %s439
      %p441 = scmp.eq.s32.totalorder %s37, 0
      %p442 = por %p440, %p441
      %s443 = ssub.s32 %s38, %s50
      %p444 = scmp.eq.s32.totalorder %s443, 0
      %s446 = sadd.s32 %s445, 1
      %s447 = scalar_select %p444, %s445, %s446
      %p450 = pneg %p444
      %p451 = scmp.eq.s32.totalorder %s31, 3
      %p452 = por %p450, %p451
      %p453 = scmp.ne.s32.totalorder %s445, %s448
      %p454 = scmp.eq.s32.totalorder %s31, 0
      %p455 = por %p453, %p454
      %p456 = scmp.ne.s32.totalorder %s445, %s448
      %p457 = scmp.eq.s32.totalorder %s36, 3
      %p458 = por %p456, %p457
      %p459 = scmp.ne.s32.totalorder %s448, %s449
      %p460 = scmp.eq.s32.totalorder %s36, 0
      %p461 = por %p459, %p460
      %p462 = scmp.ne.s32.totalorder %s448, %s449
      %p463 = scmp.eq.s32.totalorder %s37, 3
      %p464 = por %p462, %p463
      %p466 = scmp.ne.s32.totalorder %s449, %s465
      %p467 = scmp.eq.s32.totalorder %s37, 0
      %p468 = por %p466, %p467
      %p469 = scmp.le.s32.totalorder 1, %s31
      %p470 = scmp.lt.s32.totalorder %s31, 5
      %p471 = pnand %p469, %p470
      %p472 = pneg %p471
      // Predicated region
      $region9: #{mamba2_forward.3} parent=5 // pred_check
        _
      $region10: #{mamba2_forward.3} parent=5 // pred_check_branch
        %474 = sbr.rel (%p471) target = $region12
      $region11: #{mamba2_forward.3} parent=5 // pred_region
        %s475 = ssub.s32 %s31, 1
        // Predicated region
        $region13: #{mamba2_forward.3} parent=11 // pred_check
          %p476 = pneg %p92
        $region14: #{mamba2_forward.3} parent=11 // pred_check_branch
          %478 = sbr.rel (%p476) target = $region16
        $region15: #{mamba2_forward.3} parent=11 // pred_region
          _
        $region16: #{mamba2_forward.3} parent=11 // pred_fallthru
          _
        // Predicated region
        $region17: #{mamba2_forward.3} parent=11 // pred_check
          %p479 = pneg %p113
        $region18: #{mamba2_forward.3} parent=11 // pred_check_branch
          %481 = sbr.rel (%p479) target = $region20
        $region19: #{mamba2_forward.3} parent=11 // pred_region
          _
        $region20: #{mamba2_forward.3} parent=11 // pred_fallthru
          _
        // Predicated region
        $region21: #{mamba2_forward.3} parent=11 // pred_check
          %p482 = pneg %p134
        $region22: #{mamba2_forward.3} parent=11 // pred_check_branch
          %484 = sbr.rel (%p482) target = $region24
        $region23: #{mamba2_forward.3} parent=11 // pred_region
          _
        $region24: #{mamba2_forward.3} parent=11 // pred_fallthru
          _
        // Predicated region
        $region25: #{mamba2_forward.3} parent=11 // pred_check
          %p485 = pneg %p155
        $region26: #{mamba2_forward.3} parent=11 // pred_check_branch
          %487 = sbr.rel (%p485) target = $region28
        $region27: #{mamba2_forward.3} parent=11 // pred_region
          _
        $region28: #{mamba2_forward.3} parent=11 // pred_fallthru
          _
        // Predicated region
        $region29: #{mamba2_forward.3} parent=11 // pred_check
          %p488 = pneg %p176
        $region30: #{mamba2_forward.3} parent=11 // pred_check_branch
          %490 = sbr.rel (%p488) target = $region32
        $region31: #{mamba2_forward.3} parent=11 // pred_region
          _
        $region32: #{mamba2_forward.3} parent=11 // pred_fallthru
          _
        // Predicated region
        $region33: #{mamba2_forward.3} parent=11 // pred_check
          %p491 = pneg %p197
        $region34: #{mamba2_forward.3} parent=11 // pred_check_branch
          %493 = sbr.rel (%p491) target = $region36
        $region35: #{mamba2_forward.3} parent=11 // pred_region
          _
        $region36: #{mamba2_forward.3} parent=11 // pred_fallthru
          _
        // Predicated region
        $region37: #{mamba2_forward.3} parent=11 // pred_check
          %p494 = pneg %p218
        $region38: #{mamba2_forward.3} parent=11 // pred_check_branch
          %496 = sbr.rel (%p494) target = $region40
        $region39: #{mamba2_forward.3} parent=11 // pred_region
          _
        $region40: #{mamba2_forward.3} parent=11 // pred_fallthru
          _
        // Predicated region
        $region41: #{mamba2_forward.3} parent=11 // pred_check
          %p497 = pneg %p239
        $region42: #{mamba2_forward.3} parent=11 // pred_check_branch
          %499 = sbr.rel (%p497) target = $region44
        $region43: #{mamba2_forward.3} parent=11 // pred_region
          _
        $region44: #{mamba2_forward.3} parent=11 // pred_fallthru
          _
        // Predicated region
        $region45: #{mamba2_forward.3} parent=11 // pred_check
          %p500 = pneg %p260
        $region46: #{mamba2_forward.3} parent=11 // pred_check_branch
          %502 = sbr.rel (%p500) target = $region48
        $region47: #{mamba2_forward.3} parent=11 // pred_region
          _
        $region48: #{mamba2_forward.3} parent=11 // pred_fallthru
          _
        // Predicated region
        $region49: #{mamba2_forward.3} parent=11 // pred_check
          %p503 = pneg %p281
        $region50: #{mamba2_forward.3} parent=11 // pred_check_branch
          %505 = sbr.rel (%p503) target = $region52
        $region51: #{mamba2_forward.3} parent=11 // pred_region
          _
        $region52: #{mamba2_forward.3} parent=11 // pred_fallthru
          _
        // Predicated region
        $region53: #{mamba2_forward.3} parent=11 // pred_check
          %p506 = pneg %p302
        $region54: #{mamba2_forward.3} parent=11 // pred_check_branch
          %508 = sbr.rel (%p506) target = $region56
        $region55: #{mamba2_forward.3} parent=11 // pred_region
          _
        $region56: #{mamba2_forward.3} parent=11 // pred_fallthru
          _
        // Predicated region
        $region57: #{mamba2_forward.3} parent=11 // pred_check
          %p509 = pneg %p323
        $region58: #{mamba2_forward.3} parent=11 // pred_check_branch
          %511 = sbr.rel (%p509) target = $region60
        $region59: #{mamba2_forward.3} parent=11 // pred_region
          _
        $region60: #{mamba2_forward.3} parent=11 // pred_fallthru
          _
        // Predicated region
        $region61: #{mamba2_forward.3} parent=11 // pred_check
          %p512 = pneg %p344
        $region62: #{mamba2_forward.3} parent=11 // pred_check_branch
          %514 = sbr.rel (%p512) target = $region64
        $region63: #{mamba2_forward.3} parent=11 // pred_region
          _
        $region64: #{mamba2_forward.3} parent=11 // pred_fallthru
          _
        // Predicated region
        $region65: #{mamba2_forward.3} parent=11 // pred_check
          %p515 = pneg %p365
        $region66: #{mamba2_forward.3} parent=11 // pred_check_branch
          %517 = sbr.rel (%p515) target = $region68
        $region67: #{mamba2_forward.3} parent=11 // pred_region
          _
        $region68: #{mamba2_forward.3} parent=11 // pred_fallthru
          _
        // Predicated region
        $region69: #{mamba2_forward.3} parent=11 // pred_check
          %p518 = pneg %p386
        $region70: #{mamba2_forward.3} parent=11 // pred_check_branch
          %520 = sbr.rel (%p518) target = $region72
        $region71: #{mamba2_forward.3} parent=11 // pred_region
          _
        $region72: #{mamba2_forward.3} parent=11 // pred_fallthru
          _
        // Predicated region
        $region73: #{mamba2_forward.3} parent=11 // pred_check
          %p521 = pneg %p407
        $region74: #{mamba2_forward.3} parent=11 // pred_check_branch
          %523 = sbr.rel (%p521) target = $region76
        $region75: #{mamba2_forward.3} parent=11 // pred_region
          _
        $region76: #{mamba2_forward.3} parent=11 // pred_fallthru
          _
      $region12: #{mamba2_forward.3} parent=5 // pred_fallthru
        _
      %p524 = scmp.lt.s32.totalorder %s31, 4
      // Predicated region
      $region77: #{mamba2_forward.3} parent=5 // pred_check
        %p525 = pneg %p524
      $region78: #{mamba2_forward.3} parent=5 // pred_check_branch
        %527 = sbr.rel (%p525) target = $region80
      $region79: #{mamba2_forward.3} parent=5 // pred_region
        // Predicated region
        $region81: #{mamba2_forward.3} parent=79 // pred_check
          %p528 = pneg %p65
        $region82: #{mamba2_forward.3} parent=79 // pred_check_branch
          %530 = sbr.rel (%p528) target = $region84
        $region83: #{mamba2_forward.3} parent=79 // pred_region
          %p531 = scmp.lt.s32.totalorder %s38, 1
          %s532 = scalar_select %p531, %s38, 1
          %p533 = scmp.lt.s32.totalorder %s39, 1
          %s534 = scalar_select %p533, %s39, 1
          %s535 = smul.addr %s532, 2
          %s536 = sadd.s32 %s534, %s535
          %s537 = smul.addr %s536, 4
          %s538 = scalar_lea.vmem %s0, %s537
        $region84: #{mamba2_forward.3} parent=79 // pred_fallthru
          _
      $region80: #{mamba2_forward.3} parent=5 // pred_fallthru
        _
      %p539 = scmp.le.s32.totalorder 1, %s31
      %p540 = scmp.lt.s32.totalorder %s31, 5
      %p541 = pnand %p539, %p540
      %p542 = pneg %p541
      // Predicated region
      $region85: #{mamba2_forward.3} parent=5 // pred_check
        _
      $region86: #{mamba2_forward.3} parent=5 // pred_check_branch
        %544 = sbr.rel (%p541) target = $region88
      $region87: #{mamba2_forward.3} parent=5 // pred_region
        %s545 = ssub.s32 %s31, 1
        %p546 = scmp.lt.s32.totalorder %s40, 1
        %s547 = scalar_select %p546, %s40, 1
        %p548 = scmp.lt.s32.totalorder %s41, 1
        %s549 = scalar_select %p548, %s41, 1
        %s550 = smul.addr %s547, 2
        %s551 = sadd.s32 %s549, %s550
        %s552 = smul.addr %s551, 4
        %s553 = scalar_lea.vmem %s0, %s552
        %p554 = pneg %p71
        %p555 = pneg %p68
        %p556 = pneg %p92
        %p557 = pneg %p89
        %p558 = pneg %p113
        %p559 = pneg %p110
        %p560 = pneg %p134
        %p561 = pneg %p131
        %p562 = pneg %p155
        %p563 = pneg %p152
        %p564 = pneg %p176
        %p565 = pneg %p173
        %p566 = pneg %p197
        %p567 = pneg %p194
        %p568 = pneg %p218
        %p569 = pneg %p215
        %p570 = pneg %p239
        %p571 = pneg %p236
        %p572 = pneg %p260
        %p573 = pneg %p257
        %p574 = pneg %p281
        %p575 = pneg %p278
        %p576 = pneg %p302
        %p577 = pneg %p299
        %p578 = pneg %p323
        %p579 = pneg %p320
        %p580 = pneg %p344
        %p581 = pneg %p341
        %p582 = pneg %p365
        %p583 = pneg %p362
        %p584 = pneg %p386
        %p585 = pneg %p383
        %p586 = pneg %p407
        %p587 = pneg %p404
        %p588 = pneg %p435
        %p589 = pneg %p432
        %s590 = sand.u32 %s422, 1
        %s591 = scalar_lea.sflag [#allocation7], %s590
        %s592 = sand.u32 %s422, 1
        %s593 = smul.addr %s592, 8
        %s594 = scalar_lea.vmem [#allocation6], %s593
        %p595 = pneg %p461
        %p596 = pneg %p458
        %s597 = sand.u32 %s448, 1
        %s598 = scalar_lea.sflag [#allocation9], %s597
        %s599 = sand.u32 %s448, 1
        %s600 = smul.addr %s599, 16
        %s601 = scalar_lea.vmem [#allocation8], %s600
        %p602 = scmp.lt.s32.totalorder %s40, 1
        %s603 = scalar_select %p602, %s40, 1
        %p604 = scmp.lt.s32.totalorder %s41, 1
        %s605 = scalar_select %p604, %s41, 1
        %s606 = smul.addr %s603, 2
        %s607 = sadd.s32 %s605, %s606
        %s608 = smul.addr %s607, 4
        %s609 = scalar_lea.vmem %s0, %s608
        %p611 = scmp.eq.s32.totalorder %s41, 0
        // Predicated region
        $region89: #{mamba2_forward.3} parent=87 // pred_check
          %p612 = pneg %p611
        $region90: #{mamba2_forward.3} parent=87 // pred_check_branch
          %614 = sbr.rel (%p612) target = $region92
        $region91: #{mamba2_forward.3} parent=87 // pred_region
          %vm615 = vcmask 523264
          %616 = vst.msk [vmem:[#allocation2] sm:$0xff] %vm615, 0.0
          %617 = vst.msk [vmem:[#allocation2 + $0x8] sm:$0xff] %vm615, 0.0
          %vm618 = vcmask 518144
          %619 = vst.msk [vmem:[#allocation3] sm:$0x7] %vm618, 0.0
        $region92: #{mamba2_forward.3} parent=87 // pred_fallthru
          _
        %v620 = vld [vmem:[%s609] sm:$0xf]
        %v621 = vunpack.c.l.bf16 %v620
        %v622 = vld [vmem:[%s1] sm:$0x1]
        %v623 = vld [vmem:[%s2] sm:$0x1]
        %vm624 = vcmask 261120
        %v625 = vsel %vm624, %v621, 0.0
        %626 = vadd.xlane.f32.xlu0 %v625
        %v627 = vpop.xlane.xlu0 %626
        %v628 = vrcp.pop 32.0
        %v629 = vmul.f32 %v627, %v628
        %v630 = vsub.f32 %v621, %v629
        %v631 = vmul.f32 %v630, %v630
        %v632 = vsel %vm624, %v631, 0.0
        %633 = vadd.xlane.f32.xlu0 %v632
        %v634 = vpop.xlane.xlu0 %633
        %v635 = vmul.f32 %v634, %v628
        %v636 = vadd.f32 %v635, 1e-05
        %v637 = vrsqrt.pop %v636
        %v638 = vmul.f32 %v630, %v637
        %v640 = vlaneseq
        %v641 = vshrl.u32 %v640, 7
        %v642 = vsub.s32 0, %v641
        %v643 = vrot.slane %v622, %v642
        %v645 = vmul.f32 %v638, %v643
        %v647 = vlaneseq
        %v648 = vshrl.u32 %v647, 7
        %v649 = vsub.s32 0, %v648
        %v650 = vrot.slane %v623, %v649
        %v652 = vadd.f32 %v645, %v650
        %v653 = vpack.c.bf16 %v652, %v652
        %v654 = vld [vmem:[%s3] sm:$0xf]
        %v655 = vld [vmem:[%s3 + $0x4] sm:$0xf]
        %v656 = vld [vmem:[%s3 + $0x8] sm:$0xf]
        %v657 = vld [vmem:[%s3 + $0xc] sm:$0xf]
        %v658 = vld [vmem:[%s4] sm:$0x1]
        %v660 = vlaneseq
        %v661 = vshrl.u32 %v660, 7
        %v662 = vsub.s32 0, %v661
        %v663 = vrot.slane %v658, %v662
        %v669 = vunpack.c.l.b16 %v654
        %v670 = vunpack.c.l.b16 %v655
        %v671 = vunpack.c.l.b16 %v656
        %v672 = vunpack.c.l.b16 %v657
        %v673 = vpack.c.b16 %v670, %v669
        %v674 = vpack.c.b16 %v672, %v671
        %v678 = vsel %vm624, %v653, 0
        %680 = vmatprep.subr.bf16.mxu0 0
        %681 = vmatpush1.bf16.msra.mxu0 %v673
        %682 = vmatprep.subr.bf16.mxu0 0
        %683 = vmatpush1.bf16.msra.mxu0 %v674
        %684 = vmatprep.subr.bf16.mxu0 0
        %685 = vmatpush1.bf16.msra.mxu0 0
        %686 = vmatprep.subr.bf16.mxu0 0
        %687 = vmatpush1.bf16.msra.mxu0 0
        %688 = vmatprep.subr.bf16.mxu0 0
        %689 = vmatpush1.bf16.msra.mxu0 0
        %690 = vmatprep.subr.bf16.mxu0 0
        %691 = vmatpush1.bf16.msra.mxu0 0
        %692 = vmatprep.subr.bf16.mxu0 0
        %693 = vmatpush1.bf16.msra.mxu0 0
        %694 = vmatprep.subr.bf16.mxu0 0
        %695 = vmatpush1.bf16.msra.mxu0 0
        %696 = vmatprep.subr.bf16.mxu0 0
        %697 = vmatpush1.bf16.msra.mxu0 0
        %698 = vmatprep.subr.bf16.mxu0 0
        %699 = vmatpush1.bf16.msra.mxu0 0
        %700 = vmatprep.subr.bf16.mxu0 0
        %701 = vmatpush1.bf16.msra.mxu0 0
        %702 = vmatprep.subr.bf16.mxu0 0
        %703 = vmatpush1.bf16.msra.mxu0 0
        %704 = vmatprep.subr.bf16.mxu0 0
        %705 = vmatpush1.bf16.msra.mxu0 0
        %706 = vmatprep.subr.bf16.mxu0 0
        %707 = vmatpush1.bf16.msra.mxu0 0
        %708 = vmatprep.subr.bf16.mxu0 0
        %709 = vmatpush1.bf16.msra.mxu0 0
        %710 = vmatprep.subr.bf16.mxu0 0
        %711 = vmatpush1.bf16.msra.mxu0 0
        %712 = vmatprep.mubr.bf16.mxu0 0
        %713 = vmatmul.mubr.bf16.gmra.mrb[0].mxu0 %v678
        %v714 = vpop.f32.mrb[0].mxu0
        %v715 = vadd.f32 %v663, %v714
        %v716 = vpop.f32.mrb[0].mxu0
        %v717 = vpop.f32.mrb[0].mxu0
        %v718 = vpop.f32.mrb[0].mxu0
        %719 = vdwg.mxu0
        %v720 = vpack.c.bf16 %v715, %v715
        %v721 = vld [vmem:[%s5] sm:$0xf]
        %v722 = vld [vmem:[%s5 + $0x4] sm:$0xf]
        %v723 = vld [vmem:[%s5 + $0x8] sm:$0xf]
        %v724 = vld [vmem:[%s5 + $0xc] sm:$0xf]
        %v725 = vld [vmem:[%s5 + $0x10] sm:$0xf]
        %v726 = vld [vmem:[%s5 + $0x14] sm:$0xf]
        %v727 = vld [vmem:[%s5 + $0x18] sm:$0xf]
        %v728 = vld [vmem:[%s5 + $0x1c] sm:$0xf]
        %v737 = vunpack.c.l.b16 %v721
        %v738 = vunpack.c.l.b16 %v722
        %v739 = vunpack.c.l.b16 %v723
        %v740 = vunpack.c.l.b16 %v724
        %v741 = vunpack.c.l.b16 %v725
        %v742 = vunpack.c.l.b16 %v726
        %v743 = vunpack.c.l.b16 %v727
        %v744 = vunpack.c.l.b16 %v728
        %v745 = vpack.c.b16 %v738, %v737
        %v746 = vpack.c.b16 %v740, %v739
        %v747 = vpack.c.b16 %v742, %v741
        %v748 = vpack.c.b16 %v744, %v743
        %vm753 = vcmask 523264
        %v755 = vsel %vm753, %v720, 0
        %757 = vmatprep.subr.bf16.mxu0 0
        %758 = vmatpush1.bf16.msra.mxu0 %v745
        %759 = vmatprep.subr.bf16.mxu0 0
        %760 = vmatpush1.bf16.msra.mxu0 %v746
        %761 = vmatprep.subr.bf16.mxu0 0
        %762 = vmatpush1.bf16.msra.mxu0 %v747
        %763 = vmatprep.subr.bf16.mxu0 0
        %764 = vmatpush1.bf16.msra.mxu0 %v748
        %765 = vmatprep.subr.bf16.mxu0 0
        %766 = vmatpush1.bf16.msra.mxu0 0
        %767 = vmatprep.subr.bf16.mxu0 0
        %768 = vmatpush1.bf16.msra.mxu0 0
        %769 = vmatprep.subr.bf16.mxu0 0
        %770 = vmatpush1.bf16.msra.mxu0 0
        %771 = vmatprep.subr.bf16.mxu0 0
        %772 = vmatpush1.bf16.msra.mxu0 0
        %773 = vmatprep.subr.bf16.mxu0 0
        %774 = vmatpush1.bf16.msra.mxu0 0
        %775 = vmatprep.subr.bf16.mxu0 0
        %776 = vmatpush1.bf16.msra.mxu0 0
        %777 = vmatprep.subr.bf16.mxu0 0
        %778 = vmatpush1.bf16.msra.mxu0 0
        %779 = vmatprep.subr.bf16.mxu0 0
        %780 = vmatpush1.bf16.msra.mxu0 0
        %781 = vmatprep.subr.bf16.mxu0 0
        %782 = vmatpush1.bf16.msra.mxu0 0
        %783 = vmatprep.subr.bf16.mxu0 0
        %784 = vmatpush1.bf16.msra.mxu0 0
        %785 = vmatprep.subr.bf16.mxu0 0
        %786 = vmatpush1.bf16.msra.mxu0 0
        %787 = vmatprep.subr.bf16.mxu0 0
        %788 = vmatpush1.bf16.msra.mxu0 0
        %789 = vmatprep.mubr.bf16.mxu0 0
        %790 = vmatmul.mubr.bf16.gmra.mrb[0].mxu0 %v755
        %v791 = vpop.f32.mrb[0].mxu0
        %v792 = vadd.f32 0.0, %v791
        %v793 = vpop.f32.mrb[0].mxu0
        %v794 = vpop.f32.mrb[0].mxu0
        %v795 = vpop.f32.mrb[0].mxu0
        %796 = vdwg.mxu0
        %v797 = vld [vmem:[%s6] sm:$0xf]
        %v798 = vld [vmem:[%s6 + $0x4] sm:$0xf]
        %v799 = vld [vmem:[%s6 + $0x8] sm:$0xf]
        %v800 = vld [vmem:[%s6 + $0xc] sm:$0xf]
        %v801 = vld [vmem:[%s6 + $0x10] sm:$0xf]
        %v802 = vld [vmem:[%s6 + $0x14] sm:$0xf]
        %v803 = vld [vmem:[%s6 + $0x18] sm:$0xf]
        %v804 = vld [vmem:[%s6 + $0x1c] sm:$0xf]
        %v813 = vunpack.c.l.b16 %v797
        %v814 = vunpack.c.l.b16 %v798
        %v815 = vunpack.c.l.b16 %v799
        %v816 = vunpack.c.l.b16 %v800
        %v817 = vunpack.c.l.b16 %v801
        %v818 = vunpack.c.l.b16 %v802
        %v819 = vunpack.c.l.b16 %v803
        %v820 = vunpack.c.l.b16 %v804
        %v821 = vpack.c.b16 %v814, %v813
        %v822 = vpack.c.b16 %v816, %v815
        %v823 = vpack.c.b16 %v818, %v817
        %v824 = vpack.c.b16 %v820, %v819
        %829 = vmatprep.subr.bf16.mxu0 0
        %830 = vmatpush1.bf16.msra.mxu0 %v821
        %831 = vmatprep.subr.bf16.mxu0 0
        %832 = vmatpush1.bf16.msra.mxu0 %v822
        %833 = vmatprep.subr.bf16.mxu0 0
        %834 = vmatpush1.bf16.msra.mxu0 %v823
        %835 = vmatprep.subr.bf16.mxu0 0
        %836 = vmatpush1.bf16.msra.mxu0 %v824
        %837 = vmatprep.subr.bf16.mxu0 0
        %838 = vmatpush1.bf16.msra.mxu0 0
        %839 = vmatprep.subr.bf16.mxu0 0
        %840 = vmatpush1.bf16.msra.mxu0 0
        %841 = vmatprep.subr.bf16.mxu0 0
        %842 = vmatpush1.bf16.msra.mxu0 0
        %843 = vmatprep.subr.bf16.mxu0 0
        %844 = vmatpush1.bf16.msra.mxu0 0
        %845 = vmatprep.subr.bf16.mxu0 0
        %846 = vmatpush1.bf16.msra.mxu0 0
        %847 = vmatprep.subr.bf16.mxu0 0
        %848 = vmatpush1.bf16.msra.mxu0 0
        %849 = vmatprep.subr.bf16.mxu0 0
        %850 = vmatpush1.bf16.msra.mxu0 0
        %851 = vmatprep.subr.bf16.mxu0 0
        %852 = vmatpush1.bf16.msra.mxu0 0
        %853 = vmatprep.subr.bf16.mxu0 0
        %854 = vmatpush1.bf16.msra.mxu0 0
        %855 = vmatprep.subr.bf16.mxu0 0
        %856 = vmatpush1.bf16.msra.mxu0 0
        %857 = vmatprep.subr.bf16.mxu0 0
        %858 = vmatpush1.bf16.msra.mxu0 0
        %859 = vmatprep.subr.bf16.mxu0 0
        %860 = vmatpush1.bf16.msra.mxu0 0
        %861 = vmatprep.mubr.bf16.mxu0 0
        %862 = vmatmul.mubr.bf16.gmra.mrb[0].mxu0 %v755
        %v863 = vpop.f32.mrb[0].mxu0
        %v864 = vadd.f32 0.0, %v863
        %v865 = vpop.f32.mrb[0].mxu0
        %v866 = vpop.f32.mrb[0].mxu0
        %v867 = vpop.f32.mrb[0].mxu0
        %868 = vdwg.mxu0
        %v869 = vld [vmem:[%s7] sm:$0xf]
        %v870 = vld [vmem:[%s7 + $0x4] sm:$0xf]
        %v871 = vld [vmem:[%s7 + $0x8] sm:$0xf]
        %v872 = vld [vmem:[%s7 + $0xc] sm:$0xf]
        %v873 = vld [vmem:[%s7 + $0x10] sm:$0xf]
        %v874 = vld [vmem:[%s7 + $0x14] sm:$0xf]
        %v875 = vld [vmem:[%s7 + $0x18] sm:$0xf]
        %v876 = vld [vmem:[%s7 + $0x1c] sm:$0xf]
        %v877 = vld [vmem:[%s8] sm:$0x1]
        %v879 = vlaneseq
        %v880 = vshrl.u32 %v879, 7
        %v881 = vsub.s32 0, %v880
        %v882 = vrot.slane %v877, %v881
        %v892 = vunpack.c.l.b16 %v869
        %v893 = vunpack.c.l.b16 %v870
        %v894 = vunpack.c.l.b16 %v871
        %v895 = vunpack.c.l.b16 %v872
        %v896 = vunpack.c.l.b16 %v873
        %v897 = vunpack.c.l.b16 %v874
        %v898 = vunpack.c.l.b16 %v875
        %v899 = vunpack.c.l.b16 %v876
        %v900 = vpack.c.b16 %v893, %v892
        %v901 = vpack.c.b16 %v895, %v894
        %v902 = vpack.c.b16 %v897, %v896
        %v903 = vpack.c.b16 %v899, %v898
        %908 = vmatprep.subr.bf16.mxu0 0
        %909 = vmatpush1.bf16.msra.mxu0 %v900
        %910 = vmatprep.subr.bf16.mxu0 0
        %911 = vmatpush1.bf16.msra.mxu0 %v901
        %912 = vmatprep.subr.bf16.mxu0 0
        %913 = vmatpush1.bf16.msra.mxu0 %v902
        %914 = vmatprep.subr.bf16.mxu0 0
        %915 = vmatpush1.bf16.msra.mxu0 %v903
        %916 = vmatprep.subr.bf16.mxu0 0
        %917 = vmatpush1.bf16.msra.mxu0 0
        %918 = vmatprep.subr.bf16.mxu0 0
        %919 = vmatpush1.bf16.msra.mxu0 0
        %920 = vmatprep.subr.bf16.mxu0 0
        %921 = vmatpush1.bf16.msra.mxu0 0
        %922 = vmatprep.subr.bf16.mxu0 0
        %923 = vmatpush1.bf16.msra.mxu0 0
        %924 = vmatprep.subr.bf16.mxu0 0
        %925 = vmatpush1.bf16.msra.mxu0 0
        %926 = vmatprep.subr.bf16.mxu0 0
        %927 = vmatpush1.bf16.msra.mxu0 0
        %928 = vmatprep.subr.bf16.mxu0 0
        %929 = vmatpush1.bf16.msra.mxu0 0
        %930 = vmatprep.subr.bf16.mxu0 0
        %931 = vmatpush1.bf16.msra.mxu0 0
        %932 = vmatprep.subr.bf16.mxu0 0
        %933 = vmatpush1.bf16.msra.mxu0 0
        %934 = vmatprep.subr.bf16.mxu0 0
        %935 = vmatpush1.bf16.msra.mxu0 0
        %936 = vmatprep.subr.bf16.mxu0 0
        %937 = vmatpush1.bf16.msra.mxu0 0
        %938 = vmatprep.subr.bf16.mxu0 0
        %939 = vmatpush1.bf16.msra.mxu0 0
        %940 = vmatprep.mubr.bf16.mxu0 0
        %941 = vmatmul.mubr.bf16.gmra.mrb[0].mxu0 %v755
        %v942 = vpop.f32.mrb[0].mxu0
        %v943 = vadd.f32 %v882, %v942
        %v944 = vpop.f32.mrb[0].mxu0
        %v945 = vpop.f32.mrb[0].mxu0
        %v946 = vpop.f32.mrb[0].mxu0
        %947 = vdwg.mxu0
        %v948 = vmax.f32 %v943, 0.0
        %v949 = vand.u32 2147483647, %v943
        %v950 = vsub.f32 0.0, %v949
        %v951 = vmul.f32 %v950, 1.442695
        %v952 = vpow.pop %v951
        %v953 = vadd.f32 %v952, 1.0
        %v954 = vlog2.pop %v953
        %v955 = vmul.f32 %v954, 0.6931472
        %v956 = vadd.f32 %v948, %v955
        %v957 = vld [vmem:[%s9] sm:$0x1]
        %v958 = vmul.f32 %v957, 1.442695
        %v959 = vpow.pop %v958
        %v960 = vsub.f32 0.0, %v959
        %v962 = vlaneseq
        %v963 = vshrl.u32 %v962, 7
        %v964 = vsub.s32 0, %v963
        %v965 = vrot.slane %v960, %v964
        %v967 = vmul.f32 %v956, %v965
        %v968 = vlaneseq
        %v969 = vshrl.u32 %v968, 7
        %v970 = vlaneseq
        %v971 = vand.u32 %v970, 127
        %vm972 = vcmp.ge.s32.totalorder %v969, %v971
        %v973 = vsel %vm972, 1, 0
        %v974 = vcvt.s32.f32 %v973
        %vm975 = vcmp.le.s32.totalorder %v969, %v971
        %v976 = vsel %vm975, 1, 0
        %v977 = vcvt.s32.f32 %v976
        %vm978 = vcmask 64512
        %v980 = vsel %vm978, %v974, 0
        %982 = vmatprep.subr.mxu0 0.0
        %983 = vmatpush1.msra.mxu0 %v967
        %984 = vmatprep.subr.mxu0 0.0
        %985 = vmatpush1.msra.mxu0 0.0
        %986 = vmatprep.subr.mxu0 0.0
        %987 = vmatpush1.msra.mxu0 0.0
        %988 = vmatprep.subr.mxu0 0.0
        %989 = vmatpush1.msra.mxu0 0.0
        %990 = vmatprep.subr.mxu0 0.0
        %991 = vmatpush1.msra.mxu0 0.0
        %992 = vmatprep.subr.mxu0 0.0
        %993 = vmatpush1.msra.mxu0 0.0
        %994 = vmatprep.subr.mxu0 0.0
        %995 = vmatpush1.msra.mxu0 0.0
        %996 = vmatprep.subr.mxu0 0.0
        %997 = vmatpush1.msra.mxu0 0.0
        %998 = vmatprep.subr.mxu0 0.0
        %999 = vmatpush1.msra.mxu0 0.0
        %1000 = vmatprep.subr.mxu0 0.0
        %1001 = vmatpush1.msra.mxu0 0.0
        %1002 = vmatprep.subr.mxu0 0.0
        %1003 = vmatpush1.msra.mxu0 0.0
        %1004 = vmatprep.subr.mxu0 0.0
        %1005 = vmatpush1.msra.mxu0 0.0
        %1006 = vmatprep.subr.mxu0 0.0
        %1007 = vmatpush1.msra.mxu0 0.0
        %1008 = vmatprep.subr.mxu0 0.0
        %1009 = vmatpush1.msra.mxu0 0.0
        %1010 = vmatprep.subr.mxu0 0.0
        %1011 = vmatpush1.msra.mxu0 0.0
        %1012 = vmatprep.subr.mxu0 0.0
        %1013 = vmatpush1.msra.mxu0 0.0
        %1014 = vmatprep.subr.mxu0 0.0
        %1015 = vmatpush1.msra.mxu0 0.0
        %1016 = vmatprep.subr.mxu0 0.0
        %1017 = vmatpush1.msra.mxu0 0.0
        %1018 = vmatprep.subr.mxu0 0.0
        %1019 = vmatpush1.msra.mxu0 0.0
        %1020 = vmatprep.subr.mxu0 0.0
        %1021 = vmatpush1.msra.mxu0 0.0
        %1022 = vmatprep.subr.mxu0 0.0
        %1023 = vmatpush1.msra.mxu0 0.0
        %1024 = vmatprep.subr.mxu0 0.0
        %1025 = vmatpush1.msra.mxu0 0.0
        %1026 = vmatprep.subr.mxu0 0.0
        %1027 = vmatpush1.msra.mxu0 0.0
        %1028 = vmatprep.subr.mxu0 0.0
        %1029 = vmatpush1.msra.mxu0 0.0
        %1030 = vmatprep.subr.mxu0 0.0
        %1031 = vmatpush1.msra.mxu0 0.0
        %1032 = vmatprep.subr.mxu0 0.0
        %1033 = vmatpush1.msra.mxu0 0.0
        %1034 = vmatprep.subr.mxu0 0.0
        %1035 = vmatpush1.msra.mxu0 0.0
        %1036 = vmatprep.subr.mxu0 0.0
        %1037 = vmatpush1.msra.mxu0 0.0
        %1038 = vmatprep.subr.mxu0 0.0
        %1039 = vmatpush1.msra.mxu0 0.0
        %1040 = vmatprep.subr.mxu0 0.0
        %1041 = vmatpush1.msra.mxu0 0.0
        %1042 = vmatprep.subr.mxu0 0.0
        %1043 = vmatpush1.msra.mxu0 0.0
        %1044 = vmatprep.subr.mxu0 0.0
        %1045 = vmatpush1.msra.mxu0 0.0
        %1046 = vmatprep.mubr.f32.mxu0 0.0
        %1047 = vmatmul.mubr.f32.gmra.mrb[0].mxu0 %v980
        %v1048 = vpop.f32.mrb[0].mxu0
        %v1049 = vadd.f32 0.0, %v1048
        %v1050 = vpop.f32.mrb[0].mxu0
        %1051 = vdwg.mxu0
        %1052 = vxpose.xlu0.b32.start [1/16] %v967, 128
        %1053 = vxpose.xlu0.b32.cont [2/16] 0.0, 128
        %1054 = vxpose.xlu0.b32.cont [3/16] 0.0, 128
        %1055 = vxpose.xlu0.b32.cont [4/16] 0.0, 128
        %1056 = vxpose.xlu0.b32.cont [5/16] 0.0, 128
        %1057 = vxpose.xlu0.b32.cont [6/16] 0.0, 128
        %1058 = vxpose.xlu0.b32.cont [7/16] 0.0, 128
        %1059 = vxpose.xlu0.b32.cont [8/16] 0.0, 128
        %1060 = vxpose.xlu0.b32.cont [9/16] 0.0, 128
        %1061 = vxpose.xlu0.b32.cont [10/16] 0.0, 128
        %1062 = vxpose.xlu0.b32.cont [11/16] 0.0, 128
        %1063 = vxpose.xlu0.b32.cont [12/16] 0.0, 128
        %1064 = vxpose.xlu0.b32.cont [13/16] 0.0, 128
        %1065 = vxpose.xlu0.b32.cont [14/16] 0.0, 128
        %1066 = vxpose.xlu0.b32.cont [15/16] 0.0, 128
        %1067 = vxpose.xlu0.b32.end [16/16] 0.0, 128
        %v1068 = vpop.trf.xlu0
        %v1069 = vpop.trf.xlu0
        %v1070 = vpop.trf.xlu0
        %v1071 = vpop.trf.xlu0
        %v1072 = vpop.trf.xlu0
        %v1073 = vpop.trf.xlu0
        %v1074 = vpop.trf.xlu0
        %v1075 = vpop.trf.xlu0
        %v1076 = vpop.trf.xlu0
        %v1077 = vpop.trf.xlu0
        %v1078 = vpop.trf.xlu0
        %v1079 = vpop.trf.xlu0
        %v1080 = vpop.trf.xlu0
        %v1081 = vpop.trf.xlu0
        %v1082 = vpop.trf.xlu0
        %v1083 = vpop.trf.xlu0
        %v1085 = vsel %vm978, %v1068, 0
        %1087 = vmatprep.subr.mxu0 0.0
        %1088 = vmatpush1.msra.mxu0 %v977
        %1089 = vmatprep.subr.mxu0 0.0
        %1090 = vmatpush1.msra.mxu0 0.0
        %1091 = vmatprep.subr.mxu0 0.0
        %1092 = vmatpush1.msra.mxu0 0.0
        %1093 = vmatprep.subr.mxu0 0.0
        %1094 = vmatpush1.msra.mxu0 0.0
        %1095 = vmatprep.subr.mxu0 0.0
        %1096 = vmatpush1.msra.mxu0 0.0
        %1097 = vmatprep.subr.mxu0 0.0
        %1098 = vmatpush1.msra.mxu0 0.0
        %1099 = vmatprep.subr.mxu0 0.0
        %1100 = vmatpush1.msra.mxu0 0.0
        %1101 = vmatprep.subr.mxu0 0.0
        %1102 = vmatpush1.msra.mxu0 0.0
        %1103 = vmatprep.subr.mxu0 0.0
        %1104 = vmatpush1.msra.mxu0 0.0
        %1105 = vmatprep.subr.mxu0 0.0
        %1106 = vmatpush1.msra.mxu0 0.0
        %1107 = vmatprep.subr.mxu0 0.0
        %1108 = vmatpush1.msra.mxu0 0.0
        %1109 = vmatprep.subr.mxu0 0.0
        %1110 = vmatpush1.msra.mxu0 0.0
        %1111 = vmatprep.subr.mxu0 0.0
        %1112 = vmatpush1.msra.mxu0 0.0
        %1113 = vmatprep.subr.mxu0 0.0
        %1114 = vmatpush1.msra.mxu0 0.0
        %1115 = vmatprep.subr.mxu0 0.0
        %1116 = vmatpush1.msra.mxu0 0.0
        %1117 = vmatprep.subr.mxu0 0.0
        %1118 = vmatpush1.msra.mxu0 0.0
        %1119 = vmatprep.subr.mxu0 0.0
        %1120 = vmatpush1.msra.mxu0 0.0
        %1121 = vmatprep.subr.mxu0 0.0
        %1122 = vmatpush1.msra.mxu0 0.0
        %1123 = vmatprep.subr.mxu0 0.0
        %1124 = vmatpush1.msra.mxu0 0.0
        %1125 = vmatprep.subr.mxu0 0.0
        %1126 = vmatpush1.msra.mxu0 0.0
        %1127 = vmatprep.subr.mxu0 0.0
        %1128 = vmatpush1.msra.mxu0 0.0
        %1129 = vmatprep.subr.mxu0 0.0
        %1130 = vmatpush1.msra.mxu0 0.0
        %1131 = vmatprep.subr.mxu0 0.0
        %1132 = vmatpush1.msra.mxu0 0.0
        %1133 = vmatprep.subr.mxu0 0.0
        %1134 = vmatpush1.msra.mxu0 0.0
        %1135 = vmatprep.subr.mxu0 0.0
        %1136 = vmatpush1.msra.mxu0 0.0
        %1137 = vmatprep.subr.mxu0 0.0
        %1138 = vmatpush1.msra.mxu0 0.0
        %1139 = vmatprep.subr.mxu0 0.0
        %1140 = vmatpush1.msra.mxu0 0.0
        %1141 = vmatprep.subr.mxu0 0.0
        %1142 = vmatpush1.msra.mxu0 0.0
        %1143 = vmatprep.subr.mxu0 0.0
        %1144 = vmatpush1.msra.mxu0 0.0
        %1145 = vmatprep.subr.mxu0 0.0
        %1146 = vmatpush1.msra.mxu0 0.0
        %1147 = vmatprep.subr.mxu0 0.0
        %1148 = vmatpush1.msra.mxu0 0.0
        %1149 = vmatprep.subr.mxu0 0.0
        %1150 = vmatpush1.msra.mxu0 0.0
        %1151 = vmatprep.mubr.f32.mxu0 0.0
        %1152 = vmatmul.mubr.f32.gmra.mrb[0].mxu0 %v1085
        %v1153 = vpop.f32.mrb[0].mxu0
        %v1154 = vadd.f32 0.0, %v1153
        %v1155 = vpop.f32.mrb[0].mxu0
        %1156 = vdwg.mxu0
        %v1157 = vmul.f32 %v1049, 1.442695
        %v1158 = vpow.pop %v1157
        %v1159 = vlaneseq
        %v1160 = vshrl.u32 %v1159, 7
        %v1161 = vsub.s32 7, %v1160
        %v1162 = vrot.slane %v1049, %v1161
        %v1163 = vsub.f32 %v1162, %v1049
        %v1164 = vmul.f32 %v1163, 1.442695
        %v1165 = vpow.pop %v1164
        %v1166 = vpack.c.bf16 %v864, %v864
        %v1167 = vpack.c.bf16 %v792, %v792
        %v1168 = vld [vmem:[%s10] sm:$0x1]
        %vm1169 = vcmask 130048
        %v1171 = vsel %vm1169, %v1166, 0
        %v1174 = vsel %vm1169, %v1167, 0
        %1176 = vmatprep.subr.bf16.mxu0 0
        %1177 = vmatpush1.bf16.xpose.msra.mxu0 %v1174
        %1178 = vmatprep.subr.bf16.mxu0 0
        %1179 = vmatpush1.bf16.xpose.msra.mxu0 0
        %1180 = vmatprep.subr.bf16.mxu0 0
        %1181 = vmatpush1.bf16.xpose.msra.mxu0 0
        %1182 = vmatprep.subr.bf16.mxu0 0
        %1183 = vmatpush1.bf16.xpose.msra.mxu0 0
        %1184 = vmatprep.subr.bf16.mxu0 0
        %1185 = vmatpush1.bf16.xpose.msra.mxu0 0
        %1186 = vmatprep.subr.bf16.mxu0 0
        %1187 = vmatpush1.bf16.xpose.msra.mxu0 0
        %1188 = vmatprep.subr.bf16.mxu0 0
        %1189 = vmatpush1.bf16.xpose.msra.mxu0 0
        %1190 = vmatprep.subr.bf16.mxu0 0
        %1191 = vmatpush1.bf16.xpose.msra.mxu0 0
        %1192 = vmatprep.subr.bf16.mxu0 0
        %1193 = vmatpush1.bf16.xpose.msra.mxu0 0
        %1194 = vmatprep.subr.bf16.mxu0 0
        %1195 = vmatpush1.bf16.xpose.msra.mxu0 0
        %1196 = vmatprep.subr.bf16.mxu0 0
        %1197 = vmatpush1.bf16.xpose.msra.mxu0 0
        %1198 = vmatprep.subr.bf16.mxu0 0
        %1199 = vmatpush1.bf16.xpose.msra.mxu0 0
        %1200 = vmatprep.subr.bf16.mxu0 0
        %1201 = vmatpush1.bf16.xpose.msra.mxu0 0
        %1202 = vmatprep.subr.bf16.mxu0 0
        %1203 = vmatpush1.bf16.xpose.msra.mxu0 0
        %1204 = vmatprep.subr.bf16.mxu0 0
        %1205 = vmatpush1.bf16.xpose.msra.mxu0 0
        %1206 = vmatprep.subr.bf16.mxu0 0
        %1207 = vmatpush1.bf16.xpose.msra.mxu0 0
        %1208 = vmatprep.mubr.bf16.mxu0 0
        %1209 = vmatmul.mubr.bf16.gmra.mrb[0].mxu0 %v1171
        %v1210 = vpop.f32.mrb[0].mxu0
        %v1211 = vadd.f32 0.0, %v1210
        %v1212 = vpop.f32.mrb[0].mxu0
        %v1213 = vpop.f32.mrb[0].mxu0
        %v1214 = vpop.f32.mrb[0].mxu0
        %1215 = vdwg.mxu0
        %v1216 = vld [vmem:[#allocation2] sm:$0xff]
        %v1217 = vld [vmem:[#allocation2 + $0x8] sm:$0xff]
        %v1218 = vpack.c.bf16 %v1217, %v1216
        %1219 = vmatprep.subr.bf16.mxu0 0
        %1220 = vmatpush1.bf16.msra.mxu0 %v1218
        %1221 = vmatprep.subr.bf16.mxu0 0
        %1222 = vmatpush1.bf16.msra.mxu0 0
        %1223 = vmatprep.subr.bf16.mxu0 0
        %1224 = vmatpush1.bf16.msra.mxu0 0
        %1225 = vmatprep.subr.bf16.mxu0 0
        %1226 = vmatpush1.bf16.msra.mxu0 0
        %1227 = vmatprep.subr.bf16.mxu0 0
        %1228 = vmatpush1.bf16.msra.mxu0 0
        %1229 = vmatprep.subr.bf16.mxu0 0
        %1230 = vmatpush1.bf16.msra.mxu0 0
        %1231 = vmatprep.subr.bf16.mxu0 0
        %1232 = vmatpush1.bf16.msra.mxu0 0
        %1233 = vmatprep.subr.bf16.mxu0 0
        %1234 = vmatpush1.bf16.msra.mxu0 0
        %1235 = vmatprep.subr.bf16.mxu0 0
        %1236 = vmatpush1.bf16.msra.mxu0 0
        %1237 = vmatprep.subr.bf16.mxu0 0
        %1238 = vmatpush1.bf16.msra.mxu0 0
        %1239 = vmatprep.subr.bf16.mxu0 0
        %1240 = vmatpush1.bf16.msra.mxu0 0
        %1241 = vmatprep.subr.bf16.mxu0 0
        %1242 = vmatpush1.bf16.msra.mxu0 0
        %1243 = vmatprep.subr.bf16.mxu0 0
        %1244 = vmatpush1.bf16.msra.mxu0 0
        %1245 = vmatprep.subr.bf16.mxu0 0
        %1246 = vmatpush1.bf16.msra.mxu0 0
        %1247 = vmatprep.subr.bf16.mxu0 0
        %1248 = vmatpush1.bf16.msra.mxu0 0
        %1249 = vmatprep.subr.bf16.mxu0 0
        %1250 = vmatpush1.bf16.msra.mxu0 0
        %1251 = vmatprep.mubr.bf16.mxu0 0
        %1252 = vmatmul.mubr.bf16.gmra.mrb[0].mxu0 %v1171
        %v1253 = vpop.f32.mrb[0].mxu0
        %v1254 = vadd.f32 0.0, %v1253
        %v1255 = vpop.f32.mrb[0].mxu0
        %v1256 = vpop.f32.mrb[0].mxu0
        %v1257 = vpop.f32.mrb[0].mxu0
        %1258 = vdwg.mxu0
        %1260 = vset.pattern.permute.xlu0 0
        %1261 = vperm.xlu0 %1260, %v1049
        %v1262 = vpop.permute.xlu0 %1261
        %v1264 = vlaneseq
        %v1265 = vshrl.u32 %v1264, 7
        %v1266 = vsub.s32 0, %v1265
        %v1267 = vrot.slane %v1154, %v1266
        %v1268 = vsub.f32 %v1262, %v1267
        %v1269 = vsel %vm972, %v1268, -1e+30
        %v1270 = vmul.f32 %v1269, 1.442695
        %v1271 = vpow.pop %v1270
        %v1272 = vmul.f32 %v1211, %v1271
        %v1273 = vpack.c.bf16 %v1272, %v1272
        %1275 = vset.pattern.permute.xlu0 0
        %1276 = vperm.xlu0 %1275, %v956
        %v1277 = vpop.permute.xlu0 %1276
        %v1279 = vmul.f32 %v1277, %v715
        %1281 = vset.pattern.permute.xlu0 0
        %1282 = vperm.xlu0 %1281, %v1165
        %v1283 = vpop.permute.xlu0 %1282
        %v1285 = vmul.f32 %v1283, %v1279
        %1286 = vst.msk [vmem:[#allocation5] sm:$0xff] %vm624, %v1285
        %v1287 = vpack.c.bf16 %v1279, %v1279
        %1289 = vset.pattern.permute.xlu0 0
        %1290 = vperm.xlu0 %1289, %v1158
        %v1291 = vpop.permute.xlu0 %1290
        %v1293 = vmul.f32 %v1291, %v1254
        %v1295 = vsel %vm978, %v1273, 0
        %vm1297 = vcmask 1043456
        %v1299 = vsel %vm1297, %v1287, 0
        %1301 = vmatprep.subr.bf16.mxu0 0
        %1302 = vmatpush1.bf16.msra.mxu0 %v1299
        %1303 = vmatprep.subr.bf16.mxu0 0
        %1304 = vmatpush1.bf16.msra.mxu0 0
        %1305 = vmatprep.subr.bf16.mxu0 0
        %1306 = vmatpush1.bf16.msra.mxu0 0
        %1307 = vmatprep.subr.bf16.mxu0 0
        %1308 = vmatpush1.bf16.msra.mxu0 0
        %1309 = vmatprep.subr.bf16.mxu0 0
        %1310 = vmatpush1.bf16.msra.mxu0 0
        %1311 = vmatprep.subr.bf16.mxu0 0
        %1312 = vmatpush1.bf16.msra.mxu0 0
        %1313 = vmatprep.subr.bf16.mxu0 0
        %1314 = vmatpush1.bf16.msra.mxu0 0
        %1315 = vmatprep.subr.bf16.mxu0 0
        %1316 = vmatpush1.bf16.msra.mxu0 0
        %1317 = vmatprep.subr.bf16.mxu0 0
        %1318 = vmatpush1.bf16.msra.mxu0 0
        %1319 = vmatprep.subr.bf16.mxu0 0
        %1320 = vmatpush1.bf16.msra.mxu0 0
        %1321 = vmatprep.subr.bf16.mxu0 0
        %1322 = vmatpush1.bf16.msra.mxu0 0
        %1323 = vmatprep.subr.bf16.mxu0 0
        %1324 = vmatpush1.bf16.msra.mxu0 0
        %1325 = vmatprep.subr.bf16.mxu0 0
        %1326 = vmatpush1.bf16.msra.mxu0 0
        %1327 = vmatprep.subr.bf16.mxu0 0
        %1328 = vmatpush1.bf16.msra.mxu0 0
        %1329 = vmatprep.subr.bf16.mxu0 0
        %1330 = vmatpush1.bf16.msra.mxu0 0
        %1331 = vmatprep.subr.bf16.mxu0 0
        %1332 = vmatpush1.bf16.msra.mxu0 0
        %1333 = vmatprep.mubr.bf16.mxu0 0
        %1334 = vmatmul.mubr.bf16.gmra.mrb[0].mxu0 %v1295
        %v1335 = vpop.f32.mrb[0].mxu0
        %v1336 = vadd.f32 %v1293, %v1335
        %v1337 = vpop.f32.mrb[0].mxu0
        %v1338 = vpop.f32.mrb[0].mxu0
        %v1339 = vpop.f32.mrb[0].mxu0
        %1340 = vdwg.mxu0
        %v1342 = vlaneseq
        %v1343 = vshrl.u32 %v1342, 7
        %v1344 = vsub.s32 0, %v1343
        %v1345 = vrot.slane %v1168, %v1344
        %v1347 = vmul.f32 %v1345, %v715
        %v1348 = vadd.f32 %v1336, %v1347
        %1349 = vst.msk [vmem:[#allocation4] sm:$0xff] %vm624, %v1348
        %1350 = vset.pattern.permute.xlu0 1
        %1351 = vperm.xlu0 %1350, %v1049
        %v1352 = vpop.permute.xlu0 %1351
        %v1354 = vlaneseq
        %v1355 = vshrl.u32 %v1354, 7
        %v1356 = vsub.s32 1, %v1355
        %v1357 = vrot.slane %v1154, %v1356
        %v1358 = vsub.f32 %v1352, %v1357
        %v1359 = vsel %vm972, %v1358, -1e+30
        %v1360 = vmul.f32 %v1359, 1.442695
        %v1361 = vpow.pop %v1360
        %v1362 = vmul.f32 %v1211, %v1361
        %v1363 = vpack.c.bf16 %v1362, %v1362
        %1364 = vset.pattern.permute.xlu0 1
        %1365 = vperm.xlu0 %1364, %v956
        %v1366 = vpop.permute.xlu0 %1365
        %v1368 = vmul.f32 %v1366, %v715
        %1369 = vset.pattern.permute.xlu0 1
        %1370 = vperm.xlu0 %1369, %v1165
        %v1371 = vpop.permute.xlu0 %1370
        %v1373 = vmul.f32 %v1371, %v1368
        %vm1374 = vcmask 523520
        %1375 = vst.msk [vmem:[#allocation5] sm:$0xff] %vm1374, %v1373
        %v1376 = vpack.c.bf16 %v1368, %v1368
        %1377 = vset.pattern.permute.xlu0 1
        %1378 = vperm.xlu0 %1377, %v1158
        %v1379 = vpop.permute.xlu0 %1378
        %v1381 = vmul.f32 %v1379, %v1254
        %1383 = vrot.lane.b32.xlu0 %v1376, 96
        %v1384 = vpop.permute.xlu0 %1383
        %1386 = vrot.lane.b32.xlu0 %v1381, 96
        %v1387 = vpop.permute.xlu0 %1386
        %v1390 = vsel %vm978, %v1363, 0
        %v1393 = vsel %vm1297, %v1384, 0
        %1395 = vmatprep.subr.bf16.mxu0 0
        %1396 = vmatpush1.bf16.msra.mxu0 %v1393
        %1397 = vmatprep.subr.bf16.mxu0 0
        %1398 = vmatpush1.bf16.msra.mxu0 0
        %1399 = vmatprep.subr.bf16.mxu0 0
        %1400 = vmatpush1.bf16.msra.mxu0 0
        %1401 = vmatprep.subr.bf16.mxu0 0
        %1402 = vmatpush1.bf16.msra.mxu0 0
        %1403 = vmatprep.subr.bf16.mxu0 0
        %1404 = vmatpush1.bf16.msra.mxu0 0
        %1405 = vmatprep.subr.bf16.mxu0 0
        %1406 = vmatpush1.bf16.msra.mxu0 0
        %1407 = vmatprep.subr.bf16.mxu0 0
        %1408 = vmatpush1.bf16.msra.mxu0 0
        %1409 = vmatprep.subr.bf16.mxu0 0
        %1410 = vmatpush1.bf16.msra.mxu0 0
        %1411 = vmatprep.subr.bf16.mxu0 0
        %1412 = vmatpush1.bf16.msra.mxu0 0
        %1413 = vmatprep.subr.bf16.mxu0 0
        %1414 = vmatpush1.bf16.msra.mxu0 0
        %1415 = vmatprep.subr.bf16.mxu0 0
        %1416 = vmatpush1.bf16.msra.mxu0 0
        %1417 = vmatprep.subr.bf16.mxu0 0
        %1418 = vmatpush1.bf16.msra.mxu0 0
        %1419 = vmatprep.subr.bf16.mxu0 0
        %1420 = vmatpush1.bf16.msra.mxu0 0
        %1421 = vmatprep.subr.bf16.mxu0 0
        %1422 = vmatpush1.bf16.msra.mxu0 0
        %1423 = vmatprep.subr.bf16.mxu0 0
        %1424 = vmatpush1.bf16.msra.mxu0 0
        %1425 = vmatprep.subr.bf16.mxu0 0
        %1426 = vmatpush1.bf16.msra.mxu0 0
        %1427 = vmatprep.mubr.bf16.mxu0 0
        %1428 = vmatmul.mubr.bf16.gmra.mrb[0].mxu0 %v1390
        %v1429 = vpop.f32.mrb[0].mxu0
        %v1430 = vadd.f32 %v1387, %v1429
        %v1431 = vpop.f32.mrb[0].mxu0
        %v1432 = vpop.f32.mrb[0].mxu0
        %v1433 = vpop.f32.mrb[0].mxu0
        %1434 = vdwg.mxu0
        %1436 = vrot.lane.b32.xlu0 %v1347, 96
        %v1437 = vpop.permute.xlu0 %1436
        %v1439 = vadd.f32 %v1430, %v1437
        %1441 = vrot.lane.b32.xlu0 %v1439, 32
        %v1442 = vpop.permute.xlu0 %1441
        %1444 = vst.msk [vmem:[#allocation4] sm:$0xff] %vm1374, %v1442
        %v1445 = vld [vmem:[#allocation5] sm:$0xff]
        %v1446 = vpack.c.bf16 %v1445, %v1445
        %1447 = vxpose.xlu0.c.b16.start [1/8] %v1167, 128
        %1448 = vxpose.xlu0.c.b16.cont [2/8] 0, 128
        %1449 = vxpose.xlu0.c.b16.cont [3/8] 0, 128
        %1450 = vxpose.xlu0.c.b16.cont [4/8] 0, 128
        %1451 = vxpose.xlu0.c.b16.cont [5/8] 0, 128
        %1452 = vxpose.xlu0.c.b16.cont [6/8] 0, 128
        %1453 = vxpose.xlu0.c.b16.cont [7/8] 0, 128
        %1454 = vxpose.xlu0.c.b16.end [8/8] 0, 128
        %v1455 = vpop.trf.xlu0
        %v1456 = vpop.trf.xlu0
        %v1457 = vpop.trf.xlu0
        %v1458 = vpop.trf.xlu0
        %v1459 = vpop.trf.xlu0
        %v1460 = vpop.trf.xlu0
        %v1461 = vpop.trf.xlu0
        %v1462 = vpop.trf.xlu0
        %v1464 = vsel %vm978, %v1455, 0
        %v1467 = vsel %vm1297, %v1446, 0
        %1469 = vmatprep.subr.bf16.mxu0 0
        %1470 = vmatpush1.bf16.msra.mxu0 %v1467
        %1471 = vmatprep.subr.bf16.mxu0 0
        %1472 = vmatpush1.bf16.msra.mxu0 0
        %1473 = vmatprep.subr.bf16.mxu0 0
        %1474 = vmatpush1.bf16.msra.mxu0 0
        %1475 = vmatprep.subr.bf16.mxu0 0
        %1476 = vmatpush1.bf16.msra.mxu0 0
        %1477 = vmatprep.subr.bf16.mxu0 0
        %1478 = vmatpush1.bf16.msra.mxu0 0
        %1479 = vmatprep.subr.bf16.mxu0 0
        %1480 = vmatpush1.bf16.msra.mxu0 0
        %1481 = vmatprep.subr.bf16.mxu0 0
        %1482 = vmatpush1.bf16.msra.mxu0 0
        %1483 = vmatprep.subr.bf16.mxu0 0
        %1484 = vmatpush1.bf16.msra.mxu0 0
        %1485 = vmatprep.subr.bf16.mxu0 0
        %1486 = vmatpush1.bf16.msra.mxu0 0
        %1487 = vmatprep.subr.bf16.mxu0 0
        %1488 = vmatpush1.bf16.msra.mxu0 0
        %1489 = vmatprep.subr.bf16.mxu0 0
        %1490 = vmatpush1.bf16.msra.mxu0 0
        %1491 = vmatprep.subr.bf16.mxu0 0
        %1492 = vmatpush1.bf16.msra.mxu0 0
        %1493 = vmatprep.subr.bf16.mxu0 0
        %1494 = vmatpush1.bf16.msra.mxu0 0
        %1495 = vmatprep.subr.bf16.mxu0 0
        %1496 = vmatpush1.bf16.msra.mxu0 0
        %1497 = vmatprep.subr.bf16.mxu0 0
        %1498 = vmatpush1.bf16.msra.mxu0 0
        %1499 = vmatprep.subr.bf16.mxu0 0
        %1500 = vmatpush1.bf16.msra.mxu0 0
        %1501 = vmatprep.mubr.bf16.mxu0 0
        %1502 = vmatmul.mubr.bf16.gmra.mrb[0].mxu0 %v1464
        %v1503 = vpop.f32.mrb[0].mxu0
        %v1504 = vadd.f32 0.0, %v1503
        %v1505 = vpop.f32.mrb[0].mxu0
        %v1506 = vpop.f32.mrb[0].mxu0
        %v1507 = vadd.f32 0.0, %v1506
        %v1508 = vpop.f32.mrb[0].mxu0
        %1509 = vdwg.mxu0
        %v1510 = vld [vmem:[#allocation2] sm:$0xff]
        %v1511 = vld [vmem:[#allocation2 + $0x8] sm:$0xff]
        %v1512 = vrot.slane %v1158, 7
        %s1513 = vtos %v1512
        %v1514 = vstv %s1513
        %v1516 = vmul.f32 %v1514, %v1510
        %v1517 = vmul.f32 %v1514, %v1511
        %v1518 = vadd.f32 %v1516, %v1504
        %v1519 = vadd.f32 %v1517, %v1507
        %1520 = vst.msk [vmem:[#allocation2] sm:$0xff] %vm624, %v1518
        %1521 = vst.msk [vmem:[#allocation2 + $0x8] sm:$0xff] %vm624, %v1519
        %v1522 = vld [vmem:[#allocation2] sm:$0xff]
        %v1523 = vld [vmem:[#allocation2 + $0x8] sm:$0xff]
        %1524 = vrot.lane.b32.xlu0 %v1512, 127
        %v1525 = vpop.permute.xlu0 %1524
        %s1526 = vtos %v1525
        %v1527 = vstv %s1526
        %v1529 = vmul.f32 %v1527, %v1522
        %v1530 = vmul.f32 %v1527, %v1523
        %v1531 = vadd.f32 %v1529, %v1504
        %v1532 = vadd.f32 %v1530, %v1507
        %1533 = vst.msk [vmem:[#allocation2] sm:$0xff] %vm1374, %v1531
        %1534 = vst.msk [vmem:[#allocation2 + $0x8] sm:$0xff] %vm1374, %v1532
        %v1535 = vld [vmem:[#allocation4] sm:$0xff]
        %1536 = vst.msk [vmem:[#allocation3 + $0x3] sm:$0xff] %vm753, %v715
        %v1537 = vld [vmem:[%s12] sm:$0x1]
        %v1539 = vlaneseq
        %v1540 = vshrl.u32 %v1539, 7
        %v1541 = vsub.s32 0, %v1540
        %v1542 = vrot.slane %v1537, %v1541
        %v1544 = vld [vmem:[#allocation3] sm:$0xff]
        %v1545 = vld [vmem:[%s11] sm:$0x1]
        %v1546 = vlaneseq
        %v1547 = vshrl.u32 %v1546, 7
        %v1548 = vsub.s32 0, %v1547
        %v1549 = vrot.slane %v1545, %v1548
        %v1550 = vmul.f32 %v1544, %v1549
        %v1551 = vadd.f32 %v1542, %v1550
        %v1552 = vld [vmem:[#allocation3 + $0x1] sm:$0xff]
        %v1553 = vld [vmem:[%s11 + $0x1] sm:$0x1]
        %v1554 = vlaneseq
        %v1555 = vshrl.u32 %v1554, 7
        %v1556 = vsub.s32 0, %v1555
        %v1557 = vrot.slane %v1553, %v1556
        %v1558 = vmul.f32 %v1552, %v1557
        %v1559 = vadd.f32 %v1551, %v1558
        %v1560 = vld [vmem:[#allocation3 + $0x2] sm:$0xff]
        %v1561 = vld [vmem:[%s11 + $0x2] sm:$0x1]
        %v1562 = vlaneseq
        %v1563 = vshrl.u32 %v1562, 7
        %v1564 = vsub.s32 0, %v1563
        %v1565 = vrot.slane %v1561, %v1564
        %v1566 = vmul.f32 %v1560, %v1565
        %v1567 = vadd.f32 %v1559, %v1566
        %v1568 = vld [vmem:[#allocation3 + $0x3] sm:$0xff]
        %v1569 = vld [vmem:[%s11 + $0x3] sm:$0x1]
        %v1570 = vlaneseq
        %v1571 = vshrl.u32 %v1570, 7
        %v1572 = vsub.s32 0, %v1571
        %v1573 = vrot.slane %v1569, %v1572
        %v1574 = vmul.f32 %v1568, %v1573
        %v1575 = vadd.f32 %v1567, %v1574
        %v1576 = vand.u32 2147483647, %v1575
        %v1577 = vsub.f32 0.0, %v1576
        %v1578 = vmul.f32 %v1577, 1.442695
        %v1579 = vpow.pop %v1578
        %v1580 = vadd.f32 %v1579, 1.0
        %v1581 = vrcp.pop %v1580
        %vm1582 = vcmp.ge.f32.partialorder %v1575, 0.0
        %v1583 = vmul.f32 %v1579, %v1581
        %v1584 = vsel %vm1582, %v1581, %v1583
        %v1585 = vmul.f32 %v1575, %v1584
        %v1586 = vld [vmem:[#allocation3 + $0x8] sm:$0x7]
        %vm1587 = vcmask 518144
        %1588 = vst.msk [vmem:[#allocation3] sm:$0x7] %vm1587, %v1586
        %v1589 = vand.u32 2147483647, %v1585
        %v1590 = vsub.f32 0.0, %v1589
        %v1591 = vmul.f32 %v1590, 1.442695
        %v1592 = vpow.pop %v1591
        %v1593 = vadd.f32 %v1592, 1.0
        %v1594 = vrcp.pop %v1593
        %vm1595 = vcmp.ge.f32.partialorder %v1585, 0.0
        %v1596 = vmul.f32 %v1592, %v1594
        %v1597 = vsel %vm1595, %v1594, %v1596
        %v1598 = vmul.f32 %v1535, %v1597
        %v1599 = vpack.c.bf16 %v1598, %v1598
        %v1600 = vld [vmem:[%s13] sm:$0xf]
        %v1601 = vld [vmem:[%s13 + $0x4] sm:$0xf]
        %v1602 = vld [vmem:[%s13 + $0x8] sm:$0xf]
        %v1603 = vld [vmem:[%s13 + $0xc] sm:$0xf]
        %v1604 = vld [vmem:[%s13 + $0x10] sm:$0xf]
        %v1605 = vld [vmem:[%s13 + $0x14] sm:$0xf]
        %v1606 = vld [vmem:[%s13 + $0x18] sm:$0xf]
        %v1607 = vld [vmem:[%s13 + $0x1c] sm:$0xf]
        %v1608 = vld [vmem:[%s14] sm:$0x1]
        %v1610 = vlaneseq
        %v1611 = vshrl.u32 %v1610, 7
        %v1612 = vsub.s32 0, %v1611
        %v1613 = vrot.slane %v1608, %v1612
        %v1623 = vunpack.c.l.b16 %v1600
        %v1624 = vunpack.c.l.b16 %v1601
        %v1625 = vunpack.c.l.b16 %v1602
        %v1626 = vunpack.c.l.b16 %v1603
        %v1627 = vunpack.c.l.b16 %v1604
        %v1628 = vunpack.c.l.b16 %v1605
        %v1629 = vunpack.c.l.b16 %v1606
        %v1630 = vunpack.c.l.b16 %v1607
        %v1631 = vpack.c.b16 %v1624, %v1623
        %v1632 = vpack.c.b16 %v1626, %v1625
        %v1633 = vpack.c.b16 %v1628, %v1627
        %v1634 = vpack.c.b16 %v1630, %v1629
        %v1640 = vsel %vm753, %v1599, 0
        %1642 = vmatprep.subr.bf16.mxu0 0
        %1643 = vmatpush1.bf16.msra.mxu0 %v1631
        %1644 = vmatprep.subr.bf16.mxu0 0
        %1645 = vmatpush1.bf16.msra.mxu0 %v1632
        %1646 = vmatprep.subr.bf16.mxu0 0
        %1647 = vmatpush1.bf16.msra.mxu0 %v1633
        %1648 = vmatprep.subr.bf16.mxu0 0
        %1649 = vmatpush1.bf16.msra.mxu0 %v1634
        %1650 = vmatprep.subr.bf16.mxu0 0
        %1651 = vmatpush1.bf16.msra.mxu0 0
        %1652 = vmatprep.subr.bf16.mxu0 0
        %1653 = vmatpush1.bf16.msra.mxu0 0
        %1654 = vmatprep.subr.bf16.mxu0 0
        %1655 = vmatpush1.bf16.msra.mxu0 0
        %1656 = vmatprep.subr.bf16.mxu0 0
        %1657 = vmatpush1.bf16.msra.mxu0 0
        %1658 = vmatprep.subr.bf16.mxu0 0
        %1659 = vmatpush1.bf16.msra.mxu0 0
        %1660 = vmatprep.subr.bf16.mxu0 0
        %1661 = vmatpush1.bf16.msra.mxu0 0
        %1662 = vmatprep.subr.bf16.mxu0 0
        %1663 = vmatpush1.bf16.msra.mxu0 0
        %1664 = vmatprep.subr.bf16.mxu0 0
        %1665 = vmatpush1.bf16.msra.mxu0 0
        %1666 = vmatprep.subr.bf16.mxu0 0
        %1667 = vmatpush1.bf16.msra.mxu0 0
        %1668 = vmatprep.subr.bf16.mxu0 0
        %1669 = vmatpush1.bf16.msra.mxu0 0
        %1670 = vmatprep.subr.bf16.mxu0 0
        %1671 = vmatpush1.bf16.msra.mxu0 0
        %1672 = vmatprep.subr.bf16.mxu0 0
        %1673 = vmatpush1.bf16.msra.mxu0 0
        %1674 = vmatprep.mubr.bf16.mxu0 0
        %1675 = vmatmul.mubr.bf16.gmra.mrb[0].mxu0 %v1640
        %v1676 = vpop.f32.mrb[0].mxu0
        %v1677 = vadd.f32 %v1613, %v1676
        %v1678 = vpop.f32.mrb[0].mxu0
        %v1679 = vpop.f32.mrb[0].mxu0
        %v1680 = vpop.f32.mrb[0].mxu0
        %1681 = vdwg.mxu0
        %v1682 = vadd.f32 %v1677, %v621
        %v1683 = vld [vmem:[%s15] sm:$0x1]
        %v1684 = vld [vmem:[%s16] sm:$0x1]
        %v1685 = vsel %vm624, %v1682, 0.0
        %1686 = vadd.xlane.f32.xlu0 %v1685
        %v1687 = vpop.xlane.xlu0 %1686
        %v1688 = vmul.f32 %v1687, %v628
        %v1689 = vsub.f32 %v1682, %v1688
        %v1690 = vmul.f32 %v1689, %v1689
        %v1691 = vsel %vm624, %v1690, 0.0
        %1692 = vadd.xlane.f32.xlu0 %v1691
        %v1693 = vpop.xlane.xlu0 %1692
        %v1694 = vmul.f32 %v1693, %v628
        %v1695 = vadd.f32 %v1694, 1e-05
        %v1696 = vrsqrt.pop %v1695
        %v1697 = vmul.f32 %v1689, %v1696
        %v1699 = vlaneseq
        %v1700 = vshrl.u32 %v1699, 7
        %v1701 = vsub.s32 0, %v1700
        %v1702 = vrot.slane %v1683, %v1701
        %v1704 = vmul.f32 %v1697, %v1702
        %v1706 = vlaneseq
        %v1707 = vshrl.u32 %v1706, 7
        %v1708 = vsub.s32 0, %v1707
        %v1709 = vrot.slane %v1684, %v1708
        %v1711 = vadd.f32 %v1704, %v1709
        %1712 = vst.msk [vmem:[%s594] sm:$0xff] %vm624, %v1711
        %p1713 = scmp.eq.s32.totalorder %s41, 1
        // Predicated region
        $region93: #{mamba2_forward.3} parent=87 // pred_check
          %p1714 = pneg %p1713
        $region94: #{mamba2_forward.3} parent=87 // pred_check_branch
          %1716 = sbr.rel (%p1714) target = $region96
        $region95: #{mamba2_forward.3} parent=87 // pred_region
          %v1717 = vld [vmem:[#allocation2] sm:$0xff]
          %v1718 = vld [vmem:[#allocation2 + $0x8] sm:$0xff]
          %1719 = vst.msk [vmem:[%s601] sm:$0xff] %vm753, %v1717
          %1720 = vst.msk [vmem:[%s601 + $0x8] sm:$0xff] %vm753, %v1718
        $region96: #{mamba2_forward.3} parent=87 // pred_fallthru
          _
        %s1721 = sand.u32 %s422, 1
        %s1722 = scalar_lea.sflag [#allocation7], %s1721
        %s1723 = sand.u32 %s422, 1
        %s1724 = smul.addr %s1723, 8
        %s1725 = scalar_lea.vmem [#allocation6], %s1724
        %s1726 = sand.u32 %s448, 1
        %s1727 = scalar_lea.sflag [#allocation9], %s1726
        %s1728 = sand.u32 %s448, 1
        %s1729 = smul.addr %s1728, 16
        %s1730 = scalar_lea.vmem [#allocation8], %s1729
        // Predicated region
        $region97: #{mamba2_forward.3} parent=87 // pred_check
          %p1731 = pneg %p432
        $region98: #{mamba2_forward.3} parent=87 // pred_check_branch
          %1733 = sbr.rel (%p1731) target = $region100
        $region99: #{mamba2_forward.3} parent=87 // pred_region
          %s1735 = ssub.s32 128, 128
          %1736 = vsyncadd %s1722, %s1735
          %s1737 = smul.addr %s40, 2
          %s1738 = sadd.s32 %s41, %s1737
          %s1739 = smul.addr %s1738, 128
          %s1740 = scalar_lea.hbm %s17, %s1739
          %s1742 = sshll.u32 %s1725, 4
          %s1743 = int_to_ptr.vmem [resolvable:$true] %s1742
          %1745 = dma.vmem_to_hbm [thread:$0]  %s1743, 128, %s1740, %s1722
        $region100: #{mamba2_forward.3} parent=87 // pred_fallthru
          _
        // Predicated region
        $region101: #{mamba2_forward.3} parent=87 // pred_check
          %p1746 = pneg %p458
        $region102: #{mamba2_forward.3} parent=87 // pred_check_branch
          %1748 = sbr.rel (%p1746) target = $region104
        $region103: #{mamba2_forward.3} parent=87 // pred_region
          %s1750 = ssub.s32 256, 256
          %1751 = vsyncadd %s1727, %s1750
          %s1752 = smul.addr %s40, 2
          %s1753 = smul.addr %s1752, 128
          %s1754 = scalar_lea.hbm %s18, %s1753
          %s1755 = sshll.u32 %s1730, 4
          %s1756 = int_to_ptr.vmem [resolvable:$true] %s1755
          %1761 = dma.vmem_to_hbm [thread:$0]  %s1756, 256, %s1754, %s1727, 128, 128, 8
        $region104: #{mamba2_forward.3} parent=87 // pred_fallthru
          _
      $region88: #{mamba2_forward.3} parent=5 // pred_fallthru
        _
      %p1762 = scmp.le.s32.totalorder 2, %s31
      // Predicated region
      $region105: #{mamba2_forward.3} parent=5 // pred_check
        %p1763 = pneg %p1762
      $region106: #{mamba2_forward.3} parent=5 // pred_check_branch
        %1765 = sbr.rel (%p1763) target = $region108
      $region107: #{mamba2_forward.3} parent=5 // pred_region
        %s1766 = ssub.s32 %s31, 2
        // Predicated region
        $region109: #{mamba2_forward.3} parent=107 // pred_check
          %p1767 = pneg %p438
        $region110: #{mamba2_forward.3} parent=107 // pred_check_branch
          %1769 = sbr.rel (%p1767) target = $region112
        $region111: #{mamba2_forward.3} parent=107 // pred_region
          %s1770 = sand.u32 %s423, 1
          %s1771 = scalar_lea.sflag [#allocation7], %s1770
          %s1772 = sand.u32 %s423, 1
          %s1773 = smul.addr %s1772, 8
          %s1774 = scalar_lea.vmem [#allocation6], %s1773
          %1775 = dma.done %s1771, 128
        $region112: #{mamba2_forward.3} parent=107 // pred_fallthru
          _
        // Predicated region
        $region113: #{mamba2_forward.3} parent=107 // pred_check
          %p1776 = pneg %p464
        $region114: #{mamba2_forward.3} parent=107 // pred_check_branch
          %1778 = sbr.rel (%p1776) target = $region116
        $region115: #{mamba2_forward.3} parent=107 // pred_region
          %s1779 = sand.u32 %s449, 1
          %s1780 = scalar_lea.sflag [#allocation9], %s1779
          %s1781 = sand.u32 %s449, 1
          %s1782 = smul.addr %s1781, 16
          %s1783 = scalar_lea.vmem [#allocation8], %s1782
          %1784 = dma.done %s1780, 256
        $region116: #{mamba2_forward.3} parent=107 // pred_fallthru
          _
      $region108: #{mamba2_forward.3} parent=5 // pred_fallthru
        _
    $region6: #{mamba2_forward.3} parent=1 // loop_footer
      %s35 = sadd.s32 1, %s31
    $region7: #{mamba2_forward.3} parent=1 // loop_footer_branch
      %30 = sbr.rel target = $region3
    $region8: #{mamba2_forward.3} parent=1 // loop_exit
      _
    %1785 = vsyncpa [#allocation7], 1
    %s1786 = scalar_lea.sflag [#allocation7], 1
    %1787 = vsyncpa %s1786, 1
    %1788 = vsyncpa [#allocation9], 1
    %s1789 = scalar_lea.sflag [#allocation9], 1
    %1790 = vsyncpa %s1789, 1

// kernel: mamba2_forward.2
$region0: #{mamba2_forward.2}
  #allocation0 [shape = 'u32[]', space=smem, size = 0x4, offset = 0x4, fixed_abs, tag = 'smem constant byte address 0x4 - core index']
  #allocation1 [shape = 'u32[144,128]{1,0:T(1,128)}', space=vmem, size = 0x12000, scoped, tag = 'internal scratch']
  #allocation2 [shape = 'f32[16,64]{1,0:T(8,128)}', space=vmem, size = 0x2000, scoped, tag = 'scratch operand']
  #allocation3 [shape = 'f32[11,64]{1,0:T(8,128)}', space=vmem, size = 0x2000, scoped, tag = 'scratch operand']
  #allocation4 [shape = 'f32[8,64]{1,0:T(8,128)}', space=vmem, size = 0x1000, scoped, tag = 'scratch operand']
  #allocation5 [shape = 'f32[8,64]{1,0:T(8,128)}', space=vmem, size = 0x1000, scoped, tag = 'scratch operand']
  %s0 = inlined_call_operand.vmem [shape: bf16[2,16,32], index: 0, kind: input, shape index: {}, may-alias: {0,16}]
  %s1 = inlined_call_operand.vmem [shape: f32[16,32], index: 1, kind: input, shape index: {}]
  %s2 = inlined_call_operand.vmem [shape: f32[1,32], index: 2, kind: input, shape index: {}]
  %s3 = inlined_call_operand.vmem [shape: f32[1,32], index: 3, kind: input, shape index: {}]
  %s4 = inlined_call_operand.vmem [shape: bf16[32,64], index: 4, kind: input, shape index: {}]
  %s5 = inlined_call_operand.vmem [shape: f32[1,64], index: 5, kind: input, shape index: {}]
  %s6 = inlined_call_operand.vmem [shape: bf16[64,16], index: 6, kind: input, shape index: {}]
  %s7 = inlined_call_operand.vmem [shape: bf16[64,16], index: 7, kind: input, shape index: {}]
  %s8 = inlined_call_operand.vmem [shape: bf16[64,2], index: 8, kind: input, shape index: {}]
  %s9 = inlined_call_operand.vmem [shape: f32[1,2], index: 9, kind: input, shape index: {}]
  %s10 = inlined_call_operand.vmem [shape: f32[1,2], index: 10, kind: input, shape index: {}]
  %s11 = inlined_call_operand.vmem [shape: f32[1,64], index: 11, kind: input, shape index: {}]
  %s12 = inlined_call_operand.vmem [shape: f32[4,64], index: 12, kind: input, shape index: {}]
  %s13 = inlined_call_operand.vmem [shape: f32[1,64], index: 13, kind: input, shape index: {}]
  %s14 = inlined_call_operand.vmem [shape: bf16[64,32], index: 14, kind: input, shape index: {}]
  %s15 = inlined_call_operand.vmem [shape: f32[1,32], index: 15, kind: input, shape index: {}]
  %s16 = inlined_call_operand.vmem [shape: bf16[2,16,32], index: 16, kind: output, shape index: {0}, may-alias: {0,16}]
  %s17 = inlined_call_operand.hbm [shape: f32[2,16,64], index: 17, kind: output, shape index: {1}]
  %18 = xla_tuple %s16, %s17
  %s19 = sld [smem:[#allocation0]]
  $region113: #{mamba2_forward.2} parent=0
    _
  %s21 = ssub.s32 1, %s19
  %s22 = scalar_select 0, %s21, %s19
  $region1: #{mamba2_forward.2} parent=0
    #allocation6 [shape = 'u8[16384]{0}', space=vmem, size = 0x4000, scoped, tag = 'output window, operand 1']
    #allocation7 [shape = 's32[2]{0}', space=sflag, size = 0x8, scoped, tag = 'scoped memory for mamba2_forward.2']
    %23 = vsyncpa [#allocation7], 0
    %s24 = scalar_lea.sflag [#allocation7], 1
    %25 = vsyncpa %s24, 0
    loop: start=0, step=1, limit=6
    $region2: #{mamba2_forward.2} parent=1 // loop_pre_header
      _
    $region3: #{mamba2_forward.2} parent=1 // loop_header
      %s27 = sphi 0, %s31
      %p28 = scmp.ge.s32.totalorder %s27, 6
      %s34 = sphi 0, %s46
      %s35 = sphi 0, %s42
      %s36 = sphi 0, %s34
      %s37 = sphi 0, %s35
      %s38 = sphi 0, %s36
      %s39 = sphi 0, %s37
      %s51 = sphi 0, %s53
      %s54 = sphi 0, %s51
      %s55 = sphi 0, %s54
      %s71 = sphi 0, %s55
      %s77 = sphi 0, %s79
      %s80 = sphi 0, %s77
      %s81 = sphi 0, %s80
      %s97 = sphi 0, %s81
      %s101 = sphi 0, %s101
      %s103 = sphi 0, %s101
      %s104 = sphi 0, %s103
      %s118 = sphi 0, %s104
      %s122 = sphi 0, %s122
      %s124 = sphi 0, %s122
      %s125 = sphi 0, %s124
      %s139 = sphi 0, %s125
      %s143 = sphi 0, %s143
      %s145 = sphi 0, %s143
      %s146 = sphi 0, %s145
      %s160 = sphi 0, %s146
      %s164 = sphi 0, %s164
      %s166 = sphi 0, %s164
      %s167 = sphi 0, %s166
      %s181 = sphi 0, %s167
      %s185 = sphi 0, %s185
      %s187 = sphi 0, %s185
      %s188 = sphi 0, %s187
      %s202 = sphi 0, %s188
      %s206 = sphi 0, %s206
      %s208 = sphi 0, %s206
      %s209 = sphi 0, %s208
      %s223 = sphi 0, %s209
      %s227 = sphi 0, %s227
      %s229 = sphi 0, %s227
      %s230 = sphi 0, %s229
      %s244 = sphi 0, %s230
      %s248 = sphi 0, %s248
      %s250 = sphi 0, %s248
      %s251 = sphi 0, %s250
      %s265 = sphi 0, %s251
      %s269 = sphi 0, %s269
      %s271 = sphi 0, %s269
      %s272 = sphi 0, %s271
      %s286 = sphi 0, %s272
      %s290 = sphi 0, %s290
      %s292 = sphi 0, %s290
      %s293 = sphi 0, %s292
      %s307 = sphi 0, %s293
      %s311 = sphi 0, %s311
      %s313 = sphi 0, %s311
      %s314 = sphi 0, %s313
      %s328 = sphi 0, %s314
      %s332 = sphi 0, %s332
      %s334 = sphi 0, %s332
      %s335 = sphi 0, %s334
      %s349 = sphi 0, %s335
      %s353 = sphi 0, %s353
      %s355 = sphi 0, %s353
      %s356 = sphi 0, %s355
      %s370 = sphi 0, %s356
      %s374 = sphi 0, %s374
      %s376 = sphi 0, %s374
      %s377 = sphi 0, %s376
      %s391 = sphi 0, %s377
      %s399 = sphi 0, %s401
      %s402 = sphi 0, %s399
      %s403 = sphi 0, %s402
      %s419 = sphi 0, %s403
      %s425 = sphi 0, %s427
      %s428 = sphi 0, %s425
      %s429 = sphi 0, %s428
      %s445 = sphi 0, %s429
    $region4: #{mamba2_forward.2} parent=1 // loop_header_branch
      %30 = sbr.rel (%p28) target = $region8
    $region5: #{mamba2_forward.2} parent=1 // loop_body
      %s32 = ssub.s32 %s27, 1
      %s33 = ssub.s32 %s27, 2
      %s40 = sadd.s32 1, %s35
      %p41 = scmp.ge.s32.totalorder %s40, 2
      %s42 = scalar_select %p41, 0, %s40
      %s43 = sadd.s32 1, %s34
      %s44 = scalar_select %p41, %s43, %s34
      %p45 = scmp.ge.s32.totalorder %s44, 2
      %s46 = scalar_select %p45, 0, %s44
      %s47 = ssub.s32 %s34, %s46
      %s48 = ssub.s32 %s35, %s42
      %s49 = sor.u32 %s47, %s48
      %p50 = scmp.eq.s32.totalorder %s49, 0
      %s52 = sadd.s32 %s51, 1
      %s53 = scalar_select %p50, %s51, %s52
      %p56 = pneg %p50
      %p57 = scmp.eq.s32.totalorder %s27, 3
      %p58 = por %p56, %p57
      %p59 = scmp.ne.s32.totalorder %s51, %s54
      %p60 = scmp.eq.s32.totalorder %s27, 0
      %p61 = por %p59, %p60
      %p62 = scmp.ne.s32.totalorder %s51, %s54
      %p63 = scmp.eq.s32.totalorder %s32, 3
      %p64 = por %p62, %p63
      %p65 = scmp.ne.s32.totalorder %s54, %s55
      %p66 = scmp.eq.s32.totalorder %s32, 0
      %p67 = por %p65, %p66
      %p68 = scmp.ne.s32.totalorder %s54, %s55
      %p69 = scmp.eq.s32.totalorder %s33, 3
      %p70 = por %p68, %p69
      %p72 = scmp.ne.s32.totalorder %s55, %s71
      %p73 = scmp.eq.s32.totalorder %s33, 0
      %p74 = por %p72, %p73
      %s75 = ssub.s32 %s35, %s42
      %p76 = scmp.eq.s32.totalorder %s75, 0
      %s78 = sadd.s32 %s77, 1
      %s79 = scalar_select %p76, %s77, %s78
      %p82 = pneg %p76
      %p83 = scmp.eq.s32.totalorder %s27, 3
      %p84 = por %p82, %p83
      %p85 = scmp.ne.s32.totalorder %s77, %s80
      %p86 = scmp.eq.s32.totalorder %s27, 0
      %p87 = por %p85, %p86
      %p88 = scmp.ne.s32.totalorder %s77, %s80
      %p89 = scmp.eq.s32.totalorder %s32, 3
      %p90 = por %p88, %p89
      %p91 = scmp.ne.s32.totalorder %s80, %s81
      %p92 = scmp.eq.s32.totalorder %s32, 0
      %p93 = por %p91, %p92
      %p94 = scmp.ne.s32.totalorder %s80, %s81
      %p95 = scmp.eq.s32.totalorder %s33, 3
      %p96 = por %p94, %p95
      %p98 = scmp.ne.s32.totalorder %s81, %s97
      %p99 = scmp.eq.s32.totalorder %s33, 0
      %p100 = por %p98, %p99
      %s102 = sadd.s32 %s101, 1
      %p105 = scmp.eq.s32.totalorder %s27, 3
      %p106 = scmp.ne.s32.totalorder %s101, %s103
      %p107 = scmp.eq.s32.totalorder %s27, 0
      %p108 = por %p106, %p107
      %p109 = scmp.ne.s32.totalorder %s101, %s103
      %p110 = scmp.eq.s32.totalorder %s32, 3
      %p111 = por %p109, %p110
      %p112 = scmp.ne.s32.totalorder %s103, %s104
      %p113 = scmp.eq.s32.totalorder %s32, 0
      %p114 = por %p112, %p113
      %p115 = scmp.ne.s32.totalorder %s103, %s104
      %p116 = scmp.eq.s32.totalorder %s33, 3
      %p117 = por %p115, %p116
      %p119 = scmp.ne.s32.totalorder %s104, %s118
      %p120 = scmp.eq.s32.totalorder %s33, 0
      %p121 = por %p119, %p120
      %s123 = sadd.s32 %s122, 1
      %p126 = scmp.eq.s32.totalorder %s27, 3
      %p127 = scmp.ne.s32.totalorder %s122, %s124
      %p128 = scmp.eq.s32.totalorder %s27, 0
      %p129 = por %p127, %p128
      %p130 = scmp.ne.s32.totalorder %s122, %s124
      %p131 = scmp.eq.s32.totalorder %s32, 3
      %p132 = por %p130, %p131
      %p133 = scmp.ne.s32.totalorder %s124, %s125
      %p134 = scmp.eq.s32.totalorder %s32, 0
      %p135 = por %p133, %p134
      %p136 = scmp.ne.s32.totalorder %s124, %s125
      %p137 = scmp.eq.s32.totalorder %s33, 3
      %p138 = por %p136, %p137
      %p140 = scmp.ne.s32.totalorder %s125, %s139
      %p141 = scmp.eq.s32.totalorder %s33, 0
      %p142 = por %p140, %p141
      %s144 = sadd.s32 %s143, 1
      %p147 = scmp.eq.s32.totalorder %s27, 3
      %p148 = scmp.ne.s32.totalorder %s143, %s145
      %p149 = scmp.eq.s32.totalorder %s27, 0
      %p150 = por %p148, %p149
      %p151 = scmp.ne.s32.totalorder %s143, %s145
      %p152 = scmp.eq.s32.totalorder %s32, 3
      %p153 = por %p151, %p152
      %p154 = scmp.ne.s32.totalorder %s145, %s146
      %p155 = scmp.eq.s32.totalorder %s32, 0
      %p156 = por %p154, %p155
      %p157 = scmp.ne.s32.totalorder %s145, %s146
      %p158 = scmp.eq.s32.totalorder %s33, 3
      %p159 = por %p157, %p158
      %p161 = scmp.ne.s32.totalorder %s146, %s160
      %p162 = scmp.eq.s32.totalorder %s33, 0
      %p163 = por %p161, %p162
      %s165 = sadd.s32 %s164, 1
      %p168 = scmp.eq.s32.totalorder %s27, 3
      %p169 = scmp.ne.s32.totalorder %s164, %s166
      %p170 = scmp.eq.s32.totalorder %s27, 0
      %p171 = por %p169, %p170
      %p172 = scmp.ne.s32.totalorder %s164, %s166
      %p173 = scmp.eq.s32.totalorder %s32, 3
      %p174 = por %p172, %p173
      %p175 = scmp.ne.s32.totalorder %s166, %s167
      %p176 = scmp.eq.s32.totalorder %s32, 0
      %p177 = por %p175, %p176
      %p178 = scmp.ne.s32.totalorder %s166, %s167
      %p179 = scmp.eq.s32.totalorder %s33, 3
      %p180 = por %p178, %p179
      %p182 = scmp.ne.s32.totalorder %s167, %s181
      %p183 = scmp.eq.s32.totalorder %s33, 0
      %p184 = por %p182, %p183
      %s186 = sadd.s32 %s185, 1
      %p189 = scmp.eq.s32.totalorder %s27, 3
      %p190 = scmp.ne.s32.totalorder %s185, %s187
      %p191 = scmp.eq.s32.totalorder %s27, 0
      %p192 = por %p190, %p191
      %p193 = scmp.ne.s32.totalorder %s185, %s187
      %p194 = scmp.eq.s32.totalorder %s32, 3
      %p195 = por %p193, %p194
      %p196 = scmp.ne.s32.totalorder %s187, %s188
      %p197 = scmp.eq.s32.totalorder %s32, 0
      %p198 = por %p196, %p197
      %p199 = scmp.ne.s32.totalorder %s187, %s188
      %p200 = scmp.eq.s32.totalorder %s33, 3
      %p201 = por %p199, %p200
      %p203 = scmp.ne.s32.totalorder %s188, %s202
      %p204 = scmp.eq.s32.totalorder %s33, 0
      %p205 = por %p203, %p204
      %s207 = sadd.s32 %s206, 1
      %p210 = scmp.eq.s32.totalorder %s27, 3
      %p211 = scmp.ne.s32.totalorder %s206, %s208
      %p212 = scmp.eq.s32.totalorder %s27, 0
      %p213 = por %p211, %p212
      %p214 = scmp.ne.s32.totalorder %s206, %s208
      %p215 = scmp.eq.s32.totalorder %s32, 3
      %p216 = por %p214, %p215
      %p217 = scmp.ne.s32.totalorder %s208, %s209
      %p218 = scmp.eq.s32.totalorder %s32, 0
      %p219 = por %p217, %p218
      %p220 = scmp.ne.s32.totalorder %s208, %s209
      %p221 = scmp.eq.s32.totalorder %s33, 3
      %p222 = por %p220, %p221
      %p224 = scmp.ne.s32.totalorder %s209, %s223
      %p225 = scmp.eq.s32.totalorder %s33, 0
      %p226 = por %p224, %p225
      %s228 = sadd.s32 %s227, 1
      %p231 = scmp.eq.s32.totalorder %s27, 3
      %p232 = scmp.ne.s32.totalorder %s227, %s229
      %p233 = scmp.eq.s32.totalorder %s27, 0
      %p234 = por %p232, %p233
      %p235 = scmp.ne.s32.totalorder %s227, %s229
      %p236 = scmp.eq.s32.totalorder %s32, 3
      %p237 = por %p235, %p236
      %p238 = scmp.ne.s32.totalorder %s229, %s230
      %p239 = scmp.eq.s32.totalorder %s32, 0
      %p240 = por %p238, %p239
      %p241 = scmp.ne.s32.totalorder %s229, %s230
      %p242 = scmp.eq.s32.totalorder %s33, 3
      %p243 = por %p241, %p242
      %p245 = scmp.ne.s32.totalorder %s230, %s244
      %p246 = scmp.eq.s32.totalorder %s33, 0
      %p247 = por %p245, %p246
      %s249 = sadd.s32 %s248, 1
      %p252 = scmp.eq.s32.totalorder %s27, 3
      %p253 = scmp.ne.s32.totalorder %s248, %s250
      %p254 = scmp.eq.s32.totalorder %s27, 0
      %p255 = por %p253, %p254
      %p256 = scmp.ne.s32.totalorder %s248, %s250
      %p257 = scmp.eq.s32.totalorder %s32, 3
      %p258 = por %p256, %p257
      %p259 = scmp.ne.s32.totalorder %s250, %s251
      %p260 = scmp.eq.s32.totalorder %s32, 0
      %p261 = por %p259, %p260
      %p262 = scmp.ne.s32.totalorder %s250, %s251
      %p263 = scmp.eq.s32.totalorder %s33, 3
      %p264 = por %p262, %p263
      %p266 = scmp.ne.s32.totalorder %s251, %s265
      %p267 = scmp.eq.s32.totalorder %s33, 0
      %p268 = por %p266, %p267
      %s270 = sadd.s32 %s269, 1
      %p273 = scmp.eq.s32.totalorder %s27, 3
      %p274 = scmp.ne.s32.totalorder %s269, %s271
      %p275 = scmp.eq.s32.totalorder %s27, 0
      %p276 = por %p274, %p275
      %p277 = scmp.ne.s32.totalorder %s269, %s271
      %p278 = scmp.eq.s32.totalorder %s32, 3
      %p279 = por %p277, %p278
      %p280 = scmp.ne.s32.totalorder %s271, %s272
      %p281 = scmp.eq.s32.totalorder %s32, 0
      %p282 = por %p280, %p281
      %p283 = scmp.ne.s32.totalorder %s271, %s272
      %p284 = scmp.eq.s32.totalorder %s33, 3
      %p285 = por %p283, %p284
      %p287 = scmp.ne.s32.totalorder %s272, %s286
      %p288 = scmp.eq.s32.totalorder %s33, 0
      %p289 = por %p287, %p288
      %s291 = sadd.s32 %s290, 1
      %p294 = scmp.eq.s32.totalorder %s27, 3
      %p295 = scmp.ne.s32.totalorder %s290, %s292
      %p296 = scmp.eq.s32.totalorder %s27, 0
      %p297 = por %p295, %p296
      %p298 = scmp.ne.s32.totalorder %s290, %s292
      %p299 = scmp.eq.s32.totalorder %s32, 3
      %p300 = por %p298, %p299
      %p301 = scmp.ne.s32.totalorder %s292, %s293
      %p302 = scmp.eq.s32.totalorder %s32, 0
      %p303 = por %p301, %p302
      %p304 = scmp.ne.s32.totalorder %s292, %s293
      %p305 = scmp.eq.s32.totalorder %s33, 3
      %p306 = por %p304, %p305
      %p308 = scmp.ne.s32.totalorder %s293, %s307
      %p309 = scmp.eq.s32.totalorder %s33, 0
      %p310 = por %p308, %p309
      %s312 = sadd.s32 %s311, 1
      %p315 = scmp.eq.s32.totalorder %s27, 3
      %p316 = scmp.ne.s32.totalorder %s311, %s313
      %p317 = scmp.eq.s32.totalorder %s27, 0
      %p318 = por %p316, %p317
      %p319 = scmp.ne.s32.totalorder %s311, %s313
      %p320 = scmp.eq.s32.totalorder %s32, 3
      %p321 = por %p319, %p320
      %p322 = scmp.ne.s32.totalorder %s313, %s314
      %p323 = scmp.eq.s32.totalorder %s32, 0
      %p324 = por %p322, %p323
      %p325 = scmp.ne.s32.totalorder %s313, %s314
      %p326 = scmp.eq.s32.totalorder %s33, 3
      %p327 = por %p325, %p326
      %p329 = scmp.ne.s32.totalorder %s314, %s328
      %p330 = scmp.eq.s32.totalorder %s33, 0
      %p331 = por %p329, %p330
      %s333 = sadd.s32 %s332, 1
      %p336 = scmp.eq.s32.totalorder %s27, 3
      %p337 = scmp.ne.s32.totalorder %s332, %s334
      %p338 = scmp.eq.s32.totalorder %s27, 0
      %p339 = por %p337, %p338
      %p340 = scmp.ne.s32.totalorder %s332, %s334
      %p341 = scmp.eq.s32.totalorder %s32, 3
      %p342 = por %p340, %p341
      %p343 = scmp.ne.s32.totalorder %s334, %s335
      %p344 = scmp.eq.s32.totalorder %s32, 0
      %p345 = por %p343, %p344
      %p346 = scmp.ne.s32.totalorder %s334, %s335
      %p347 = scmp.eq.s32.totalorder %s33, 3
      %p348 = por %p346, %p347
      %p350 = scmp.ne.s32.totalorder %s335, %s349
      %p351 = scmp.eq.s32.totalorder %s33, 0
      %p352 = por %p350, %p351
      %s354 = sadd.s32 %s353, 1
      %p357 = scmp.eq.s32.totalorder %s27, 3
      %p358 = scmp.ne.s32.totalorder %s353, %s355
      %p359 = scmp.eq.s32.totalorder %s27, 0
      %p360 = por %p358, %p359
      %p361 = scmp.ne.s32.totalorder %s353, %s355
      %p362 = scmp.eq.s32.totalorder %s32, 3
      %p363 = por %p361, %p362
      %p364 = scmp.ne.s32.totalorder %s355, %s356
      %p365 = scmp.eq.s32.totalorder %s32, 0
      %p366 = por %p364, %p365
      %p367 = scmp.ne.s32.totalorder %s355, %s356
      %p368 = scmp.eq.s32.totalorder %s33, 3
      %p369 = por %p367, %p368
      %p371 = scmp.ne.s32.totalorder %s356, %s370
      %p372 = scmp.eq.s32.totalorder %s33, 0
      %p373 = por %p371, %p372
      %s375 = sadd.s32 %s374, 1
      %p378 = scmp.eq.s32.totalorder %s27, 3
      %p379 = scmp.ne.s32.totalorder %s374, %s376
      %p380 = scmp.eq.s32.totalorder %s27, 0
      %p381 = por %p379, %p380
      %p382 = scmp.ne.s32.totalorder %s374, %s376
      %p383 = scmp.eq.s32.totalorder %s32, 3
      %p384 = por %p382, %p383
      %p385 = scmp.ne.s32.totalorder %s376, %s377
      %p386 = scmp.eq.s32.totalorder %s32, 0
      %p387 = por %p385, %p386
      %p388 = scmp.ne.s32.totalorder %s376, %s377
      %p389 = scmp.eq.s32.totalorder %s33, 3
      %p390 = por %p388, %p389
      %p392 = scmp.ne.s32.totalorder %s377, %s391
      %p393 = scmp.eq.s32.totalorder %s33, 0
      %p394 = por %p392, %p393
      %s395 = ssub.s32 %s34, %s46
      %s396 = ssub.s32 %s35, %s42
      %s397 = sor.u32 %s395, %s396
      %p398 = scmp.eq.s32.totalorder %s397, 0
      %s400 = sadd.s32 %s399, 1
      %s401 = scalar_select %p398, %s399, %s400
      %p404 = pneg %p398
      %p405 = scmp.eq.s32.totalorder %s27, 3
      %p406 = por %p404, %p405
      %p407 = scmp.ne.s32.totalorder %s399, %s402
      %p408 = scmp.eq.s32.totalorder %s27, 0
      %p409 = por %p407, %p408
      %p410 = scmp.ne.s32.totalorder %s399, %s402
      %p411 = scmp.eq.s32.totalorder %s32, 3
      %p412 = por %p410, %p411
      %p413 = scmp.ne.s32.totalorder %s402, %s403
      %p414 = scmp.eq.s32.totalorder %s32, 0
      %p415 = por %p413, %p414
      %p416 = scmp.ne.s32.totalorder %s402, %s403
      %p417 = scmp.eq.s32.totalorder %s33, 3
      %p418 = por %p416, %p417
      %p420 = scmp.ne.s32.totalorder %s403, %s419
      %p421 = scmp.eq.s32.totalorder %s33, 0
      %p422 = por %p420, %p421
      %s423 = ssub.s32 %s34, %s46
      %p424 = scmp.eq.s32.totalorder %s423, 0
      %s426 = sadd.s32 %s425, 1
      %s427 = scalar_select %p424, %s425, %s426
      %p430 = pneg %p424
      %p431 = scmp.eq.s32.totalorder %s27, 3
      %p432 = por %p430, %p431
      %p433 = scmp.ne.s32.totalorder %s425, %s428
      %p434 = scmp.eq.s32.totalorder %s27, 0
      %p435 = por %p433, %p434
      %p436 = scmp.ne.s32.totalorder %s425, %s428
      %p437 = scmp.eq.s32.totalorder %s32, 3
      %p438 = por %p436, %p437
      %p439 = scmp.ne.s32.totalorder %s428, %s429
      %p440 = scmp.eq.s32.totalorder %s32, 0
      %p441 = por %p439, %p440
      %p442 = scmp.ne.s32.totalorder %s428, %s429
      %p443 = scmp.eq.s32.totalorder %s33, 3
      %p444 = por %p442, %p443
      %p446 = scmp.ne.s32.totalorder %s429, %s445
      %p447 = scmp.eq.s32.totalorder %s33, 0
      %p448 = por %p446, %p447
      %p449 = scmp.le.s32.totalorder 1, %s27
      %p450 = scmp.lt.s32.totalorder %s27, 5
      %p451 = pnand %p449, %p450
      %p452 = pneg %p451
      // Predicated region
      $region9: #{mamba2_forward.2} parent=5 // pred_check
        _
      $region10: #{mamba2_forward.2} parent=5 // pred_check_branch
        %454 = sbr.rel (%p451) target = $region12
      $region11: #{mamba2_forward.2} parent=5 // pred_region
        %s455 = ssub.s32 %s27, 1
        // Predicated region
        $region13: #{mamba2_forward.2} parent=11 // pred_check
          %p456 = pneg %p114
        $region14: #{mamba2_forward.2} parent=11 // pred_check_branch
          %458 = sbr.rel (%p456) target = $region16
        $region15: #{mamba2_forward.2} parent=11 // pred_region
          _
        $region16: #{mamba2_forward.2} parent=11 // pred_fallthru
          _
        // Predicated region
        $region17: #{mamba2_forward.2} parent=11 // pred_check
          %p459 = pneg %p135
        $region18: #{mamba2_forward.2} parent=11 // pred_check_branch
          %461 = sbr.rel (%p459) target = $region20
        $region19: #{mamba2_forward.2} parent=11 // pred_region
          _
        $region20: #{mamba2_forward.2} parent=11 // pred_fallthru
          _
        // Predicated region
        $region21: #{mamba2_forward.2} parent=11 // pred_check
          %p462 = pneg %p156
        $region22: #{mamba2_forward.2} parent=11 // pred_check_branch
          %464 = sbr.rel (%p462) target = $region24
        $region23: #{mamba2_forward.2} parent=11 // pred_region
          _
        $region24: #{mamba2_forward.2} parent=11 // pred_fallthru
          _
        // Predicated region
        $region25: #{mamba2_forward.2} parent=11 // pred_check
          %p465 = pneg %p177
        $region26: #{mamba2_forward.2} parent=11 // pred_check_branch
          %467 = sbr.rel (%p465) target = $region28
        $region27: #{mamba2_forward.2} parent=11 // pred_region
          _
        $region28: #{mamba2_forward.2} parent=11 // pred_fallthru
          _
        // Predicated region
        $region29: #{mamba2_forward.2} parent=11 // pred_check
          %p468 = pneg %p198
        $region30: #{mamba2_forward.2} parent=11 // pred_check_branch
          %470 = sbr.rel (%p468) target = $region32
        $region31: #{mamba2_forward.2} parent=11 // pred_region
          _
        $region32: #{mamba2_forward.2} parent=11 // pred_fallthru
          _
        // Predicated region
        $region33: #{mamba2_forward.2} parent=11 // pred_check
          %p471 = pneg %p219
        $region34: #{mamba2_forward.2} parent=11 // pred_check_branch
          %473 = sbr.rel (%p471) target = $region36
        $region35: #{mamba2_forward.2} parent=11 // pred_region
          _
        $region36: #{mamba2_forward.2} parent=11 // pred_fallthru
          _
        // Predicated region
        $region37: #{mamba2_forward.2} parent=11 // pred_check
          %p474 = pneg %p240
        $region38: #{mamba2_forward.2} parent=11 // pred_check_branch
          %476 = sbr.rel (%p474) target = $region40
        $region39: #{mamba2_forward.2} parent=11 // pred_region
          _
        $region40: #{mamba2_forward.2} parent=11 // pred_fallthru
          _
        // Predicated region
        $region41: #{mamba2_forward.2} parent=11 // pred_check
          %p477 = pneg %p261
        $region42: #{mamba2_forward.2} parent=11 // pred_check_branch
          %479 = sbr.rel (%p477) target = $region44
        $region43: #{mamba2_forward.2} parent=11 // pred_region
          _
        $region44: #{mamba2_forward.2} parent=11 // pred_fallthru
          _
        // Predicated region
        $region45: #{mamba2_forward.2} parent=11 // pred_check
          %p480 = pneg %p282
        $region46: #{mamba2_forward.2} parent=11 // pred_check_branch
          %482 = sbr.rel (%p480) target = $region48
        $region47: #{mamba2_forward.2} parent=11 // pred_region
          _
        $region48: #{mamba2_forward.2} parent=11 // pred_fallthru
          _
        // Predicated region
        $region49: #{mamba2_forward.2} parent=11 // pred_check
          %p483 = pneg %p303
        $region50: #{mamba2_forward.2} parent=11 // pred_check_branch
          %485 = sbr.rel (%p483) target = $region52
        $region51: #{mamba2_forward.2} parent=11 // pred_region
          _
        $region52: #{mamba2_forward.2} parent=11 // pred_fallthru
          _
        // Predicated region
        $region53: #{mamba2_forward.2} parent=11 // pred_check
          %p486 = pneg %p324
        $region54: #{mamba2_forward.2} parent=11 // pred_check_branch
          %488 = sbr.rel (%p486) target = $region56
        $region55: #{mamba2_forward.2} parent=11 // pred_region
          _
        $region56: #{mamba2_forward.2} parent=11 // pred_fallthru
          _
        // Predicated region
        $region57: #{mamba2_forward.2} parent=11 // pred_check
          %p489 = pneg %p345
        $region58: #{mamba2_forward.2} parent=11 // pred_check_branch
          %491 = sbr.rel (%p489) target = $region60
        $region59: #{mamba2_forward.2} parent=11 // pred_region
          _
        $region60: #{mamba2_forward.2} parent=11 // pred_fallthru
          _
        // Predicated region
        $region61: #{mamba2_forward.2} parent=11 // pred_check
          %p492 = pneg %p366
        $region62: #{mamba2_forward.2} parent=11 // pred_check_branch
          %494 = sbr.rel (%p492) target = $region64
        $region63: #{mamba2_forward.2} parent=11 // pred_region
          _
        $region64: #{mamba2_forward.2} parent=11 // pred_fallthru
          _
        // Predicated region
        $region65: #{mamba2_forward.2} parent=11 // pred_check
          %p495 = pneg %p387
        $region66: #{mamba2_forward.2} parent=11 // pred_check_branch
          %497 = sbr.rel (%p495) target = $region68
        $region67: #{mamba2_forward.2} parent=11 // pred_region
          _
        $region68: #{mamba2_forward.2} parent=11 // pred_fallthru
          _
      $region12: #{mamba2_forward.2} parent=5 // pred_fallthru
        _
      %p498 = scmp.lt.s32.totalorder %s27, 4
      // Predicated region
      $region69: #{mamba2_forward.2} parent=5 // pred_check
        %p499 = pneg %p498
      $region70: #{mamba2_forward.2} parent=5 // pred_check_branch
        %501 = sbr.rel (%p499) target = $region72
      $region71: #{mamba2_forward.2} parent=5 // pred_region
        // Predicated region
        $region73: #{mamba2_forward.2} parent=71 // pred_check
          %p502 = pneg %p61
        $region74: #{mamba2_forward.2} parent=71 // pred_check_branch
          %504 = sbr.rel (%p502) target = $region76
        $region75: #{mamba2_forward.2} parent=71 // pred_region
          %p505 = scmp.lt.s32.totalorder %s34, 1
          %s506 = scalar_select %p505, %s34, 1
          %p507 = scmp.lt.s32.totalorder %s35, 1
          %s508 = scalar_select %p507, %s35, 1
          %s509 = smul.addr %s506, 2
          %s510 = sadd.s32 %s508, %s509
          %s511 = smul.addr %s510, 4
          %s512 = scalar_lea.vmem %s0, %s511
        $region76: #{mamba2_forward.2} parent=71 // pred_fallthru
          _
        // Predicated region
        $region77: #{mamba2_forward.2} parent=71 // pred_check
          %p513 = pneg %p87
        $region78: #{mamba2_forward.2} parent=71 // pred_check_branch
          %515 = sbr.rel (%p513) target = $region80
        $region79: #{mamba2_forward.2} parent=71 // pred_region
          %p516 = scmp.lt.s32.totalorder %s35, 1
          %s517 = scalar_select %p516, %s35, 1
          %s518 = smul.addr %s517, 8
          %s519 = scalar_lea.vmem %s1, %s518
        $region80: #{mamba2_forward.2} parent=71 // pred_fallthru
          _
      $region72: #{mamba2_forward.2} parent=5 // pred_fallthru
        _
      %p520 = scmp.le.s32.totalorder 1, %s27
      %p521 = scmp.lt.s32.totalorder %s27, 5
      %p522 = pnand %p520, %p521
      %p523 = pneg %p522
      // Predicated region
      $region81: #{mamba2_forward.2} parent=5 // pred_check
        _
      $region82: #{mamba2_forward.2} parent=5 // pred_check_branch
        %525 = sbr.rel (%p522) target = $region84
      $region83: #{mamba2_forward.2} parent=5 // pred_region
        %s526 = ssub.s32 %s27, 1
        %p527 = scmp.lt.s32.totalorder %s36, 1
        %s528 = scalar_select %p527, %s36, 1
        %p529 = scmp.lt.s32.totalorder %s37, 1
        %s530 = scalar_select %p529, %s37, 1
        %s531 = smul.addr %s528, 2
        %s532 = sadd.s32 %s530, %s531
        %s533 = smul.addr %s532, 4
        %s534 = scalar_lea.vmem %s0, %s533
        %p535 = pneg %p67
        %p536 = pneg %p64
        %p537 = scmp.lt.s32.totalorder %s37, 1
        %s538 = scalar_select %p537, %s37, 1
        %s539 = smul.addr %s538, 8
        %s540 = scalar_lea.vmem %s1, %s539
        %p541 = pneg %p93
        %p542 = pneg %p90
        %p543 = pneg %p114
        %p544 = pneg %p111
        %p545 = pneg %p135
        %p546 = pneg %p132
        %p547 = pneg %p156
        %p548 = pneg %p153
        %p549 = pneg %p177
        %p550 = pneg %p174
        %p551 = pneg %p198
        %p552 = pneg %p195
        %p553 = pneg %p219
        %p554 = pneg %p216
        %p555 = pneg %p240
        %p556 = pneg %p237
        %p557 = pneg %p261
        %p558 = pneg %p258
        %p559 = pneg %p282
        %p560 = pneg %p279
        %p561 = pneg %p303
        %p562 = pneg %p300
        %p563 = pneg %p324
        %p564 = pneg %p321
        %p565 = pneg %p345
        %p566 = pneg %p342
        %p567 = pneg %p366
        %p568 = pneg %p363
        %p569 = pneg %p387
        %p570 = pneg %p384
        %p571 = pneg %p415
        %p572 = pneg %p412
        %p573 = scmp.lt.s32.totalorder %s36, 1
        %s574 = scalar_select %p573, %s36, 1
        %p575 = scmp.lt.s32.totalorder %s37, 1
        %s576 = scalar_select %p575, %s37, 1
        %s577 = smul.addr %s574, 2
        %s578 = sadd.s32 %s576, %s577
        %s579 = smul.addr %s578, 4
        %s580 = scalar_lea.vmem %s16, %s579
        %p581 = pneg %p441
        %p582 = pneg %p438
        %s583 = sand.u32 %s428, 1
        %s584 = scalar_lea.sflag [#allocation7], %s583
        %s585 = sand.u32 %s428, 1
        %s586 = smul.addr %s585, 16
        %s587 = scalar_lea.vmem [#allocation6], %s586
        %p588 = scmp.lt.s32.totalorder %s36, 1
        %s589 = scalar_select %p588, %s36, 1
        %p590 = scmp.lt.s32.totalorder %s37, 1
        %s591 = scalar_select %p590, %s37, 1
        %s592 = smul.addr %s589, 2
        %s593 = sadd.s32 %s591, %s592
        %s594 = smul.addr %s593, 4
        %s595 = scalar_lea.vmem %s0, %s594
        %p596 = scmp.lt.s32.totalorder %s37, 1
        %s597 = scalar_select %p596, %s37, 1
        %s598 = smul.addr %s597, 8
        %s599 = scalar_lea.vmem %s1, %s598
        %p600 = scmp.lt.s32.totalorder %s36, 1
        %s601 = scalar_select %p600, %s36, 1
        %p602 = scmp.lt.s32.totalorder %s37, 1
        %s603 = scalar_select %p602, %s37, 1
        %s604 = smul.addr %s601, 2
        %s605 = sadd.s32 %s603, %s604
        %s606 = smul.addr %s605, 4
        %s607 = scalar_lea.vmem %s16, %s606
        %p609 = scmp.eq.s32.totalorder %s37, 0
        // Predicated region
        $region85: #{mamba2_forward.2} parent=83 // pred_check
          %p610 = pneg %p609
        $region86: #{mamba2_forward.2} parent=83 // pred_check_branch
          %612 = sbr.rel (%p610) target = $region88
        $region87: #{mamba2_forward.2} parent=83 // pred_region
          %vm613 = vcmask 523264
          %614 = vst.msk [vmem:[#allocation2] sm:$0xff] %vm613, 0.0
          %615 = vst.msk [vmem:[#allocation2 + $0x8] sm:$0xff] %vm613, 0.0
          %vm616 = vcmask 518144
          %617 = vst.msk [vmem:[#allocation3] sm:$0x7] %vm616, 0.0
        $region88: #{mamba2_forward.2} parent=83 // pred_fallthru
          _
        %v618 = vld [vmem:[%s595] sm:$0xf]
        %v619 = vunpack.c.l.bf16 %v618
        %v620 = vld [vmem:[%s599] sm:$0xff]
        %v621 = vadd.f32 %v619, %v620
        %v622 = vld [vmem:[%s2] sm:$0x1]
        %v623 = vld [vmem:[%s3] sm:$0x1]
        %vm624 = vcmask 261120
        %v625 = vsel %vm624, %v621, 0.0
        %626 = vadd.xlane.f32.xlu0 %v625
        %v627 = vpop.xlane.xlu0 %626
        %v628 = vrcp.pop 32.0
        %v629 = vmul.f32 %v627, %v628
        %v630 = vsub.f32 %v621, %v629
        %v631 = vmul.f32 %v630, %v630
        %v632 = vsel %vm624, %v631, 0.0
        %633 = vadd.xlane.f32.xlu0 %v632
        %v634 = vpop.xlane.xlu0 %633
        %v635 = vmul.f32 %v634, %v628
        %v636 = vadd.f32 %v635, 1e-05
        %v637 = vrsqrt.pop %v636
        %v638 = vmul.f32 %v630, %v637
        %v640 = vlaneseq
        %v641 = vshrl.u32 %v640, 7
        %v642 = vsub.s32 0, %v641
        %v643 = vrot.slane %v622, %v642
        %v645 = vmul.f32 %v638, %v643
        %v647 = vlaneseq
        %v648 = vshrl.u32 %v647, 7
        %v649 = vsub.s32 0, %v648
        %v650 = vrot.slane %v623, %v649
        %v652 = vadd.f32 %v645, %v650
        %v653 = vpack.c.bf16 %v652, %v652
        %v654 = vld [vmem:[%s4] sm:$0xf]
        %v655 = vld [vmem:[%s4 + $0x4] sm:$0xf]
        %v656 = vld [vmem:[%s4 + $0x8] sm:$0xf]
        %v657 = vld [vmem:[%s4 + $0xc] sm:$0xf]
        %v658 = vld [vmem:[%s5] sm:$0x1]
        %v660 = vlaneseq
        %v661 = vshrl.u32 %v660, 7
        %v662 = vsub.s32 0, %v661
        %v663 = vrot.slane %v658, %v662
        %v669 = vunpack.c.l.b16 %v654
        %v670 = vunpack.c.l.b16 %v655
        %v671 = vunpack.c.l.b16 %v656
        %v672 = vunpack.c.l.b16 %v657
        %v673 = vpack.c.b16 %v670, %v669
        %v674 = vpack.c.b16 %v672, %v671
        %v678 = vsel %vm624, %v653, 0
        %680 = vmatprep.subr.bf16.mxu0 0
        %681 = vmatpush1.bf16.msra.mxu0 %v673
        %682 = vmatprep.subr.bf16.mxu0 0
        %683 = vmatpush1.bf16.msra.mxu0 %v674
        %684 = vmatprep.subr.bf16.mxu0 0
        %685 = vmatpush1.bf16.msra.mxu0 0
        %686 = vmatprep.subr.bf16.mxu0 0
        %687 = vmatpush1.bf16.msra.mxu0 0
        %688 = vmatprep.subr.bf16.mxu0 0
        %689 = vmatpush1.bf16.msra.mxu0 0
        %690 = vmatprep.subr.bf16.mxu0 0
        %691 = vmatpush1.bf16.msra.mxu0 0
        %692 = vmatprep.subr.bf16.mxu0 0
        %693 = vmatpush1.bf16.msra.mxu0 0
        %694 = vmatprep.subr.bf16.mxu0 0
        %695 = vmatpush1.bf16.msra.mxu0 0
        %696 = vmatprep.subr.bf16.mxu0 0
        %697 = vmatpush1.bf16.msra.mxu0 0
        %698 = vmatprep.subr.bf16.mxu0 0
        %699 = vmatpush1.bf16.msra.mxu0 0
        %700 = vmatprep.subr.bf16.mxu0 0
        %701 = vmatpush1.bf16.msra.mxu0 0
        %702 = vmatprep.subr.bf16.mxu0 0
        %703 = vmatpush1.bf16.msra.mxu0 0
        %704 = vmatprep.subr.bf16.mxu0 0
        %705 = vmatpush1.bf16.msra.mxu0 0
        %706 = vmatprep.subr.bf16.mxu0 0
        %707 = vmatpush1.bf16.msra.mxu0 0
        %708 = vmatprep.subr.bf16.mxu0 0
        %709 = vmatpush1.bf16.msra.mxu0 0
        %710 = vmatprep.subr.bf16.mxu0 0
        %711 = vmatpush1.bf16.msra.mxu0 0
        %712 = vmatprep.mubr.bf16.mxu0 0
        %713 = vmatmul.mubr.bf16.gmra.mrb[0].mxu0 %v678
        %v714 = vpop.f32.mrb[0].mxu0
        %v715 = vadd.f32 %v663, %v714
        %v716 = vpop.f32.mrb[0].mxu0
        %v717 = vpop.f32.mrb[0].mxu0
        %v718 = vpop.f32.mrb[0].mxu0
        %719 = vdwg.mxu0
        %v720 = vpack.c.bf16 %v715, %v715
        %v721 = vld [vmem:[%s6] sm:$0xf]
        %v722 = vld [vmem:[%s6 + $0x4] sm:$0xf]
        %v723 = vld [vmem:[%s6 + $0x8] sm:$0xf]
        %v724 = vld [vmem:[%s6 + $0xc] sm:$0xf]
        %v725 = vld [vmem:[%s6 + $0x10] sm:$0xf]
        %v726 = vld [vmem:[%s6 + $0x14] sm:$0xf]
        %v727 = vld [vmem:[%s6 + $0x18] sm:$0xf]
        %v728 = vld [vmem:[%s6 + $0x1c] sm:$0xf]
        %v737 = vunpack.c.l.b16 %v721
        %v738 = vunpack.c.l.b16 %v722
        %v739 = vunpack.c.l.b16 %v723
        %v740 = vunpack.c.l.b16 %v724
        %v741 = vunpack.c.l.b16 %v725
        %v742 = vunpack.c.l.b16 %v726
        %v743 = vunpack.c.l.b16 %v727
        %v744 = vunpack.c.l.b16 %v728
        %v745 = vpack.c.b16 %v738, %v737
        %v746 = vpack.c.b16 %v740, %v739
        %v747 = vpack.c.b16 %v742, %v741
        %v748 = vpack.c.b16 %v744, %v743
        %vm753 = vcmask 523264
        %v755 = vsel %vm753, %v720, 0
        %757 = vmatprep.subr.bf16.mxu0 0
        %758 = vmatpush1.bf16.msra.mxu0 %v745
        %759 = vmatprep.subr.bf16.mxu0 0
        %760 = vmatpush1.bf16.msra.mxu0 %v746
        %761 = vmatprep.subr.bf16.mxu0 0
        %762 = vmatpush1.bf16.msra.mxu0 %v747
        %763 = vmatprep.subr.bf16.mxu0 0
        %764 = vmatpush1.bf16.msra.mxu0 %v748
        %765 = vmatprep.subr.bf16.mxu0 0
        %766 = vmatpush1.bf16.msra.mxu0 0
        %767 = vmatprep.subr.bf16.mxu0 0
        %768 = vmatpush1.bf16.msra.mxu0 0
        %769 = vmatprep.subr.bf16.mxu0 0
        %770 = vmatpush1.bf16.msra.mxu0 0
        %771 = vmatprep.subr.bf16.mxu0 0
        %772 = vmatpush1.bf16.msra.mxu0 0
        %773 = vmatprep.subr.bf16.mxu0 0
        %774 = vmatpush1.bf16.msra.mxu0 0
        %775 = vmatprep.subr.bf16.mxu0 0
        %776 = vmatpush1.bf16.msra.mxu0 0
        %777 = vmatprep.subr.bf16.mxu0 0
        %778 = vmatpush1.bf16.msra.mxu0 0
        %779 = vmatprep.subr.bf16.mxu0 0
        %780 = vmatpush1.bf16.msra.mxu0 0
        %781 = vmatprep.subr.bf16.mxu0 0
        %782 = vmatpush1.bf16.msra.mxu0 0
        %783 = vmatprep.subr.bf16.mxu0 0
        %784 = vmatpush1.bf16.msra.mxu0 0
        %785 = vmatprep.subr.bf16.mxu0 0
        %786 = vmatpush1.bf16.msra.mxu0 0
        %787 = vmatprep.subr.bf16.mxu0 0
        %788 = vmatpush1.bf16.msra.mxu0 0
        %789 = vmatprep.mubr.bf16.mxu0 0
        %790 = vmatmul.mubr.bf16.gmra.mrb[0].mxu0 %v755
        %v791 = vpop.f32.mrb[0].mxu0
        %v792 = vadd.f32 0.0, %v791
        %v793 = vpop.f32.mrb[0].mxu0
        %v794 = vpop.f32.mrb[0].mxu0
        %v795 = vpop.f32.mrb[0].mxu0
        %796 = vdwg.mxu0
        %v797 = vld [vmem:[%s7] sm:$0xf]
        %v798 = vld [vmem:[%s7 + $0x4] sm:$0xf]
        %v799 = vld [vmem:[%s7 + $0x8] sm:$0xf]
        %v800 = vld [vmem:[%s7 + $0xc] sm:$0xf]
        %v801 = vld [vmem:[%s7 + $0x10] sm:$0xf]
        %v802 = vld [vmem:[%s7 + $0x14] sm:$0xf]
        %v803 = vld [vmem:[%s7 + $0x18] sm:$0xf]
        %v804 = vld [vmem:[%s7 + $0x1c] sm:$0xf]
        %v813 = vunpack.c.l.b16 %v797
        %v814 = vunpack.c.l.b16 %v798
        %v815 = vunpack.c.l.b16 %v799
        %v816 = vunpack.c.l.b16 %v800
        %v817 = vunpack.c.l.b16 %v801
        %v818 = vunpack.c.l.b16 %v802
        %v819 = vunpack.c.l.b16 %v803
        %v820 = vunpack.c.l.b16 %v804
        %v821 = vpack.c.b16 %v814, %v813
        %v822 = vpack.c.b16 %v816, %v815
        %v823 = vpack.c.b16 %v818, %v817
        %v824 = vpack.c.b16 %v820, %v819
        %829 = vmatprep.subr.bf16.mxu0 0
        %830 = vmatpush1.bf16.msra.mxu0 %v821
        %831 = vmatprep.subr.bf16.mxu0 0
        %832 = vmatpush1.bf16.msra.mxu0 %v822
        %833 = vmatprep.subr.bf16.mxu0 0
        %834 = vmatpush1.bf16.msra.mxu0 %v823
        %835 = vmatprep.subr.bf16.mxu0 0
        %836 = vmatpush1.bf16.msra.mxu0 %v824
        %837 = vmatprep.subr.bf16.mxu0 0
        %838 = vmatpush1.bf16.msra.mxu0 0
        %839 = vmatprep.subr.bf16.mxu0 0
        %840 = vmatpush1.bf16.msra.mxu0 0
        %841 = vmatprep.subr.bf16.mxu0 0
        %842 = vmatpush1.bf16.msra.mxu0 0
        %843 = vmatprep.subr.bf16.mxu0 0
        %844 = vmatpush1.bf16.msra.mxu0 0
        %845 = vmatprep.subr.bf16.mxu0 0
        %846 = vmatpush1.bf16.msra.mxu0 0
        %847 = vmatprep.subr.bf16.mxu0 0
        %848 = vmatpush1.bf16.msra.mxu0 0
        %849 = vmatprep.subr.bf16.mxu0 0
        %850 = vmatpush1.bf16.msra.mxu0 0
        %851 = vmatprep.subr.bf16.mxu0 0
        %852 = vmatpush1.bf16.msra.mxu0 0
        %853 = vmatprep.subr.bf16.mxu0 0
        %854 = vmatpush1.bf16.msra.mxu0 0
        %855 = vmatprep.subr.bf16.mxu0 0
        %856 = vmatpush1.bf16.msra.mxu0 0
        %857 = vmatprep.subr.bf16.mxu0 0
        %858 = vmatpush1.bf16.msra.mxu0 0
        %859 = vmatprep.subr.bf16.mxu0 0
        %860 = vmatpush1.bf16.msra.mxu0 0
        %861 = vmatprep.mubr.bf16.mxu0 0
        %862 = vmatmul.mubr.bf16.gmra.mrb[0].mxu0 %v755
        %v863 = vpop.f32.mrb[0].mxu0
        %v864 = vadd.f32 0.0, %v863
        %v865 = vpop.f32.mrb[0].mxu0
        %v866 = vpop.f32.mrb[0].mxu0
        %v867 = vpop.f32.mrb[0].mxu0
        %868 = vdwg.mxu0
        %v869 = vld [vmem:[%s8] sm:$0xf]
        %v870 = vld [vmem:[%s8 + $0x4] sm:$0xf]
        %v871 = vld [vmem:[%s8 + $0x8] sm:$0xf]
        %v872 = vld [vmem:[%s8 + $0xc] sm:$0xf]
        %v873 = vld [vmem:[%s8 + $0x10] sm:$0xf]
        %v874 = vld [vmem:[%s8 + $0x14] sm:$0xf]
        %v875 = vld [vmem:[%s8 + $0x18] sm:$0xf]
        %v876 = vld [vmem:[%s8 + $0x1c] sm:$0xf]
        %v877 = vld [vmem:[%s9] sm:$0x1]
        %v879 = vlaneseq
        %v880 = vshrl.u32 %v879, 7
        %v881 = vsub.s32 0, %v880
        %v882 = vrot.slane %v877, %v881
        %v892 = vunpack.c.l.b16 %v869
        %v893 = vunpack.c.l.b16 %v870
        %v894 = vunpack.c.l.b16 %v871
        %v895 = vunpack.c.l.b16 %v872
        %v896 = vunpack.c.l.b16 %v873
        %v897 = vunpack.c.l.b16 %v874
        %v898 = vunpack.c.l.b16 %v875
        %v899 = vunpack.c.l.b16 %v876
        %v900 = vpack.c.b16 %v893, %v892
        %v901 = vpack.c.b16 %v895, %v894
        %v902 = vpack.c.b16 %v897, %v896
        %v903 = vpack.c.b16 %v899, %v898
        %908 = vmatprep.subr.bf16.mxu0 0
        %909 = vmatpush1.bf16.msra.mxu0 %v900
        %910 = vmatprep.subr.bf16.mxu0 0
        %911 = vmatpush1.bf16.msra.mxu0 %v901
        %912 = vmatprep.subr.bf16.mxu0 0
        %913 = vmatpush1.bf16.msra.mxu0 %v902
        %914 = vmatprep.subr.bf16.mxu0 0
        %915 = vmatpush1.bf16.msra.mxu0 %v903
        %916 = vmatprep.subr.bf16.mxu0 0
        %917 = vmatpush1.bf16.msra.mxu0 0
        %918 = vmatprep.subr.bf16.mxu0 0
        %919 = vmatpush1.bf16.msra.mxu0 0
        %920 = vmatprep.subr.bf16.mxu0 0
        %921 = vmatpush1.bf16.msra.mxu0 0
        %922 = vmatprep.subr.bf16.mxu0 0
        %923 = vmatpush1.bf16.msra.mxu0 0
        %924 = vmatprep.subr.bf16.mxu0 0
        %925 = vmatpush1.bf16.msra.mxu0 0
        %926 = vmatprep.subr.bf16.mxu0 0
        %927 = vmatpush1.bf16.msra.mxu0 0
        %928 = vmatprep.subr.bf16.mxu0 0
        %929 = vmatpush1.bf16.msra.mxu0 0
        %930 = vmatprep.subr.bf16.mxu0 0
        %931 = vmatpush1.bf16.msra.mxu0 0
        %932 = vmatprep.subr.bf16.mxu0 0
        %933 = vmatpush1.bf16.msra.mxu0 0
        %934 = vmatprep.subr.bf16.mxu0 0
        %935 = vmatpush1.bf16.msra.mxu0 0
        %936 = vmatprep.subr.bf16.mxu0 0
        %937 = vmatpush1.bf16.msra.mxu0 0
        %938 = vmatprep.subr.bf16.mxu0 0
        %939 = vmatpush1.bf16.msra.mxu0 0
        %940 = vmatprep.mubr.bf16.mxu0 0
        %941 = vmatmul.mubr.bf16.gmra.mrb[0].mxu0 %v755
        %v942 = vpop.f32.mrb[0].mxu0
        %v943 = vadd.f32 %v882, %v942
        %v944 = vpop.f32.mrb[0].mxu0
        %v945 = vpop.f32.mrb[0].mxu0
        %v946 = vpop.f32.mrb[0].mxu0
        %947 = vdwg.mxu0
        %v948 = vmax.f32 %v943, 0.0
        %v949 = vand.u32 2147483647, %v943
        %v950 = vsub.f32 0.0, %v949
        %v951 = vmul.f32 %v950, 1.442695
        %v952 = vpow.pop %v951
        %v953 = vadd.f32 %v952, 1.0
        %v954 = vlog2.pop %v953
        %v955 = vmul.f32 %v954, 0.6931472
        %v956 = vadd.f32 %v948, %v955
        %v957 = vld [vmem:[%s10] sm:$0x1]
        %v958 = vmul.f32 %v957, 1.442695
        %v959 = vpow.pop %v958
        %v960 = vsub.f32 0.0, %v959
        %v962 = vlaneseq
        %v963 = vshrl.u32 %v962, 7
        %v964 = vsub.s32 0, %v963
        %v965 = vrot.slane %v960, %v964
        %v967 = vmul.f32 %v956, %v965
        %v968 = vlaneseq
        %v969 = vshrl.u32 %v968, 7
        %v970 = vlaneseq
        %v971 = vand.u32 %v970, 127
        %vm972 = vcmp.ge.s32.totalorder %v969, %v971
        %v973 = vsel %vm972, 1, 0
        %v974 = vcvt.s32.f32 %v973
        %vm975 = vcmp.le.s32.totalorder %v969, %v971
        %v976 = vsel %vm975, 1, 0
        %v977 = vcvt.s32.f32 %v976
        %vm978 = vcmask 64512
        %v980 = vsel %vm978, %v974, 0
        %982 = vmatprep.subr.mxu0 0.0
        %983 = vmatpush1.msra.mxu0 %v967
        %984 = vmatprep.subr.mxu0 0.0
        %985 = vmatpush1.msra.mxu0 0.0
        %986 = vmatprep.subr.mxu0 0.0
        %987 = vmatpush1.msra.mxu0 0.0
        %988 = vmatprep.subr.mxu0 0.0
        %989 = vmatpush1.msra.mxu0 0.0
        %990 = vmatprep.subr.mxu0 0.0
        %991 = vmatpush1.msra.mxu0 0.0
        %992 = vmatprep.subr.mxu0 0.0
        %993 = vmatpush1.msra.mxu0 0.0
        %994 = vmatprep.subr.mxu0 0.0
        %995 = vmatpush1.msra.mxu0 0.0
        %996 = vmatprep.subr.mxu0 0.0
        %997 = vmatpush1.msra.mxu0 0.0
        %998 = vmatprep.subr.mxu0 0.0
        %999 = vmatpush1.msra.mxu0 0.0
        %1000 = vmatprep.subr.mxu0 0.0
        %1001 = vmatpush1.msra.mxu0 0.0
        %1002 = vmatprep.subr.mxu0 0.0
        %1003 = vmatpush1.msra.mxu0 0.0
        %1004 = vmatprep.subr.mxu0 0.0
        %1005 = vmatpush1.msra.mxu0 0.0
        %1006 = vmatprep.subr.mxu0 0.0
        %1007 = vmatpush1.msra.mxu0 0.0
        %1008 = vmatprep.subr.mxu0 0.0
        %1009 = vmatpush1.msra.mxu0 0.0
        %1010 = vmatprep.subr.mxu0 0.0
        %1011 = vmatpush1.msra.mxu0 0.0
        %1012 = vmatprep.subr.mxu0 0.0
        %1013 = vmatpush1.msra.mxu0 0.0
        %1014 = vmatprep.subr.mxu0 0.0
        %1015 = vmatpush1.msra.mxu0 0.0
        %1016 = vmatprep.subr.mxu0 0.0
        %1017 = vmatpush1.msra.mxu0 0.0
        %1018 = vmatprep.subr.mxu0 0.0
        %1019 = vmatpush1.msra.mxu0 0.0
        %1020 = vmatprep.subr.mxu0 0.0
        %1021 = vmatpush1.msra.mxu0 0.0
        %1022 = vmatprep.subr.mxu0 0.0
        %1023 = vmatpush1.msra.mxu0 0.0
        %1024 = vmatprep.subr.mxu0 0.0
        %1025 = vmatpush1.msra.mxu0 0.0
        %1026 = vmatprep.subr.mxu0 0.0
        %1027 = vmatpush1.msra.mxu0 0.0
        %1028 = vmatprep.subr.mxu0 0.0
        %1029 = vmatpush1.msra.mxu0 0.0
        %1030 = vmatprep.subr.mxu0 0.0
        %1031 = vmatpush1.msra.mxu0 0.0
        %1032 = vmatprep.subr.mxu0 0.0
        %1033 = vmatpush1.msra.mxu0 0.0
        %1034 = vmatprep.subr.mxu0 0.0
        %1035 = vmatpush1.msra.mxu0 0.0
        %1036 = vmatprep.subr.mxu0 0.0
        %1037 = vmatpush1.msra.mxu0 0.0
        %1038 = vmatprep.subr.mxu0 0.0
        %1039 = vmatpush1.msra.mxu0 0.0
        %1040 = vmatprep.subr.mxu0 0.0
        %1041 = vmatpush1.msra.mxu0 0.0
        %1042 = vmatprep.subr.mxu0 0.0
        %1043 = vmatpush1.msra.mxu0 0.0
        %1044 = vmatprep.subr.mxu0 0.0
        %1045 = vmatpush1.msra.mxu0 0.0
        %1046 = vmatprep.mubr.f32.mxu0 0.0
        %1047 = vmatmul.mubr.f32.gmra.mrb[0].mxu0 %v980
        %v1048 = vpop.f32.mrb[0].mxu0
        %v1049 = vadd.f32 0.0, %v1048
        %v1050 = vpop.f32.mrb[0].mxu0
        %1051 = vdwg.mxu0
        %1052 = vxpose.xlu0.b32.start [1/16] %v967, 128
        %1053 = vxpose.xlu0.b32.cont [2/16] 0.0, 128
        %1054 = vxpose.xlu0.b32.cont [3/16] 0.0, 128
        %1055 = vxpose.xlu0.b32.cont [4/16] 0.0, 128
        %1056 = vxpose.xlu0.b32.cont [5/16] 0.0, 128
        %1057 = vxpose.xlu0.b32.cont [6/16] 0.0, 128
        %1058 = vxpose.xlu0.b32.cont [7/16] 0.0, 128
        %1059 = vxpose.xlu0.b32.cont [8/16] 0.0, 128
        %1060 = vxpose.xlu0.b32.cont [9/16] 0.0, 128
        %1061 = vxpose.xlu0.b32.cont [10/16] 0.0, 128
        %1062 = vxpose.xlu0.b32.cont [11/16] 0.0, 128
        %1063 = vxpose.xlu0.b32.cont [12/16] 0.0, 128
        %1064 = vxpose.xlu0.b32.cont [13/16] 0.0, 128
        %1065 = vxpose.xlu0.b32.cont [14/16] 0.0, 128
        %1066 = vxpose.xlu0.b32.cont [15/16] 0.0, 128
        %1067 = vxpose.xlu0.b32.end [16/16] 0.0, 128
        %v1068 = vpop.trf.xlu0
        %v1069 = vpop.trf.xlu0
        %v1070 = vpop.trf.xlu0
        %v1071 = vpop.trf.xlu0
        %v1072 = vpop.trf.xlu0
        %v1073 = vpop.trf.xlu0
        %v1074 = vpop.trf.xlu0
        %v1075 = vpop.trf.xlu0
        %v1076 = vpop.trf.xlu0
        %v1077 = vpop.trf.xlu0
        %v1078 = vpop.trf.xlu0
        %v1079 = vpop.trf.xlu0
        %v1080 = vpop.trf.xlu0
        %v1081 = vpop.trf.xlu0
        %v1082 = vpop.trf.xlu0
        %v1083 = vpop.trf.xlu0
        %v1085 = vsel %vm978, %v1068, 0
        %1087 = vmatprep.subr.mxu0 0.0
        %1088 = vmatpush1.msra.mxu0 %v977
        %1089 = vmatprep.subr.mxu0 0.0
        %1090 = vmatpush1.msra.mxu0 0.0
        %1091 = vmatprep.subr.mxu0 0.0
        %1092 = vmatpush1.msra.mxu0 0.0
        %1093 = vmatprep.subr.mxu0 0.0
        %1094 = vmatpush1.msra.mxu0 0.0
        %1095 = vmatprep.subr.mxu0 0.0
        %1096 = vmatpush1.msra.mxu0 0.0
        %1097 = vmatprep.subr.mxu0 0.0
        %1098 = vmatpush1.msra.mxu0 0.0
        %1099 = vmatprep.subr.mxu0 0.0
        %1100 = vmatpush1.msra.mxu0 0.0
        %1101 = vmatprep.subr.mxu0 0.0
        %1102 = vmatpush1.msra.mxu0 0.0
        %1103 = vmatprep.subr.mxu0 0.0
        %1104 = vmatpush1.msra.mxu0 0.0
        %1105 = vmatprep.subr.mxu0 0.0
        %1106 = vmatpush1.msra.mxu0 0.0
        %1107 = vmatprep.subr.mxu0 0.0
        %1108 = vmatpush1.msra.mxu0 0.0
        %1109 = vmatprep.subr.mxu0 0.0
        %1110 = vmatpush1.msra.mxu0 0.0
        %1111 = vmatprep.subr.mxu0 0.0
        %1112 = vmatpush1.msra.mxu0 0.0
        %1113 = vmatprep.subr.mxu0 0.0
        %1114 = vmatpush1.msra.mxu0 0.0
        %1115 = vmatprep.subr.mxu0 0.0
        %1116 = vmatpush1.msra.mxu0 0.0
        %1117 = vmatprep.subr.mxu0 0.0
        %1118 = vmatpush1.msra.mxu0 0.0
        %1119 = vmatprep.subr.mxu0 0.0
        %1120 = vmatpush1.msra.mxu0 0.0
        %1121 = vmatprep.subr.mxu0 0.0
        %1122 = vmatpush1.msra.mxu0 0.0
        %1123 = vmatprep.subr.mxu0 0.0
        %1124 = vmatpush1.msra.mxu0 0.0
        %1125 = vmatprep.subr.mxu0 0.0
        %1126 = vmatpush1.msra.mxu0 0.0
        %1127 = vmatprep.subr.mxu0 0.0
        %1128 = vmatpush1.msra.mxu0 0.0
        %1129 = vmatprep.subr.mxu0 0.0
        %1130 = vmatpush1.msra.mxu0 0.0
        %1131 = vmatprep.subr.mxu0 0.0
        %1132 = vmatpush1.msra.mxu0 0.0
        %1133 = vmatprep.subr.mxu0 0.0
        %1134 = vmatpush1.msra.mxu0 0.0
        %1135 = vmatprep.subr.mxu0 0.0
        %1136 = vmatpush1.msra.mxu0 0.0
        %1137 = vmatprep.subr.mxu0 0.0
        %1138 = vmatpush1.msra.mxu0 0.0
        %1139 = vmatprep.subr.mxu0 0.0
        %1140 = vmatpush1.msra.mxu0 0.0
        %1141 = vmatprep.subr.mxu0 0.0
        %1142 = vmatpush1.msra.mxu0 0.0
        %1143 = vmatprep.subr.mxu0 0.0
        %1144 = vmatpush1.msra.mxu0 0.0
        %1145 = vmatprep.subr.mxu0 0.0
        %1146 = vmatpush1.msra.mxu0 0.0
        %1147 = vmatprep.subr.mxu0 0.0
        %1148 = vmatpush1.msra.mxu0 0.0
        %1149 = vmatprep.subr.mxu0 0.0
        %1150 = vmatpush1.msra.mxu0 0.0
        %1151 = vmatprep.mubr.f32.mxu0 0.0
        %1152 = vmatmul.mubr.f32.gmra.mrb[0].mxu0 %v1085
        %v1153 = vpop.f32.mrb[0].mxu0
        %v1154 = vadd.f32 0.0, %v1153
        %v1155 = vpop.f32.mrb[0].mxu0
        %1156 = vdwg.mxu0
        %v1157 = vmul.f32 %v1049, 1.442695
        %v1158 = vpow.pop %v1157
        %v1159 = vlaneseq
        %v1160 = vshrl.u32 %v1159, 7
        %v1161 = vsub.s32 7, %v1160
        %v1162 = vrot.slane %v1049, %v1161
        %v1163 = vsub.f32 %v1162, %v1049
        %v1164 = vmul.f32 %v1163, 1.442695
        %v1165 = vpow.pop %v1164
        %v1166 = vpack.c.bf16 %v864, %v864
        %v1167 = vpack.c.bf16 %v792, %v792
        %v1168 = vld [vmem:[%s11] sm:$0x1]
        %vm1169 = vcmask 130048
        %v1171 = vsel %vm1169, %v1166, 0
        %v1174 = vsel %vm1169, %v1167, 0
        %1176 = vmatprep.subr.bf16.mxu0 0
        %1177 = vmatpush1.bf16.xpose.msra.mxu0 %v1174
        %1178 = vmatprep.subr.bf16.mxu0 0
        %1179 = vmatpush1.bf16.xpose.msra.mxu0 0
        %1180 = vmatprep.subr.bf16.mxu0 0
        %1181 = vmatpush1.bf16.xpose.msra.mxu0 0
        %1182 = vmatprep.subr.bf16.mxu0 0
        %1183 = vmatpush1.bf16.xpose.msra.mxu0 0
        %1184 = vmatprep.subr.bf16.mxu0 0
        %1185 = vmatpush1.bf16.xpose.msra.mxu0 0
        %1186 = vmatprep.subr.bf16.mxu0 0
        %1187 = vmatpush1.bf16.xpose.msra.mxu0 0
        %1188 = vmatprep.subr.bf16.mxu0 0
        %1189 = vmatpush1.bf16.xpose.msra.mxu0 0
        %1190 = vmatprep.subr.bf16.mxu0 0
        %1191 = vmatpush1.bf16.xpose.msra.mxu0 0
        %1192 = vmatprep.subr.bf16.mxu0 0
        %1193 = vmatpush1.bf16.xpose.msra.mxu0 0
        %1194 = vmatprep.subr.bf16.mxu0 0
        %1195 = vmatpush1.bf16.xpose.msra.mxu0 0
        %1196 = vmatprep.subr.bf16.mxu0 0
        %1197 = vmatpush1.bf16.xpose.msra.mxu0 0
        %1198 = vmatprep.subr.bf16.mxu0 0
        %1199 = vmatpush1.bf16.xpose.msra.mxu0 0
        %1200 = vmatprep.subr.bf16.mxu0 0
        %1201 = vmatpush1.bf16.xpose.msra.mxu0 0
        %1202 = vmatprep.subr.bf16.mxu0 0
        %1203 = vmatpush1.bf16.xpose.msra.mxu0 0
        %1204 = vmatprep.subr.bf16.mxu0 0
        %1205 = vmatpush1.bf16.xpose.msra.mxu0 0
        %1206 = vmatprep.subr.bf16.mxu0 0
        %1207 = vmatpush1.bf16.xpose.msra.mxu0 0
        %1208 = vmatprep.mubr.bf16.mxu0 0
        %1209 = vmatmul.mubr.bf16.gmra.mrb[0].mxu0 %v1171
        %v1210 = vpop.f32.mrb[0].mxu0
        %v1211 = vadd.f32 0.0, %v1210
        %v1212 = vpop.f32.mrb[0].mxu0
        %v1213 = vpop.f32.mrb[0].mxu0
        %v1214 = vpop.f32.mrb[0].mxu0
        %1215 = vdwg.mxu0
        %v1216 = vld [vmem:[#allocation2] sm:$0xff]
        %v1217 = vld [vmem:[#allocation2 + $0x8] sm:$0xff]
        %v1218 = vpack.c.bf16 %v1217, %v1216
        %1219 = vmatprep.subr.bf16.mxu0 0
        %1220 = vmatpush1.bf16.msra.mxu0 %v1218
        %1221 = vmatprep.subr.bf16.mxu0 0
        %1222 = vmatpush1.bf16.msra.mxu0 0
        %1223 = vmatprep.subr.bf16.mxu0 0
        %1224 = vmatpush1.bf16.msra.mxu0 0
        %1225 = vmatprep.subr.bf16.mxu0 0
        %1226 = vmatpush1.bf16.msra.mxu0 0
        %1227 = vmatprep.subr.bf16.mxu0 0
        %1228 = vmatpush1.bf16.msra.mxu0 0
        %1229 = vmatprep.subr.bf16.mxu0 0
        %1230 = vmatpush1.bf16.msra.mxu0 0
        %1231 = vmatprep.subr.bf16.mxu0 0
        %1232 = vmatpush1.bf16.msra.mxu0 0
        %1233 = vmatprep.subr.bf16.mxu0 0
        %1234 = vmatpush1.bf16.msra.mxu0 0
        %1235 = vmatprep.subr.bf16.mxu0 0
        %1236 = vmatpush1.bf16.msra.mxu0 0
        %1237 = vmatprep.subr.bf16.mxu0 0
        %1238 = vmatpush1.bf16.msra.mxu0 0
        %1239 = vmatprep.subr.bf16.mxu0 0
        %1240 = vmatpush1.bf16.msra.mxu0 0
        %1241 = vmatprep.subr.bf16.mxu0 0
        %1242 = vmatpush1.bf16.msra.mxu0 0
        %1243 = vmatprep.subr.bf16.mxu0 0
        %1244 = vmatpush1.bf16.msra.mxu0 0
        %1245 = vmatprep.subr.bf16.mxu0 0
        %1246 = vmatpush1.bf16.msra.mxu0 0
        %1247 = vmatprep.subr.bf16.mxu0 0
        %1248 = vmatpush1.bf16.msra.mxu0 0
        %1249 = vmatprep.subr.bf16.mxu0 0
        %1250 = vmatpush1.bf16.msra.mxu0 0
        %1251 = vmatprep.mubr.bf16.mxu0 0
        %1252 = vmatmul.mubr.bf16.gmra.mrb[0].mxu0 %v1171
        %v1253 = vpop.f32.mrb[0].mxu0
        %v1254 = vadd.f32 0.0, %v1253
        %v1255 = vpop.f32.mrb[0].mxu0
        %v1256 = vpop.f32.mrb[0].mxu0
        %v1257 = vpop.f32.mrb[0].mxu0
        %1258 = vdwg.mxu0
        %1260 = vset.pattern.permute.xlu0 0
        %1261 = vperm.xlu0 %1260, %v1049
        %v1262 = vpop.permute.xlu0 %1261
        %v1264 = vlaneseq
        %v1265 = vshrl.u32 %v1264, 7
        %v1266 = vsub.s32 0, %v1265
        %v1267 = vrot.slane %v1154, %v1266
        %v1268 = vsub.f32 %v1262, %v1267
        %v1269 = vsel %vm972, %v1268, -1e+30
        %v1270 = vmul.f32 %v1269, 1.442695
        %v1271 = vpow.pop %v1270
        %v1272 = vmul.f32 %v1211, %v1271
        %v1273 = vpack.c.bf16 %v1272, %v1272
        %1275 = vset.pattern.permute.xlu0 0
        %1276 = vperm.xlu0 %1275, %v956
        %v1277 = vpop.permute.xlu0 %1276
        %v1279 = vmul.f32 %v1277, %v715
        %1281 = vset.pattern.permute.xlu0 0
        %1282 = vperm.xlu0 %1281, %v1165
        %v1283 = vpop.permute.xlu0 %1282
        %v1285 = vmul.f32 %v1283, %v1279
        %1286 = vst.msk [vmem:[#allocation5] sm:$0xff] %vm624, %v1285
        %v1287 = vpack.c.bf16 %v1279, %v1279
        %1289 = vset.pattern.permute.xlu0 0
        %1290 = vperm.xlu0 %1289, %v1158
        %v1291 = vpop.permute.xlu0 %1290
        %v1293 = vmul.f32 %v1291, %v1254
        %v1295 = vsel %vm978, %v1273, 0
        %vm1297 = vcmask 1043456
        %v1299 = vsel %vm1297, %v1287, 0
        %1301 = vmatprep.subr.bf16.mxu0 0
        %1302 = vmatpush1.bf16.msra.mxu0 %v1299
        %1303 = vmatprep.subr.bf16.mxu0 0
        %1304 = vmatpush1.bf16.msra.mxu0 0
        %1305 = vmatprep.subr.bf16.mxu0 0
        %1306 = vmatpush1.bf16.msra.mxu0 0
        %1307 = vmatprep.subr.bf16.mxu0 0
        %1308 = vmatpush1.bf16.msra.mxu0 0
        %1309 = vmatprep.subr.bf16.mxu0 0
        %1310 = vmatpush1.bf16.msra.mxu0 0
        %1311 = vmatprep.subr.bf16.mxu0 0
        %1312 = vmatpush1.bf16.msra.mxu0 0
        %1313 = vmatprep.subr.bf16.mxu0 0
        %1314 = vmatpush1.bf16.msra.mxu0 0
        %1315 = vmatprep.subr.bf16.mxu0 0
        %1316 = vmatpush1.bf16.msra.mxu0 0
        %1317 = vmatprep.subr.bf16.mxu0 0
        %1318 = vmatpush1.bf16.msra.mxu0 0
        %1319 = vmatprep.subr.bf16.mxu0 0
        %1320 = vmatpush1.bf16.msra.mxu0 0
        %1321 = vmatprep.subr.bf16.mxu0 0
        %1322 = vmatpush1.bf16.msra.mxu0 0
        %1323 = vmatprep.subr.bf16.mxu0 0
        %1324 = vmatpush1.bf16.msra.mxu0 0
        %1325 = vmatprep.subr.bf16.mxu0 0
        %1326 = vmatpush1.bf16.msra.mxu0 0
        %1327 = vmatprep.subr.bf16.mxu0 0
        %1328 = vmatpush1.bf16.msra.mxu0 0
        %1329 = vmatprep.subr.bf16.mxu0 0
        %1330 = vmatpush1.bf16.msra.mxu0 0
        %1331 = vmatprep.subr.bf16.mxu0 0
        %1332 = vmatpush1.bf16.msra.mxu0 0
        %1333 = vmatprep.mubr.bf16.mxu0 0
        %1334 = vmatmul.mubr.bf16.gmra.mrb[0].mxu0 %v1295
        %v1335 = vpop.f32.mrb[0].mxu0
        %v1336 = vadd.f32 %v1293, %v1335
        %v1337 = vpop.f32.mrb[0].mxu0
        %v1338 = vpop.f32.mrb[0].mxu0
        %v1339 = vpop.f32.mrb[0].mxu0
        %1340 = vdwg.mxu0
        %v1342 = vlaneseq
        %v1343 = vshrl.u32 %v1342, 7
        %v1344 = vsub.s32 0, %v1343
        %v1345 = vrot.slane %v1168, %v1344
        %v1347 = vmul.f32 %v1345, %v715
        %v1348 = vadd.f32 %v1336, %v1347
        %1349 = vst.msk [vmem:[#allocation4] sm:$0xff] %vm624, %v1348
        %1350 = vset.pattern.permute.xlu0 1
        %1351 = vperm.xlu0 %1350, %v1049
        %v1352 = vpop.permute.xlu0 %1351
        %v1354 = vlaneseq
        %v1355 = vshrl.u32 %v1354, 7
        %v1356 = vsub.s32 1, %v1355
        %v1357 = vrot.slane %v1154, %v1356
        %v1358 = vsub.f32 %v1352, %v1357
        %v1359 = vsel %vm972, %v1358, -1e+30
        %v1360 = vmul.f32 %v1359, 1.442695
        %v1361 = vpow.pop %v1360
        %v1362 = vmul.f32 %v1211, %v1361
        %v1363 = vpack.c.bf16 %v1362, %v1362
        %1364 = vset.pattern.permute.xlu0 1
        %1365 = vperm.xlu0 %1364, %v956
        %v1366 = vpop.permute.xlu0 %1365
        %v1368 = vmul.f32 %v1366, %v715
        %1369 = vset.pattern.permute.xlu0 1
        %1370 = vperm.xlu0 %1369, %v1165
        %v1371 = vpop.permute.xlu0 %1370
        %v1373 = vmul.f32 %v1371, %v1368
        %vm1374 = vcmask 523520
        %1375 = vst.msk [vmem:[#allocation5] sm:$0xff] %vm1374, %v1373
        %v1376 = vpack.c.bf16 %v1368, %v1368
        %1377 = vset.pattern.permute.xlu0 1
        %1378 = vperm.xlu0 %1377, %v1158
        %v1379 = vpop.permute.xlu0 %1378
        %v1381 = vmul.f32 %v1379, %v1254
        %1383 = vrot.lane.b32.xlu0 %v1376, 96
        %v1384 = vpop.permute.xlu0 %1383
        %1386 = vrot.lane.b32.xlu0 %v1381, 96
        %v1387 = vpop.permute.xlu0 %1386
        %v1390 = vsel %vm978, %v1363, 0
        %v1393 = vsel %vm1297, %v1384, 0
        %1395 = vmatprep.subr.bf16.mxu0 0
        %1396 = vmatpush1.bf16.msra.mxu0 %v1393
        %1397 = vmatprep.subr.bf16.mxu0 0
        %1398 = vmatpush1.bf16.msra.mxu0 0
        %1399 = vmatprep.subr.bf16.mxu0 0
        %1400 = vmatpush1.bf16.msra.mxu0 0
        %1401 = vmatprep.subr.bf16.mxu0 0
        %1402 = vmatpush1.bf16.msra.mxu0 0
        %1403 = vmatprep.subr.bf16.mxu0 0
        %1404 = vmatpush1.bf16.msra.mxu0 0
        %1405 = vmatprep.subr.bf16.mxu0 0
        %1406 = vmatpush1.bf16.msra.mxu0 0
        %1407 = vmatprep.subr.bf16.mxu0 0
        %1408 = vmatpush1.bf16.msra.mxu0 0
        %1409 = vmatprep.subr.bf16.mxu0 0
        %1410 = vmatpush1.bf16.msra.mxu0 0
        %1411 = vmatprep.subr.bf16.mxu0 0
        %1412 = vmatpush1.bf16.msra.mxu0 0
        %1413 = vmatprep.subr.bf16.mxu0 0
        %1414 = vmatpush1.bf16.msra.mxu0 0
        %1415 = vmatprep.subr.bf16.mxu0 0
        %1416 = vmatpush1.bf16.msra.mxu0 0
        %1417 = vmatprep.subr.bf16.mxu0 0
        %1418 = vmatpush1.bf16.msra.mxu0 0
        %1419 = vmatprep.subr.bf16.mxu0 0
        %1420 = vmatpush1.bf16.msra.mxu0 0
        %1421 = vmatprep.subr.bf16.mxu0 0
        %1422 = vmatpush1.bf16.msra.mxu0 0
        %1423 = vmatprep.subr.bf16.mxu0 0
        %1424 = vmatpush1.bf16.msra.mxu0 0
        %1425 = vmatprep.subr.bf16.mxu0 0
        %1426 = vmatpush1.bf16.msra.mxu0 0
        %1427 = vmatprep.mubr.bf16.mxu0 0
        %1428 = vmatmul.mubr.bf16.gmra.mrb[0].mxu0 %v1390
        %v1429 = vpop.f32.mrb[0].mxu0
        %v1430 = vadd.f32 %v1387, %v1429
        %v1431 = vpop.f32.mrb[0].mxu0
        %v1432 = vpop.f32.mrb[0].mxu0
        %v1433 = vpop.f32.mrb[0].mxu0
        %1434 = vdwg.mxu0
        %1436 = vrot.lane.b32.xlu0 %v1347, 96
        %v1437 = vpop.permute.xlu0 %1436
        %v1439 = vadd.f32 %v1430, %v1437
        %1441 = vrot.lane.b32.xlu0 %v1439, 32
        %v1442 = vpop.permute.xlu0 %1441
        %1444 = vst.msk [vmem:[#allocation4] sm:$0xff] %vm1374, %v1442
        %v1445 = vld [vmem:[#allocation5] sm:$0xff]
        %v1446 = vpack.c.bf16 %v1445, %v1445
        %1447 = vxpose.xlu0.c.b16.start [1/8] %v1167, 128
        %1448 = vxpose.xlu0.c.b16.cont [2/8] 0, 128
        %1449 = vxpose.xlu0.c.b16.cont [3/8] 0, 128
        %1450 = vxpose.xlu0.c.b16.cont [4/8] 0, 128
        %1451 = vxpose.xlu0.c.b16.cont [5/8] 0, 128
        %1452 = vxpose.xlu0.c.b16.cont [6/8] 0, 128
        %1453 = vxpose.xlu0.c.b16.cont [7/8] 0, 128
        %1454 = vxpose.xlu0.c.b16.end [8/8] 0, 128
        %v1455 = vpop.trf.xlu0
        %v1456 = vpop.trf.xlu0
        %v1457 = vpop.trf.xlu0
        %v1458 = vpop.trf.xlu0
        %v1459 = vpop.trf.xlu0
        %v1460 = vpop.trf.xlu0
        %v1461 = vpop.trf.xlu0
        %v1462 = vpop.trf.xlu0
        %v1464 = vsel %vm978, %v1455, 0
        %v1467 = vsel %vm1297, %v1446, 0
        %1469 = vmatprep.subr.bf16.mxu0 0
        %1470 = vmatpush1.bf16.msra.mxu0 %v1467
        %1471 = vmatprep.subr.bf16.mxu0 0
        %1472 = vmatpush1.bf16.msra.mxu0 0
        %1473 = vmatprep.subr.bf16.mxu0 0
        %1474 = vmatpush1.bf16.msra.mxu0 0
        %1475 = vmatprep.subr.bf16.mxu0 0
        %1476 = vmatpush1.bf16.msra.mxu0 0
        %1477 = vmatprep.subr.bf16.mxu0 0
        %1478 = vmatpush1.bf16.msra.mxu0 0
        %1479 = vmatprep.subr.bf16.mxu0 0
        %1480 = vmatpush1.bf16.msra.mxu0 0
        %1481 = vmatprep.subr.bf16.mxu0 0
        %1482 = vmatpush1.bf16.msra.mxu0 0
        %1483 = vmatprep.subr.bf16.mxu0 0
        %1484 = vmatpush1.bf16.msra.mxu0 0
        %1485 = vmatprep.subr.bf16.mxu0 0
        %1486 = vmatpush1.bf16.msra.mxu0 0
        %1487 = vmatprep.subr.bf16.mxu0 0
        %1488 = vmatpush1.bf16.msra.mxu0 0
        %1489 = vmatprep.subr.bf16.mxu0 0
        %1490 = vmatpush1.bf16.msra.mxu0 0
        %1491 = vmatprep.subr.bf16.mxu0 0
        %1492 = vmatpush1.bf16.msra.mxu0 0
        %1493 = vmatprep.subr.bf16.mxu0 0
        %1494 = vmatpush1.bf16.msra.mxu0 0
        %1495 = vmatprep.subr.bf16.mxu0 0
        %1496 = vmatpush1.bf16.msra.mxu0 0
        %1497 = vmatprep.subr.bf16.mxu0 0
        %1498 = vmatpush1.bf16.msra.mxu0 0
        %1499 = vmatprep.subr.bf16.mxu0 0
        %1500 = vmatpush1.bf16.msra.mxu0 0
        %1501 = vmatprep.mubr.bf16.mxu0 0
        %1502 = vmatmul.mubr.bf16.gmra.mrb[0].mxu0 %v1464
        %v1503 = vpop.f32.mrb[0].mxu0
        %v1504 = vadd.f32 0.0, %v1503
        %v1505 = vpop.f32.mrb[0].mxu0
        %v1506 = vpop.f32.mrb[0].mxu0
        %v1507 = vadd.f32 0.0, %v1506
        %v1508 = vpop.f32.mrb[0].mxu0
        %1509 = vdwg.mxu0
        %v1510 = vld [vmem:[#allocation2] sm:$0xff]
        %v1511 = vld [vmem:[#allocation2 + $0x8] sm:$0xff]
        %v1512 = vrot.slane %v1158, 7
        %s1513 = vtos %v1512
        %v1514 = vstv %s1513
        %v1516 = vmul.f32 %v1514, %v1510
        %v1517 = vmul.f32 %v1514, %v1511
        %v1518 = vadd.f32 %v1516, %v1504
        %v1519 = vadd.f32 %v1517, %v1507
        %1520 = vst.msk [vmem:[#allocation2] sm:$0xff] %vm624, %v1518
        %1521 = vst.msk [vmem:[#allocation2 + $0x8] sm:$0xff] %vm624, %v1519
        %v1522 = vld [vmem:[#allocation2] sm:$0xff]
        %v1523 = vld [vmem:[#allocation2 + $0x8] sm:$0xff]
        %1524 = vrot.lane.b32.xlu0 %v1512, 127
        %v1525 = vpop.permute.xlu0 %1524
        %s1526 = vtos %v1525
        %v1527 = vstv %s1526
        %v1529 = vmul.f32 %v1527, %v1522
        %v1530 = vmul.f32 %v1527, %v1523
        %v1531 = vadd.f32 %v1529, %v1504
        %v1532 = vadd.f32 %v1530, %v1507
        %1533 = vst.msk [vmem:[#allocation2] sm:$0xff] %vm1374, %v1531
        %1534 = vst.msk [vmem:[#allocation2 + $0x8] sm:$0xff] %vm1374, %v1532
        %v1535 = vld [vmem:[#allocation4] sm:$0xff]
        %1536 = vst.msk [vmem:[#allocation3 + $0x3] sm:$0xff] %vm753, %v715
        %v1537 = vld [vmem:[%s13] sm:$0x1]
        %v1539 = vlaneseq
        %v1540 = vshrl.u32 %v1539, 7
        %v1541 = vsub.s32 0, %v1540
        %v1542 = vrot.slane %v1537, %v1541
        %v1544 = vld [vmem:[#allocation3] sm:$0xff]
        %v1545 = vld [vmem:[%s12] sm:$0x1]
        %v1546 = vlaneseq
        %v1547 = vshrl.u32 %v1546, 7
        %v1548 = vsub.s32 0, %v1547
        %v1549 = vrot.slane %v1545, %v1548
        %v1550 = vmul.f32 %v1544, %v1549
        %v1551 = vadd.f32 %v1542, %v1550
        %v1552 = vld [vmem:[#allocation3 + $0x1] sm:$0xff]
        %v1553 = vld [vmem:[%s12 + $0x1] sm:$0x1]
        %v1554 = vlaneseq
        %v1555 = vshrl.u32 %v1554, 7
        %v1556 = vsub.s32 0, %v1555
        %v1557 = vrot.slane %v1553, %v1556
        %v1558 = vmul.f32 %v1552, %v1557
        %v1559 = vadd.f32 %v1551, %v1558
        %v1560 = vld [vmem:[#allocation3 + $0x2] sm:$0xff]
        %v1561 = vld [vmem:[%s12 + $0x2] sm:$0x1]
        %v1562 = vlaneseq
        %v1563 = vshrl.u32 %v1562, 7
        %v1564 = vsub.s32 0, %v1563
        %v1565 = vrot.slane %v1561, %v1564
        %v1566 = vmul.f32 %v1560, %v1565
        %v1567 = vadd.f32 %v1559, %v1566
        %v1568 = vld [vmem:[#allocation3 + $0x3] sm:$0xff]
        %v1569 = vld [vmem:[%s12 + $0x3] sm:$0x1]
        %v1570 = vlaneseq
        %v1571 = vshrl.u32 %v1570, 7
        %v1572 = vsub.s32 0, %v1571
        %v1573 = vrot.slane %v1569, %v1572
        %v1574 = vmul.f32 %v1568, %v1573
        %v1575 = vadd.f32 %v1567, %v1574
        %v1576 = vand.u32 2147483647, %v1575
        %v1577 = vsub.f32 0.0, %v1576
        %v1578 = vmul.f32 %v1577, 1.442695
        %v1579 = vpow.pop %v1578
        %v1580 = vadd.f32 %v1579, 1.0
        %v1581 = vrcp.pop %v1580
        %vm1582 = vcmp.ge.f32.partialorder %v1575, 0.0
        %v1583 = vmul.f32 %v1579, %v1581
        %v1584 = vsel %vm1582, %v1581, %v1583
        %v1585 = vmul.f32 %v1575, %v1584
        %v1586 = vld [vmem:[#allocation3 + $0x8] sm:$0x7]
        %vm1587 = vcmask 518144
        %1588 = vst.msk [vmem:[#allocation3] sm:$0x7] %vm1587, %v1586
        %v1589 = vand.u32 2147483647, %v1585
        %v1590 = vsub.f32 0.0, %v1589
        %v1591 = vmul.f32 %v1590, 1.442695
        %v1592 = vpow.pop %v1591
        %v1593 = vadd.f32 %v1592, 1.0
        %v1594 = vrcp.pop %v1593
        %vm1595 = vcmp.ge.f32.partialorder %v1585, 0.0
        %v1596 = vmul.f32 %v1592, %v1594
        %v1597 = vsel %vm1595, %v1594, %v1596
        %v1598 = vmul.f32 %v1535, %v1597
        %v1599 = vpack.c.bf16 %v1598, %v1598
        %v1600 = vld [vmem:[%s14] sm:$0xf]
        %v1601 = vld [vmem:[%s14 + $0x4] sm:$0xf]
        %v1602 = vld [vmem:[%s14 + $0x8] sm:$0xf]
        %v1603 = vld [vmem:[%s14 + $0xc] sm:$0xf]
        %v1604 = vld [vmem:[%s14 + $0x10] sm:$0xf]
        %v1605 = vld [vmem:[%s14 + $0x14] sm:$0xf]
        %v1606 = vld [vmem:[%s14 + $0x18] sm:$0xf]
        %v1607 = vld [vmem:[%s14 + $0x1c] sm:$0xf]
        %v1608 = vld [vmem:[%s15] sm:$0x1]
        %v1610 = vlaneseq
        %v1611 = vshrl.u32 %v1610, 7
        %v1612 = vsub.s32 0, %v1611
        %v1613 = vrot.slane %v1608, %v1612
        %v1623 = vunpack.c.l.b16 %v1600
        %v1624 = vunpack.c.l.b16 %v1601
        %v1625 = vunpack.c.l.b16 %v1602
        %v1626 = vunpack.c.l.b16 %v1603
        %v1627 = vunpack.c.l.b16 %v1604
        %v1628 = vunpack.c.l.b16 %v1605
        %v1629 = vunpack.c.l.b16 %v1606
        %v1630 = vunpack.c.l.b16 %v1607
        %v1631 = vpack.c.b16 %v1624, %v1623
        %v1632 = vpack.c.b16 %v1626, %v1625
        %v1633 = vpack.c.b16 %v1628, %v1627
        %v1634 = vpack.c.b16 %v1630, %v1629
        %v1640 = vsel %vm753, %v1599, 0
        %1642 = vmatprep.subr.bf16.mxu0 0
        %1643 = vmatpush1.bf16.msra.mxu0 %v1631
        %1644 = vmatprep.subr.bf16.mxu0 0
        %1645 = vmatpush1.bf16.msra.mxu0 %v1632
        %1646 = vmatprep.subr.bf16.mxu0 0
        %1647 = vmatpush1.bf16.msra.mxu0 %v1633
        %1648 = vmatprep.subr.bf16.mxu0 0
        %1649 = vmatpush1.bf16.msra.mxu0 %v1634
        %1650 = vmatprep.subr.bf16.mxu0 0
        %1651 = vmatpush1.bf16.msra.mxu0 0
        %1652 = vmatprep.subr.bf16.mxu0 0
        %1653 = vmatpush1.bf16.msra.mxu0 0
        %1654 = vmatprep.subr.bf16.mxu0 0
        %1655 = vmatpush1.bf16.msra.mxu0 0
        %1656 = vmatprep.subr.bf16.mxu0 0
        %1657 = vmatpush1.bf16.msra.mxu0 0
        %1658 = vmatprep.subr.bf16.mxu0 0
        %1659 = vmatpush1.bf16.msra.mxu0 0
        %1660 = vmatprep.subr.bf16.mxu0 0
        %1661 = vmatpush1.bf16.msra.mxu0 0
        %1662 = vmatprep.subr.bf16.mxu0 0
        %1663 = vmatpush1.bf16.msra.mxu0 0
        %1664 = vmatprep.subr.bf16.mxu0 0
        %1665 = vmatpush1.bf16.msra.mxu0 0
        %1666 = vmatprep.subr.bf16.mxu0 0
        %1667 = vmatpush1.bf16.msra.mxu0 0
        %1668 = vmatprep.subr.bf16.mxu0 0
        %1669 = vmatpush1.bf16.msra.mxu0 0
        %1670 = vmatprep.subr.bf16.mxu0 0
        %1671 = vmatpush1.bf16.msra.mxu0 0
        %1672 = vmatprep.subr.bf16.mxu0 0
        %1673 = vmatpush1.bf16.msra.mxu0 0
        %1674 = vmatprep.mubr.bf16.mxu0 0
        %1675 = vmatmul.mubr.bf16.gmra.mrb[0].mxu0 %v1640
        %v1676 = vpop.f32.mrb[0].mxu0
        %v1677 = vadd.f32 %v1613, %v1676
        %v1678 = vpop.f32.mrb[0].mxu0
        %v1679 = vpop.f32.mrb[0].mxu0
        %v1680 = vpop.f32.mrb[0].mxu0
        %1681 = vdwg.mxu0
        %v1682 = vadd.f32 %v1677, %v621
        %v1683 = vpack.c.bf16 %v1682, %v1682
        %vm1684 = vcmask 257024
        %1685 = vst.msk [vmem:[%s607] sm:$0xf] %vm1684, %v1683
        %p1686 = scmp.eq.s32.totalorder %s37, 1
        // Predicated region
        $region89: #{mamba2_forward.2} parent=83 // pred_check
          %p1687 = pneg %p1686
        $region90: #{mamba2_forward.2} parent=83 // pred_check_branch
          %1689 = sbr.rel (%p1687) target = $region92
        $region91: #{mamba2_forward.2} parent=83 // pred_region
          %v1690 = vld [vmem:[#allocation2] sm:$0xff]
          %v1691 = vld [vmem:[#allocation2 + $0x8] sm:$0xff]
          %1692 = vst.msk [vmem:[%s587] sm:$0xff] %vm753, %v1690
          %1693 = vst.msk [vmem:[%s587 + $0x8] sm:$0xff] %vm753, %v1691
        $region92: #{mamba2_forward.2} parent=83 // pred_fallthru
          _
        %p1694 = scmp.lt.s32.totalorder %s36, 1
        %s1695 = scalar_select %p1694, %s36, 1
        %p1696 = scmp.lt.s32.totalorder %s37, 1
        %s1697 = scalar_select %p1696, %s37, 1
        %s1698 = smul.addr %s1695, 2
        %s1699 = sadd.s32 %s1697, %s1698
        %s1700 = smul.addr %s1699, 4
        %s1701 = scalar_lea.vmem %s16, %s1700
        %s1702 = sand.u32 %s428, 1
        %s1703 = scalar_lea.sflag [#allocation7], %s1702
        %s1704 = sand.u32 %s428, 1
        %s1705 = smul.addr %s1704, 16
        %s1706 = scalar_lea.vmem [#allocation6], %s1705
        // Predicated region
        $region93: #{mamba2_forward.2} parent=83 // pred_check
          %p1707 = pneg %p412
        $region94: #{mamba2_forward.2} parent=83 // pred_check_branch
          %1709 = sbr.rel (%p1707) target = $region96
        $region95: #{mamba2_forward.2} parent=83 // pred_region
          _
        $region96: #{mamba2_forward.2} parent=83 // pred_fallthru
          _
        // Predicated region
        $region97: #{mamba2_forward.2} parent=83 // pred_check
          %p1710 = pneg %p438
        $region98: #{mamba2_forward.2} parent=83 // pred_check_branch
          %1712 = sbr.rel (%p1710) target = $region100
        $region99: #{mamba2_forward.2} parent=83 // pred_region
          %s1714 = ssub.s32 256, 256
          %1715 = vsyncadd %s1703, %s1714
          %s1716 = smul.addr %s36, 2
          %s1717 = smul.addr %s1716, 128
          %s1718 = scalar_lea.hbm %s17, %s1717
          %s1719 = sshll.u32 %s1706, 4
          %s1720 = int_to_ptr.vmem [resolvable:$true] %s1719
          %1725 = dma.vmem_to_hbm [thread:$0]  %s1720, 256, %s1718, %s1703, 128, 128, 8
        $region100: #{mamba2_forward.2} parent=83 // pred_fallthru
          _
      $region84: #{mamba2_forward.2} parent=5 // pred_fallthru
        _
      %p1726 = scmp.le.s32.totalorder 2, %s27
      // Predicated region
      $region101: #{mamba2_forward.2} parent=5 // pred_check
        %p1727 = pneg %p1726
      $region102: #{mamba2_forward.2} parent=5 // pred_check_branch
        %1729 = sbr.rel (%p1727) target = $region104
      $region103: #{mamba2_forward.2} parent=5 // pred_region
        %s1730 = ssub.s32 %s27, 2
        // Predicated region
        $region105: #{mamba2_forward.2} parent=103 // pred_check
          %p1731 = pneg %p418
        $region106: #{mamba2_forward.2} parent=103 // pred_check_branch
          %1733 = sbr.rel (%p1731) target = $region108
        $region107: #{mamba2_forward.2} parent=103 // pred_region
          %p1734 = scmp.lt.s32.totalorder %s38, 1
          %s1735 = scalar_select %p1734, %s38, 1
          %p1736 = scmp.lt.s32.totalorder %s39, 1
          %s1737 = scalar_select %p1736, %s39, 1
          %s1738 = smul.addr %s1735, 2
          %s1739 = sadd.s32 %s1737, %s1738
          %s1740 = smul.addr %s1739, 4
          %s1741 = scalar_lea.vmem %s16, %s1740
        $region108: #{mamba2_forward.2} parent=103 // pred_fallthru
          _
        // Predicated region
        $region109: #{mamba2_forward.2} parent=103 // pred_check
          %p1742 = pneg %p444
        $region110: #{mamba2_forward.2} parent=103 // pred_check_branch
          %1744 = sbr.rel (%p1742) target = $region112
        $region111: #{mamba2_forward.2} parent=103 // pred_region
          %s1745 = sand.u32 %s429, 1
          %s1746 = scalar_lea.sflag [#allocation7], %s1745
          %s1747 = sand.u32 %s429, 1
          %s1748 = smul.addr %s1747, 16
          %s1749 = scalar_lea.vmem [#allocation6], %s1748
          %1750 = dma.done %s1746, 256
        $region112: #{mamba2_forward.2} parent=103 // pred_fallthru
          _
      $region104: #{mamba2_forward.2} parent=5 // pred_fallthru
        _
    $region6: #{mamba2_forward.2} parent=1 // loop_footer
      %s31 = sadd.s32 1, %s27
    $region7: #{mamba2_forward.2} parent=1 // loop_footer_branch
      %26 = sbr.rel target = $region3
    $region8: #{mamba2_forward.2} parent=1 // loop_exit
      _
    %1751 = vsyncpa [#allocation7], 1
    %s1752 = scalar_lea.sflag [#allocation7], 1
    %1753 = vsyncpa %s1752, 1

</llo_original>
